<compile_context>
chip_gen: v7x
topology: tpu7x:2x2x1
jax: 0.10.0
libtpu: 0.0.40
codegen_flags: <defaults>
</compile_context>

<pallas_src>
import functools

import jax
import jax.numpy as jnp
from jax.experimental import pallas as pl
from jax.experimental.pallas import tpu as pltpu

LANE = 128
SUBLANE = 8


def _round_up(x, m):
    return (x + m - 1) // m * m


def _pick_t_chunk(T, cap=16):
    c = min(T, cap)
    while T % c:
        c -= 1
    return c


# ---------------------------------------------------------------------------
# Fused kernel: all LSTM layers + final FC, tiled over time chunks.
# ---------------------------------------------------------------------------
def _gen_rnn_lstm_kernel(*refs, num_layers, t_chunk, hidden_pad, batch_pad):
    L, Tt, Hp, Bp = num_layers, t_chunk, hidden_pad, batch_pad
    n_w = 3 * L
    x_ref = refs[0]                                     # (Tt*Bp, Ip)   bf16 chunk
    w_ih_refs = [refs[1 + 3 * l] for l in range(L)]     # (in_pad, 4Hp) bf16
    w_hh_refs = [refs[2 + 3 * l] for l in range(L)]     # (Hp, 4Hp)     bf16 (resident)
    b_refs = [refs[3 + 3 * l] for l in range(L)]        # (1, 4Hp)      f32 (b_ih + b_hh)
    fc_w_ref = refs[1 + n_w]                            # (Hp, Ep)      bf16
    fc_b_ref = refs[2 + n_w]                            # (1, Ep)       f32
    out_ref = refs[3 + n_w]                             # (Bp, Ep)      f32
    scr = refs[4 + n_w:]
    h_refs = scr[0:L]                                   # L x (Bp, Hp) f32, persistent
    c_refs = scr[L:2 * L]                               # L x (Bp, Hp) f32, persistent
    seq_scr = scr[2 * L]                                # (Tt*Bp, Hp)  f32 inter-layer seq
    gin_scr = scr[2 * L + 1]                            # (Tt*Bp, 4Hp) f32 input projections

    @pl.when(pl.program_id(0) == 0)
    def _init():
        for l in range(L):
            h_refs[l][...] = jnp.zeros_like(h_refs[l])
            c_refs[l][...] = jnp.zeros_like(c_refs[l])

    for l in range(L):
        if l == 0:
            xin = x_ref[...]                            # bf16 already
        else:
            xin = seq_scr[...].astype(jnp.bfloat16)     # previous layer's chunk output
        # Input projection for the whole chunk as ONE big MXU GEMM; bias folded in
        # once (hoisted out of the time loop).
        gin_scr[...] = (
            jnp.dot(xin, w_ih_refs[l][...], preferred_element_type=jnp.float32)
            + b_refs[l][...])

        w_hh = w_hh_refs[l][...]                        # recurrent weight, loaded once
        write_seq = (l + 1 < L)                         # last layer's seq is never read

        # Time recurrence over the chunk; fully unrolled (Tt is small & static) so the
        # scheduler can overlap step t's gate math with step t+1's recurrent matmul.
        for t in range(Tt):
            rows = pl.ds(t * Bp, Bp)
            h = h_refs[l][...]                          # (Bp, Hp) f32
            c = c_refs[l][...]
            gates = gin_scr[rows, :] + jnp.dot(
                h.astype(jnp.bfloat16), w_hh, preferred_element_type=jnp.float32)
            # PyTorch gate order: i, f, g, o — each slice is exactly Hp = 128 lanes.
            i_g = jax.nn.sigmoid(gates[:, 0 * Hp:1 * Hp])
            f_g = jax.nn.sigmoid(gates[:, 1 * Hp:2 * Hp])
            g_g = jnp.tanh(gates[:, 2 * Hp:3 * Hp])
            o_g = jax.nn.sigmoid(gates[:, 3 * Hp:4 * Hp])
            c_new = f_g * c + i_g * g_g
            h_new = o_g * jnp.tanh(c_new)
            c_refs[l][...] = c_new
            h_refs[l][...] = h_new
            if write_seq:
                seq_scr[rows, :] = h_new
        # TODO(synk): inter-layer dropout (training-mode only) omitted — eval semantics.

    # Final FC fused into the last grid step: out = h_T @ W_fc^T + b_fc.
    @pl.when(pl.program_id(0) == pl.num_programs(0) - 1)
    def _finalize():
        h_last = h_refs[L - 1][...].astype(jnp.bfloat16)
        out_ref[...] = (
            jnp.dot(h_last, fc_w_ref[...], preferred_element_type=jnp.float32)
            + fc_b_ref[...])


# ---------------------------------------------------------------------------
# Parameter construction (PyTorch-shaped) and kernel-layout packing.
# ---------------------------------------------------------------------------
def init_params(key, input_size, hidden_size, num_layers, embedding_dims):
    """Mirrors nn.LSTM / nn.Linear parameter shapes; U(-1/sqrt(H), 1/sqrt(H))."""
    params = {"layers": []}
    bound = 1.0 / float(hidden_size) ** 0.5
    for layer in range(num_layers):
        in_dim = input_size if layer == 0 else hidden_size
        key, k1, k2, k3, k4 = jax.random.split(key, 5)
        params["layers"].append({
            "w_ih": jax.random.uniform(k1, (4 * hidden_size, in_dim), jnp.float32, -bound, bound),
            "w_hh": jax.random.uniform(k2, (4 * hidden_size, hidden_size), jnp.float32, -bound, bound),
            "b_ih": jax.random.uniform(k3, (4 * hidden_size,), jnp.float32, -bound, bound),
            "b_hh": jax.random.uniform(k4, (4 * hidden_size,), jnp.float32, -bound, bound),
        })
    key, kf1, kf2 = jax.random.split(key, 3)
    params["fc_w"] = jax.random.uniform(kf1, (embedding_dims, hidden_size), jnp.float32, -bound, bound)
    params["fc_b"] = jax.random.uniform(kf2, (embedding_dims,), jnp.float32, -bound, bound)
    return params


def _pack_gate_weight(w, H, Hp, in_pad):
    """(4H, in) torch layout [i|f|g|o] -> (in_pad, 4*Hp) bf16; gate g at cols [g*Hp, g*Hp+H)."""
    in_dim = w.shape[1]
    w4 = w.reshape(4, H, in_dim)
    w4 = jnp.pad(w4, ((0, 0), (0, Hp - H), (0, in_pad - in_dim)))
    return jnp.transpose(w4, (2, 0, 1)).reshape(in_pad, 4 * Hp).astype(jnp.bfloat16)


def _pack_gate_bias(b_ih, b_hh, H, Hp):
    b = (b_ih + b_hh).reshape(4, H)
    b = jnp.pad(b, ((0, 0), (0, Hp - H)))
    return b.reshape(1, 4 * Hp).astype(jnp.float32)


def prepare_kernel_params(raw, input_size, hidden_size, num_layers, embedding_dims):
    """Pad to lane/sublane-friendly shapes (zeros keep LSTM math exact) + bf16 matmul operands."""
    H = hidden_size
    Hp = _round_up(H, LANE)
    Ip = _round_up(input_size, SUBLANE)
    Ep = _round_up(embedding_dims, LANE)
    layers = []
    for l, lp in enumerate(raw["layers"]):
        in_pad = Ip if l == 0 else Hp
        layers.append({
            "w_ih": _pack_gate_weight(lp["w_ih"], H, Hp, in_pad),
            "w_hh": _pack_gate_weight(lp["w_hh"], H, Hp, Hp),
            "b": _pack_gate_bias(lp["b_ih"], lp["b_hh"], H, Hp),
        })
    fc_w = jnp.pad(raw["fc_w"].T, ((0, Hp - H), (0, Ep - embedding_dims))).astype(jnp.bfloat16)
    fc_b = jnp.pad(raw["fc_b"], (0, Ep - embedding_dims)).reshape(1, Ep).astype(jnp.float32)
    return {"layers": layers, "fc_w": fc_w, "fc_b": fc_b,
            "dims": {"I": input_size, "Ip": Ip, "H": H, "Hp": Hp,
                     "E": embedding_dims, "Ep": Ep, "L": num_layers}}


# ---------------------------------------------------------------------------
# Forward pass (GenRNNNet.forward equivalent).
# ---------------------------------------------------------------------------
def _vmem_bytes_estimate(Tt, Bp, Ip, Hp, Ep, L):
    bf16, f32 = 2, 4
    w = 0
    for l in range(L):
        in_pad = Ip if l == 0 else Hp
        w += in_pad * 4 * Hp * bf16 + Hp * 4 * Hp * bf16 + 4 * Hp * f32
    w += Hp * Ep * bf16 + Ep * f32
    io = Tt * Bp * Ip * bf16 + Bp * Ep * f32
    scratch = (2 * L * Bp * Hp + Tt * Bp * Hp + Tt * Bp * 4 * Hp) * f32
    return 2 * (w + io) + scratch                      # in/out are double-buffered


def gen_rnn_net_forward(kparams, x, *, t_chunk=None):
    """x: (B, T, input_size) float32 -> (B, embedding_dims) float32."""
    d = kparams["dims"]
    Hp, Ip, Ep, L = d["Hp"], d["Ip"], d["Ep"], d["L"]
    B, T, I = x.shape
    Bp = _round_up(B, SUBLANE)
    Tt = t_chunk if t_chunk is not None else _pick_t_chunk(T)
    assert T % Tt == 0, "sequence length must be divisible by the time chunk"

    # batch_first -> time-major, pad batch/feature, flatten (T, Bp) into rows so the
    # kernel's per-chunk input-projection GEMM needs no in-kernel reshape.
    xt = jnp.transpose(x, (1, 0, 2)).astype(jnp.float32)          # (T, B, I)
    xt = jnp.pad(xt, ((0, 0), (0, Bp - B), (0, Ip - I)))
    xt = xt.reshape(T * Bp, Ip).astype(jnp.bfloat16)

    inputs = [xt]
    in_specs = [pl.BlockSpec((Tt * Bp, Ip), lambda t: (t, 0))]
    for lp in kparams["layers"]:
        in_pad = lp["w_ih"].shape[0]
        inputs += [lp["w_ih"], lp["w_hh"], lp["b"]]
        in_specs += [
            pl.BlockSpec((in_pad, 4 * Hp), lambda t: (0, 0)),      # VMEM-resident
            pl.BlockSpec((Hp, 4 * Hp), lambda t: (0, 0)),          # VMEM-resident
            pl.BlockSpec((1, 4 * Hp), lambda t: (0, 0)),
        ]
    inputs += [kparams["fc_w"], kparams["fc_b"]]
    in_specs += [pl.BlockSpec((Hp, Ep), lambda t: (0, 0)),
                 pl.BlockSpec((1, Ep), lambda t: (0, 0))]

    scratch_shapes = (
        [pltpu.VMEM((Bp, Hp), jnp.float32) for _ in range(2 * L)]   # h_0..h_{L-1}, c_0..c_{L-1}
        + [pltpu.VMEM((Tt * Bp, Hp), jnp.float32),                  # inter-layer sequence chunk
           pltpu.VMEM((Tt * Bp, 4 * Hp), jnp.float32)])             # precomputed input projections

    # Explicit VMEM sizing (v7x has 64 MiB/TC — keep headroom for double buffering).
    vmem_limit = int(min(max(2 * _vmem_bytes_estimate(Tt, Bp, Ip, Hp, Ep, L) + (8 << 20),
                             16 << 20), 48 << 20))

    kernel = functools.partial(_gen_rnn_lstm_kernel, num_layers=L, t_chunk=Tt,
                               hidden_pad=Hp, batch_pad=Bp)
    # TODO(synk): for large B on v7x, add a leading "parallel" grid axis over batch
    # shards to use both TensorCores.
    out = pl.pallas_call(
        kernel,
        out_shape=jax.ShapeDtypeStruct((Bp, Ep), jnp.float32),
        grid_spec=pltpu.PrefetchScalarGridSpec(
            num_scalar_prefetch=0,
            grid=(T // Tt,),
            in_specs=in_specs,
            out_specs=pl.BlockSpec((Bp, Ep), lambda t: (0, 0)),
            scratch_shapes=scratch_shapes),
        compiler_params=pltpu.CompilerParams(
            dimension_semantics=("arbitrary",),
            vmem_limit_bytes=vmem_limit),
    )(*inputs)
    return out[:B, :d["E"]]


# ---------------------------------------------------------------------------
# Pure-JAX reference (matches torch nn.LSTM eval + nn.Linear).
# ---------------------------------------------------------------------------
def lstm_reference(raw, x):
    seq = x
    for lp in raw["layers"]:
        w_ih, w_hh = lp["w_ih"], lp["w_hh"]
        b = lp["b_ih"] + lp["b_hh"]
        B, T, _ = seq.shape
        H = w_hh.shape[1]
        h = jnp.zeros((B, H), jnp.float32)
        c = jnp.zeros((B, H), jnp.float32)
        outs = []
        for t in range(T):
            g = seq[:, t, :] @ w_ih.T + h @ w_hh.T + b
            i = jax.nn.sigmoid(g[:, 0 * H:1 * H])
            f = jax.nn.sigmoid(g[:, 1 * H:2 * H])
            gg = jnp.tanh(g[:, 2 * H:3 * H])
            o = jax.nn.sigmoid(g[:, 3 * H:4 * H])
            c = f * c + i * gg
            h = o * jnp.tanh(c)
            outs.append(h)
        seq = jnp.stack(outs, axis=1)
    return seq[:, -1, :] @ raw["fc_w"].T + raw["fc_b"]


# ---------------------------------------------------------------------------
if __name__ == "__main__":
    input_size = 12
    hidden_size = 32
    num_layers = 2
    embedding_dims = 16
    batch = 2
    seq_len = 8

    key = jax.random.PRNGKey(0)
    key_params, key_x = jax.random.split(key)
    raw = init_params(key_params, input_size, hidden_size, num_layers, embedding_dims)
    x = jax.random.normal(key_x, (batch, seq_len, input_size), jnp.float32)

    kparams = prepare_kernel_params(raw, input_size, hidden_size, num_layers, embedding_dims)
    # t_chunk=4 -> grid of 2 time chunks; exercises cross-chunk carry of h/c state.
    out = gen_rnn_net_forward(kparams, x, t_chunk=4)
    out = jax.block_until_ready(out)

    assert out.shape == (batch, embedding_dims), out.shape
    assert bool(jnp.all(jnp.isfinite(out)))
    ref = lstm_reference(raw, x)
    assert bool(jnp.allclose(out, ref, atol=5e-2, rtol=5e-2)), \
        float(jnp.max(jnp.abs(out - ref)))
    print("KERNEL_OK")
</pallas_src>

<mosaic_0001>
module attributes {stable_mosaic.version = 11 : i64} {
  func.func @_gen_rnn_lstm_kernel(%arg0: i32, %arg1: memref<32x16xbf16, #tpu.memory_space<vmem>>, %arg2: memref<16x512xbf16, #tpu.memory_space<vmem>>, %arg3: memref<128x512xbf16, #tpu.memory_space<vmem>>, %arg4: memref<1x512xf32, #tpu.memory_space<vmem>>, %arg5: memref<128x512xbf16, #tpu.memory_space<vmem>>, %arg6: memref<128x512xbf16, #tpu.memory_space<vmem>>, %arg7: memref<1x512xf32, #tpu.memory_space<vmem>>, %arg8: memref<128x128xbf16, #tpu.memory_space<vmem>>, %arg9: memref<1x128xf32, #tpu.memory_space<vmem>>, %arg10: memref<8x128xf32, #tpu.memory_space<vmem>>, %arg11: memref<8x128xf32, #tpu.memory_space<vmem>>, %arg12: memref<8x128xf32, #tpu.memory_space<vmem>>, %arg13: memref<8x128xf32, #tpu.memory_space<vmem>>, %arg14: memref<8x128xf32, #tpu.memory_space<vmem>>, %arg15: memref<32x128xf32, #tpu.memory_space<vmem>>, %arg16: memref<32x512xf32, #tpu.memory_space<vmem>>) attributes {dimension_semantics = [#tpu.dimension_semantics<arbitrary>], iteration_bounds = array<i64: 2>, scalar_prefetch = 0 : i64, scratch_operands = 6 : i64, tpu.core_type = #tpu.core_type<tc>, window_params = [{transform_indices = @transform_0, window_bounds = array<i64: 32, 16>}, {pipeline_mode = #tpu.pipeline_mode<synchronous>, transform_indices = @transform_1, window_bounds = array<i64: 16, 512>}, {pipeline_mode = #tpu.pipeline_mode<synchronous>, transform_indices = @transform_2, window_bounds = array<i64: 128, 512>}, {pipeline_mode = #tpu.pipeline_mode<synchronous>, transform_indices = @transform_3, window_bounds = array<i64: 1, 512>}, {pipeline_mode = #tpu.pipeline_mode<synchronous>, transform_indices = @transform_4, window_bounds = array<i64: 128, 512>}, {pipeline_mode = #tpu.pipeline_mode<synchronous>, transform_indices = @transform_5, window_bounds = array<i64: 128, 512>}, {pipeline_mode = #tpu.pipeline_mode<synchronous>, transform_indices = @transform_6, window_bounds = array<i64: 1, 512>}, {pipeline_mode = #tpu.pipeline_mode<synchronous>, transform_indices = @transform_7, window_bounds = array<i64: 128, 128>}, {pipeline_mode = #tpu.pipeline_mode<synchronous>, transform_indices = @transform_8, window_bounds = array<i64: 1, 128>}, {pipeline_mode = #tpu.pipeline_mode<synchronous>, transform_indices = @transform_9, window_bounds = array<i64: 8, 128>}]} {
    %c0_i32 = arith.constant 0 : i32
    %0 = arith.cmpi eq, %arg0, %c0_i32 : i32
    %1 = arith.extui %0 : i1 to i32
    %c0_i32_0 = arith.constant 0 : i32
    %2 = arith.cmpi ne, %1, %c0_i32_0 : i32
    scf.if %2 {
      %cst_139 = arith.constant 0.000000e+00 : f32
      %291 = vector.broadcast %cst_139 : f32 to vector<8x128xf32>
      %c0_140 = arith.constant 0 : index
      %c0_141 = arith.constant 0 : index
      %292 = vector.load %arg11[%c0_140, %c0_141] : memref<8x128xf32, #tpu.memory_space<vmem>>, vector<8x128xf32>
      tpu.vector_store %arg11[%c0_140, %c0_141], %291 {strides = array<i32>} : memref<8x128xf32, #tpu.memory_space<vmem>>, vector<8x128xf32>,
      %cst_142 = arith.constant 0.000000e+00 : f32
      %293 = vector.broadcast %cst_142 : f32 to vector<8x128xf32>
      %c0_143 = arith.constant 0 : index
      %c0_144 = arith.constant 0 : index
      %294 = vector.load %arg13[%c0_143, %c0_144] : memref<8x128xf32, #tpu.memory_space<vmem>>, vector<8x128xf32>
      tpu.vector_store %arg13[%c0_143, %c0_144], %293 {strides = array<i32>} : memref<8x128xf32, #tpu.memory_space<vmem>>, vector<8x128xf32>,
      %cst_145 = arith.constant 0.000000e+00 : f32
      %295 = vector.broadcast %cst_145 : f32 to vector<8x128xf32>
      %c0_146 = arith.constant 0 : index
      %c0_147 = arith.constant 0 : index
      %296 = vector.load %arg12[%c0_146, %c0_147] : memref<8x128xf32, #tpu.memory_space<vmem>>, vector<8x128xf32>
      tpu.vector_store %arg12[%c0_146, %c0_147], %295 {strides = array<i32>} : memref<8x128xf32, #tpu.memory_space<vmem>>, vector<8x128xf32>,
      %cst_148 = arith.constant 0.000000e+00 : f32
      %297 = vector.broadcast %cst_148 : f32 to vector<8x128xf32>
      %c0_149 = arith.constant 0 : index
      %c0_150 = arith.constant 0 : index
      %298 = vector.load %arg14[%c0_149, %c0_150] : memref<8x128xf32, #tpu.memory_space<vmem>>, vector<8x128xf32>
      tpu.vector_store %arg14[%c0_149, %c0_150], %297 {strides = array<i32>} : memref<8x128xf32, #tpu.memory_space<vmem>>, vector<8x128xf32>,
    } else {
    }
    %c0 = arith.constant 0 : index
    %c0_1 = arith.constant 0 : index
    %3 = vector.load %arg1[%c0, %c0_1] : memref<32x16xbf16, #tpu.memory_space<vmem>>, vector<32x16xbf16>
    %c0_2 = arith.constant 0 : index
    %c0_3 = arith.constant 0 : index
    %4 = vector.load %arg2[%c0_2, %c0_3] : memref<16x512xbf16, #tpu.memory_space<vmem>>, vector<16x512xbf16>
    %cst = arith.constant dense<0.000000e+00> : vector<32x512xf32>
    %5 = tpu.matmul %3, %4, %cst {dimension_numbers = #tpu.dot_dimension_numbers<[1], [0], [0], [1], [0, 0, 1, 1], [], []>} : vector<32x16xbf16>, vector<16x512xbf16>, vector<32x512xf32> -> vector<32x512xf32>
    %c0_4 = arith.constant 0 : index
    %c0_5 = arith.constant 0 : index
    %6 = vector.load %arg4[%c0_4, %c0_5] : memref<1x512xf32, #tpu.memory_space<vmem>>, vector<1x512xf32>
    %7 = vector.broadcast %6 : vector<1x512xf32> to vector<32x512xf32>
    %8 = arith.addf %5, %7 : vector<32x512xf32>
    %c0_6 = arith.constant 0 : index
    %c0_7 = arith.constant 0 : index
    %9 = vector.load %arg16[%c0_6, %c0_7] : memref<32x512xf32, #tpu.memory_space<vmem>>, vector<32x512xf32>
    tpu.vector_store %arg16[%c0_6, %c0_7], %8 {strides = array<i32>} : memref<32x512xf32, #tpu.memory_space<vmem>>, vector<32x512xf32>,
    %c0_8 = arith.constant 0 : index
    %c0_9 = arith.constant 0 : index
    %10 = vector.load %arg3[%c0_8, %c0_9] : memref<128x512xbf16, #tpu.memory_space<vmem>>, vector<128x512xbf16>
    %c0_10 = arith.constant 0 : index
    %c0_11 = arith.constant 0 : index
    %11 = vector.load %arg11[%c0_10, %c0_11] : memref<8x128xf32, #tpu.memory_space<vmem>>, vector<8x128xf32>
    %c0_12 = arith.constant 0 : index
    %c0_13 = arith.constant 0 : index
    %12 = vector.load %arg13[%c0_12, %c0_13] : memref<8x128xf32, #tpu.memory_space<vmem>>, vector<8x128xf32>
    %c0_14 = arith.constant 0 : index
    %c0_15 = arith.constant 0 : index
    %13 = vector.load %arg16[%c0_14, %c0_15] : memref<32x512xf32, #tpu.memory_space<vmem>>, vector<8x512xf32>
    %14 = arith.truncf %11 : vector<8x128xf32> to vector<8x128xbf16>
    %cst_16 = arith.constant dense<0.000000e+00> : vector<8x512xf32>
    %15 = tpu.matmul %14, %10, %cst_16 {dimension_numbers = #tpu.dot_dimension_numbers<[1], [0], [0], [1], [0, 0, 1, 1], [], []>} : vector<8x128xbf16>, vector<128x512xbf16>, vector<8x512xf32> -> vector<8x512xf32>
    %16 = arith.addf %13, %15 : vector<8x512xf32>
    %17 = vector.extract_strided_slice %16 {offsets = [0, 0], sizes = [8, 128], strides = [1, 1]} : vector<8x512xf32> to vector<8x128xf32>
    %18 = arith.negf %17 : vector<8x128xf32>
    %19 = math.exp %18 : vector<8x128xf32>
    %cst_17 = arith.constant 1.000000e+00 : f32
    %20 = vector.broadcast %cst_17 : f32 to vector<8x128xf32>
    %21 = arith.addf %20, %19 : vector<8x128xf32>
    %22 = arith.divf %20, %21 : vector<8x128xf32>
    %23 = vector.extract_strided_slice %16 {offsets = [0, 128], sizes = [8, 128], strides = [1, 1]} : vector<8x512xf32> to vector<8x128xf32>
    %24 = arith.negf %23 : vector<8x128xf32>
    %25 = math.exp %24 : vector<8x128xf32>
    %cst_18 = arith.constant 1.000000e+00 : f32
    %26 = vector.broadcast %cst_18 : f32 to vector<8x128xf32>
    %27 = arith.addf %26, %25 : vector<8x128xf32>
    %28 = arith.divf %26, %27 : vector<8x128xf32>
    %29 = vector.extract_strided_slice %16 {offsets = [0, 256], sizes = [8, 128], strides = [1, 1]} : vector<8x512xf32> to vector<8x128xf32>
    %30 = math.tanh %29 : vector<8x128xf32>
    %31 = vector.extract_strided_slice %16 {offsets = [0, 384], sizes = [8, 128], strides = [1, 1]} : vector<8x512xf32> to vector<8x128xf32>
    %32 = arith.negf %31 : vector<8x128xf32>
    %33 = math.exp %32 : vector<8x128xf32>
    %cst_19 = arith.constant 1.000000e+00 : f32
    %34 = vector.broadcast %cst_19 : f32 to vector<8x128xf32>
    %35 = arith.addf %34, %33 : vector<8x128xf32>
    %36 = arith.divf %34, %35 : vector<8x128xf32>
    %37 = arith.mulf %28, %12 : vector<8x128xf32>
    %38 = arith.mulf %22, %30 : vector<8x128xf32>
    %39 = arith.addf %37, %38 : vector<8x128xf32>
    %40 = math.tanh %39 : vector<8x128xf32>
    %41 = arith.mulf %36, %40 : vector<8x128xf32>
    %c0_20 = arith.constant 0 : index
    %c0_21 = arith.constant 0 : index
    %42 = vector.load %arg13[%c0_20, %c0_21] : memref<8x128xf32, #tpu.memory_space<vmem>>, vector<8x128xf32>
    tpu.vector_store %arg13[%c0_20, %c0_21], %39 {strides = array<i32>} : memref<8x128xf32, #tpu.memory_space<vmem>>, vector<8x128xf32>,
    %c0_22 = arith.constant 0 : index
    %c0_23 = arith.constant 0 : index
    %43 = vector.load %arg11[%c0_22, %c0_23] : memref<8x128xf32, #tpu.memory_space<vmem>>, vector<8x128xf32>
    tpu.vector_store %arg11[%c0_22, %c0_23], %41 {strides = array<i32>} : memref<8x128xf32, #tpu.memory_space<vmem>>, vector<8x128xf32>,
    %c0_24 = arith.constant 0 : index
    %c0_25 = arith.constant 0 : index
    %44 = vector.load %arg15[%c0_24, %c0_25] : memref<32x128xf32, #tpu.memory_space<vmem>>, vector<8x128xf32>
    tpu.vector_store %arg15[%c0_24, %c0_25], %41 {strides = array<i32>} : memref<32x128xf32, #tpu.memory_space<vmem>>, vector<8x128xf32>,
    %c0_26 = arith.constant 0 : index
    %c0_27 = arith.constant 0 : index
    %45 = vector.load %arg11[%c0_26, %c0_27] : memref<8x128xf32, #tpu.memory_space<vmem>>, vector<8x128xf32>
    %c0_28 = arith.constant 0 : index
    %c0_29 = arith.constant 0 : index
    %46 = vector.load %arg13[%c0_28, %c0_29] : memref<8x128xf32, #tpu.memory_space<vmem>>, vector<8x128xf32>
    %c8 = arith.constant 8 : index
    %c0_30 = arith.constant 0 : index
    %47 = vector.load %arg16[%c8, %c0_30] : memref<32x512xf32, #tpu.memory_space<vmem>>, vector<8x512xf32>
    %48 = arith.truncf %45 : vector<8x128xf32> to vector<8x128xbf16>
    %cst_31 = arith.constant dense<0.000000e+00> : vector<8x512xf32>
    %49 = tpu.matmul %48, %10, %cst_31 {dimension_numbers = #tpu.dot_dimension_numbers<[1], [0], [0], [1], [0, 0, 1, 1], [], []>} : vector<8x128xbf16>, vector<128x512xbf16>, vector<8x512xf32> -> vector<8x512xf32>
    %50 = arith.addf %47, %49 : vector<8x512xf32>
    %51 = vector.extract_strided_slice %50 {offsets = [0, 0], sizes = [8, 128], strides = [1, 1]} : vector<8x512xf32> to vector<8x128xf32>
    %52 = arith.negf %51 : vector<8x128xf32>
    %53 = math.exp %52 : vector<8x128xf32>
    %cst_32 = arith.constant 1.000000e+00 : f32
    %54 = vector.broadcast %cst_32 : f32 to vector<8x128xf32>
    %55 = arith.addf %54, %53 : vector<8x128xf32>
    %56 = arith.divf %54, %55 : vector<8x128xf32>
    %57 = vector.extract_strided_slice %50 {offsets = [0, 128], sizes = [8, 128], strides = [1, 1]} : vector<8x512xf32> to vector<8x128xf32>
    %58 = arith.negf %57 : vector<8x128xf32>
    %59 = math.exp %58 : vector<8x128xf32>
    %cst_33 = arith.constant 1.000000e+00 : f32
    %60 = vector.broadcast %cst_33 : f32 to vector<8x128xf32>
    %61 = arith.addf %60, %59 : vector<8x128xf32>
    %62 = arith.divf %60, %61 : vector<8x128xf32>
    %63 = vector.extract_strided_slice %50 {offsets = [0, 256], sizes = [8, 128], strides = [1, 1]} : vector<8x512xf32> to vector<8x128xf32>
    %64 = math.tanh %63 : vector<8x128xf32>
    %65 = vector.extract_strided_slice %50 {offsets = [0, 384], sizes = [8, 128], strides = [1, 1]} : vector<8x512xf32> to vector<8x128xf32>
    %66 = arith.negf %65 : vector<8x128xf32>
    %67 = math.exp %66 : vector<8x128xf32>
    %cst_34 = arith.constant 1.000000e+00 : f32
    %68 = vector.broadcast %cst_34 : f32 to vector<8x128xf32>
    %69 = arith.addf %68, %67 : vector<8x128xf32>
    %70 = arith.divf %68, %69 : vector<8x128xf32>
    %71 = arith.mulf %62, %46 : vector<8x128xf32>
    %72 = arith.mulf %56, %64 : vector<8x128xf32>
    %73 = arith.addf %71, %72 : vector<8x128xf32>
    %74 = math.tanh %73 : vector<8x128xf32>
    %75 = arith.mulf %70, %74 : vector<8x128xf32>
    %c0_35 = arith.constant 0 : index
    %c0_36 = arith.constant 0 : index
    %76 = vector.load %arg13[%c0_35, %c0_36] : memref<8x128xf32, #tpu.memory_space<vmem>>, vector<8x128xf32>
    tpu.vector_store %arg13[%c0_35, %c0_36], %73 {strides = array<i32>} : memref<8x128xf32, #tpu.memory_space<vmem>>, vector<8x128xf32>,
    %c0_37 = arith.constant 0 : index
    %c0_38 = arith.constant 0 : index
    %77 = vector.load %arg11[%c0_37, %c0_38] : memref<8x128xf32, #tpu.memory_space<vmem>>, vector<8x128xf32>
    tpu.vector_store %arg11[%c0_37, %c0_38], %75 {strides = array<i32>} : memref<8x128xf32, #tpu.memory_space<vmem>>, vector<8x128xf32>,
    %c8_39 = arith.constant 8 : index
    %c0_40 = arith.constant 0 : index
    %78 = vector.load %arg15[%c8_39, %c0_40] : memref<32x128xf32, #tpu.memory_space<vmem>>, vector<8x128xf32>
    tpu.vector_store %arg15[%c8_39, %c0_40], %75 {strides = array<i32>} : memref<32x128xf32, #tpu.memory_space<vmem>>, vector<8x128xf32>,
    %c0_41 = arith.constant 0 : index
    %c0_42 = arith.constant 0 : index
    %79 = vector.load %arg11[%c0_41, %c0_42] : memref<8x128xf32, #tpu.memory_space<vmem>>, vector<8x128xf32>
    %c0_43 = arith.constant 0 : index
    %c0_44 = arith.constant 0 : index
    %80 = vector.load %arg13[%c0_43, %c0_44] : memref<8x128xf32, #tpu.memory_space<vmem>>, vector<8x128xf32>
    %c16 = arith.constant 16 : index
    %c0_45 = arith.constant 0 : index
    %81 = vector.load %arg16[%c16, %c0_45] : memref<32x512xf32, #tpu.memory_space<vmem>>, vector<8x512xf32>
    %82 = arith.truncf %79 : vector<8x128xf32> to vector<8x128xbf16>
    %cst_46 = arith.constant dense<0.000000e+00> : vector<8x512xf32>
    %83 = tpu.matmul %82, %10, %cst_46 {dimension_numbers = #tpu.dot_dimension_numbers<[1], [0], [0], [1], [0, 0, 1, 1], [], []>} : vector<8x128xbf16>, vector<128x512xbf16>, vector<8x512xf32> -> vector<8x512xf32>
    %84 = arith.addf %81, %83 : vector<8x512xf32>
    %85 = vector.extract_strided_slice %84 {offsets = [0, 0], sizes = [8, 128], strides = [1, 1]} : vector<8x512xf32> to vector<8x128xf32>
    %86 = arith.negf %85 : vector<8x128xf32>
    %87 = math.exp %86 : vector<8x128xf32>
    %cst_47 = arith.constant 1.000000e+00 : f32
    %88 = vector.broadcast %cst_47 : f32 to vector<8x128xf32>
    %89 = arith.addf %88, %87 : vector<8x128xf32>
    %90 = arith.divf %88, %89 : vector<8x128xf32>
    %91 = vector.extract_strided_slice %84 {offsets = [0, 128], sizes = [8, 128], strides = [1, 1]} : vector<8x512xf32> to vector<8x128xf32>
    %92 = arith.negf %91 : vector<8x128xf32>
    %93 = math.exp %92 : vector<8x128xf32>
    %cst_48 = arith.constant 1.000000e+00 : f32
    %94 = vector.broadcast %cst_48 : f32 to vector<8x128xf32>
    %95 = arith.addf %94, %93 : vector<8x128xf32>
    %96 = arith.divf %94, %95 : vector<8x128xf32>
    %97 = vector.extract_strided_slice %84 {offsets = [0, 256], sizes = [8, 128], strides = [1, 1]} : vector<8x512xf32> to vector<8x128xf32>
    %98 = math.tanh %97 : vector<8x128xf32>
    %99 = vector.extract_strided_slice %84 {offsets = [0, 384], sizes = [8, 128], strides = [1, 1]} : vector<8x512xf32> to vector<8x128xf32>
    %100 = arith.negf %99 : vector<8x128xf32>
    %101 = math.exp %100 : vector<8x128xf32>
    %cst_49 = arith.constant 1.000000e+00 : f32
    %102 = vector.broadcast %cst_49 : f32 to vector<8x128xf32>
    %103 = arith.addf %102, %101 : vector<8x128xf32>
    %104 = arith.divf %102, %103 : vector<8x128xf32>
    %105 = arith.mulf %96, %80 : vector<8x128xf32>
    %106 = arith.mulf %90, %98 : vector<8x128xf32>
    %107 = arith.addf %105, %106 : vector<8x128xf32>
    %108 = math.tanh %107 : vector<8x128xf32>
    %109 = arith.mulf %104, %108 : vector<8x128xf32>
    %c0_50 = arith.constant 0 : index
    %c0_51 = arith.constant 0 : index
    %110 = vector.load %arg13[%c0_50, %c0_51] : memref<8x128xf32, #tpu.memory_space<vmem>>, vector<8x128xf32>
    tpu.vector_store %arg13[%c0_50, %c0_51], %107 {strides = array<i32>} : memref<8x128xf32, #tpu.memory_space<vmem>>, vector<8x128xf32>,
    %c0_52 = arith.constant 0 : index
    %c0_53 = arith.constant 0 : index
    %111 = vector.load %arg11[%c0_52, %c0_53] : memref<8x128xf32, #tpu.memory_space<vmem>>, vector<8x128xf32>
    tpu.vector_store %arg11[%c0_52, %c0_53], %109 {strides = array<i32>} : memref<8x128xf32, #tpu.memory_space<vmem>>, vector<8x128xf32>,
    %c16_54 = arith.constant 16 : index
    %c0_55 = arith.constant 0 : index
    %112 = vector.load %arg15[%c16_54, %c0_55] : memref<32x128xf32, #tpu.memory_space<vmem>>, vector<8x128xf32>
    tpu.vector_store %arg15[%c16_54, %c0_55], %109 {strides = array<i32>} : memref<32x128xf32, #tpu.memory_space<vmem>>, vector<8x128xf32>,
    %c0_56 = arith.constant 0 : index
    %c0_57 = arith.constant 0 : index
    %113 = vector.load %arg11[%c0_56, %c0_57] : memref<8x128xf32, #tpu.memory_space<vmem>>, vector<8x128xf32>
    %c0_58 = arith.constant 0 : index
    %c0_59 = arith.constant 0 : index
    %114 = vector.load %arg13[%c0_58, %c0_59] : memref<8x128xf32, #tpu.memory_space<vmem>>, vector<8x128xf32>
    %c24 = arith.constant 24 : index
    %c0_60 = arith.constant 0 : index
    %115 = vector.load %arg16[%c24, %c0_60] : memref<32x512xf32, #tpu.memory_space<vmem>>, vector<8x512xf32>
    %116 = arith.truncf %113 : vector<8x128xf32> to vector<8x128xbf16>
    %cst_61 = arith.constant dense<0.000000e+00> : vector<8x512xf32>
    %117 = tpu.matmul %116, %10, %cst_61 {dimension_numbers = #tpu.dot_dimension_numbers<[1], [0], [0], [1], [0, 0, 1, 1], [], []>} : vector<8x128xbf16>, vector<128x512xbf16>, vector<8x512xf32> -> vector<8x512xf32>
    %118 = arith.addf %115, %117 : vector<8x512xf32>
    %119 = vector.extract_strided_slice %118 {offsets = [0, 0], sizes = [8, 128], strides = [1, 1]} : vector<8x512xf32> to vector<8x128xf32>
    %120 = arith.negf %119 : vector<8x128xf32>
    %121 = math.exp %120 : vector<8x128xf32>
    %cst_62 = arith.constant 1.000000e+00 : f32
    %122 = vector.broadcast %cst_62 : f32 to vector<8x128xf32>
    %123 = arith.addf %122, %121 : vector<8x128xf32>
    %124 = arith.divf %122, %123 : vector<8x128xf32>
    %125 = vector.extract_strided_slice %118 {offsets = [0, 128], sizes = [8, 128], strides = [1, 1]} : vector<8x512xf32> to vector<8x128xf32>
    %126 = arith.negf %125 : vector<8x128xf32>
    %127 = math.exp %126 : vector<8x128xf32>
    %cst_63 = arith.constant 1.000000e+00 : f32
    %128 = vector.broadcast %cst_63 : f32 to vector<8x128xf32>
    %129 = arith.addf %128, %127 : vector<8x128xf32>
    %130 = arith.divf %128, %129 : vector<8x128xf32>
    %131 = vector.extract_strided_slice %118 {offsets = [0, 256], sizes = [8, 128], strides = [1, 1]} : vector<8x512xf32> to vector<8x128xf32>
    %132 = math.tanh %131 : vector<8x128xf32>
    %133 = vector.extract_strided_slice %118 {offsets = [0, 384], sizes = [8, 128], strides = [1, 1]} : vector<8x512xf32> to vector<8x128xf32>
    %134 = arith.negf %133 : vector<8x128xf32>
    %135 = math.exp %134 : vector<8x128xf32>
    %cst_64 = arith.constant 1.000000e+00 : f32
    %136 = vector.broadcast %cst_64 : f32 to vector<8x128xf32>
    %137 = arith.addf %136, %135 : vector<8x128xf32>
    %138 = arith.divf %136, %137 : vector<8x128xf32>
    %139 = arith.mulf %130, %114 : vector<8x128xf32>
    %140 = arith.mulf %124, %132 : vector<8x128xf32>
    %141 = arith.addf %139, %140 : vector<8x128xf32>
    %142 = math.tanh %141 : vector<8x128xf32>
    %143 = arith.mulf %138, %142 : vector<8x128xf32>
    %c0_65 = arith.constant 0 : index
    %c0_66 = arith.constant 0 : index
    %144 = vector.load %arg13[%c0_65, %c0_66] : memref<8x128xf32, #tpu.memory_space<vmem>>, vector<8x128xf32>
    tpu.vector_store %arg13[%c0_65, %c0_66], %141 {strides = array<i32>} : memref<8x128xf32, #tpu.memory_space<vmem>>, vector<8x128xf32>,
    %c0_67 = arith.constant 0 : index
    %c0_68 = arith.constant 0 : index
    %145 = vector.load %arg11[%c0_67, %c0_68] : memref<8x128xf32, #tpu.memory_space<vmem>>, vector<8x128xf32>
    tpu.vector_store %arg11[%c0_67, %c0_68], %143 {strides = array<i32>} : memref<8x128xf32, #tpu.memory_space<vmem>>, vector<8x128xf32>,
    %c24_69 = arith.constant 24 : index
    %c0_70 = arith.constant 0 : index
    %146 = vector.load %arg15[%c24_69, %c0_70] : memref<32x128xf32, #tpu.memory_space<vmem>>, vector<8x128xf32>
    tpu.vector_store %arg15[%c24_69, %c0_70], %143 {strides = array<i32>} : memref<32x128xf32, #tpu.memory_space<vmem>>, vector<8x128xf32>,
    %c0_71 = arith.constant 0 : index
    %c0_72 = arith.constant 0 : index
    %147 = vector.load %arg15[%c0_71, %c0_72] : memref<32x128xf32, #tpu.memory_space<vmem>>, vector<32x128xf32>
    %148 = arith.truncf %147 : vector<32x128xf32> to vector<32x128xbf16>
    %c0_73 = arith.constant 0 : index
    %c0_74 = arith.constant 0 : index
    %149 = vector.load %arg5[%c0_73, %c0_74] : memref<128x512xbf16, #tpu.memory_space<vmem>>, vector<128x512xbf16>
    %cst_75 = arith.constant dense<0.000000e+00> : vector<32x512xf32>
    %150 = tpu.matmul %148, %149, %cst_75 {dimension_numbers = #tpu.dot_dimension_numbers<[1], [0], [0], [1], [0, 0, 1, 1], [], []>} : vector<32x128xbf16>, vector<128x512xbf16>, vector<32x512xf32> -> vector<32x512xf32>
    %c0_76 = arith.constant 0 : index
    %c0_77 = arith.constant 0 : index
    %151 = vector.load %arg7[%c0_76, %c0_77] : memref<1x512xf32, #tpu.memory_space<vmem>>, vector<1x512xf32>
    %152 = vector.broadcast %151 : vector<1x512xf32> to vector<32x512xf32>
    %153 = arith.addf %150, %152 : vector<32x512xf32>
    %c0_78 = arith.constant 0 : index
    %c0_79 = arith.constant 0 : index
    %154 = vector.load %arg16[%c0_78, %c0_79] : memref<32x512xf32, #tpu.memory_space<vmem>>, vector<32x512xf32>
    tpu.vector_store %arg16[%c0_78, %c0_79], %153 {strides = array<i32>} : memref<32x512xf32, #tpu.memory_space<vmem>>, vector<32x512xf32>,
    %c0_80 = arith.constant 0 : index
    %c0_81 = arith.constant 0 : index
    %155 = vector.load %arg6[%c0_80, %c0_81] : memref<128x512xbf16, #tpu.memory_space<vmem>>, vector<128x512xbf16>
    %c0_82 = arith.constant 0 : index
    %c0_83 = arith.constant 0 : index
    %156 = vector.load %arg12[%c0_82, %c0_83] : memref<8x128xf32, #tpu.memory_space<vmem>>, vector<8x128xf32>
    %c0_84 = arith.constant 0 : index
    %c0_85 = arith.constant 0 : index
    %157 = vector.load %arg14[%c0_84, %c0_85] : memref<8x128xf32, #tpu.memory_space<vmem>>, vector<8x128xf32>
    %c0_86 = arith.constant 0 : index
    %c0_87 = arith.constant 0 : index
    %158 = vector.load %arg16[%c0_86, %c0_87] : memref<32x512xf32, #tpu.memory_space<vmem>>, vector<8x512xf32>
    %159 = arith.truncf %156 : vector<8x128xf32> to vector<8x128xbf16>
    %cst_88 = arith.constant dense<0.000000e+00> : vector<8x512xf32>
    %160 = tpu.matmul %159, %155, %cst_88 {dimension_numbers = #tpu.dot_dimension_numbers<[1], [0], [0], [1], [0, 0, 1, 1], [], []>} : vector<8x128xbf16>, vector<128x512xbf16>, vector<8x512xf32> -> vector<8x512xf32>
    %161 = arith.addf %158, %160 : vector<8x512xf32>
    %162 = vector.extract_strided_slice %161 {offsets = [0, 0], sizes = [8, 128], strides = [1, 1]} : vector<8x512xf32> to vector<8x128xf32>
    %163 = arith.negf %162 : vector<8x128xf32>
    %164 = math.exp %163 : vector<8x128xf32>
    %cst_89 = arith.constant 1.000000e+00 : f32
    %165 = vector.broadcast %cst_89 : f32 to vector<8x128xf32>
    %166 = arith.addf %165, %164 : vector<8x128xf32>
    %167 = arith.divf %165, %166 : vector<8x128xf32>
    %168 = vector.extract_strided_slice %161 {offsets = [0, 128], sizes = [8, 128], strides = [1, 1]} : vector<8x512xf32> to vector<8x128xf32>
    %169 = arith.negf %168 : vector<8x128xf32>
    %170 = math.exp %169 : vector<8x128xf32>
    %cst_90 = arith.constant 1.000000e+00 : f32
    %171 = vector.broadcast %cst_90 : f32 to vector<8x128xf32>
    %172 = arith.addf %171, %170 : vector<8x128xf32>
    %173 = arith.divf %171, %172 : vector<8x128xf32>
    %174 = vector.extract_strided_slice %161 {offsets = [0, 256], sizes = [8, 128], strides = [1, 1]} : vector<8x512xf32> to vector<8x128xf32>
    %175 = math.tanh %174 : vector<8x128xf32>
    %176 = vector.extract_strided_slice %161 {offsets = [0, 384], sizes = [8, 128], strides = [1, 1]} : vector<8x512xf32> to vector<8x128xf32>
    %177 = arith.negf %176 : vector<8x128xf32>
    %178 = math.exp %177 : vector<8x128xf32>
    %cst_91 = arith.constant 1.000000e+00 : f32
    %179 = vector.broadcast %cst_91 : f32 to vector<8x128xf32>
    %180 = arith.addf %179, %178 : vector<8x128xf32>
    %181 = arith.divf %179, %180 : vector<8x128xf32>
    %182 = arith.mulf %173, %157 : vector<8x128xf32>
    %183 = arith.mulf %167, %175 : vector<8x128xf32>
    %184 = arith.addf %182, %183 : vector<8x128xf32>
    %185 = math.tanh %184 : vector<8x128xf32>
    %186 = arith.mulf %181, %185 : vector<8x128xf32>
    %c0_92 = arith.constant 0 : index
    %c0_93 = arith.constant 0 : index
    %187 = vector.load %arg14[%c0_92, %c0_93] : memref<8x128xf32, #tpu.memory_space<vmem>>, vector<8x128xf32>
    tpu.vector_store %arg14[%c0_92, %c0_93], %184 {strides = array<i32>} : memref<8x128xf32, #tpu.memory_space<vmem>>, vector<8x128xf32>,
    %c0_94 = arith.constant 0 : index
    %c0_95 = arith.constant 0 : index
    %188 = vector.load %arg12[%c0_94, %c0_95] : memref<8x128xf32, #tpu.memory_space<vmem>>, vector<8x128xf32>
    tpu.vector_store %arg12[%c0_94, %c0_95], %186 {strides = array<i32>} : memref<8x128xf32, #tpu.memory_space<vmem>>, vector<8x128xf32>,
    %c0_96 = arith.constant 0 : index
    %c0_97 = arith.constant 0 : index
    %189 = vector.load %arg12[%c0_96, %c0_97] : memref<8x128xf32, #tpu.memory_space<vmem>>, vector<8x128xf32>
    %c0_98 = arith.constant 0 : index
    %c0_99 = arith.constant 0 : index
    %190 = vector.load %arg14[%c0_98, %c0_99] : memref<8x128xf32, #tpu.memory_space<vmem>>, vector<8x128xf32>
    %c8_100 = arith.constant 8 : index
    %c0_101 = arith.constant 0 : index
    %191 = vector.load %arg16[%c8_100, %c0_101] : memref<32x512xf32, #tpu.memory_space<vmem>>, vector<8x512xf32>
    %192 = arith.truncf %189 : vector<8x128xf32> to vector<8x128xbf16>
    %cst_102 = arith.constant dense<0.000000e+00> : vector<8x512xf32>
    %193 = tpu.matmul %192, %155, %cst_102 {dimension_numbers = #tpu.dot_dimension_numbers<[1], [0], [0], [1], [0, 0, 1, 1], [], []>} : vector<8x128xbf16>, vector<128x512xbf16>, vector<8x512xf32> -> vector<8x512xf32>
    %194 = arith.addf %191, %193 : vector<8x512xf32>
    %195 = vector.extract_strided_slice %194 {offsets = [0, 0], sizes = [8, 128], strides = [1, 1]} : vector<8x512xf32> to vector<8x128xf32>
    %196 = arith.negf %195 : vector<8x128xf32>
    %197 = math.exp %196 : vector<8x128xf32>
    %cst_103 = arith.constant 1.000000e+00 : f32
    %198 = vector.broadcast %cst_103 : f32 to vector<8x128xf32>
    %199 = arith.addf %198, %197 : vector<8x128xf32>
    %200 = arith.divf %198, %199 : vector<8x128xf32>
    %201 = vector.extract_strided_slice %194 {offsets = [0, 128], sizes = [8, 128], strides = [1, 1]} : vector<8x512xf32> to vector<8x128xf32>
    %202 = arith.negf %201 : vector<8x128xf32>
    %203 = math.exp %202 : vector<8x128xf32>
    %cst_104 = arith.constant 1.000000e+00 : f32
    %204 = vector.broadcast %cst_104 : f32 to vector<8x128xf32>
    %205 = arith.addf %204, %203 : vector<8x128xf32>
    %206 = arith.divf %204, %205 : vector<8x128xf32>
    %207 = vector.extract_strided_slice %194 {offsets = [0, 256], sizes = [8, 128], strides = [1, 1]} : vector<8x512xf32> to vector<8x128xf32>
    %208 = math.tanh %207 : vector<8x128xf32>
    %209 = vector.extract_strided_slice %194 {offsets = [0, 384], sizes = [8, 128], strides = [1, 1]} : vector<8x512xf32> to vector<8x128xf32>
    %210 = arith.negf %209 : vector<8x128xf32>
    %211 = math.exp %210 : vector<8x128xf32>
    %cst_105 = arith.constant 1.000000e+00 : f32
    %212 = vector.broadcast %cst_105 : f32 to vector<8x128xf32>
    %213 = arith.addf %212, %211 : vector<8x128xf32>
    %214 = arith.divf %212, %213 : vector<8x128xf32>
    %215 = arith.mulf %206, %190 : vector<8x128xf32>
    %216 = arith.mulf %200, %208 : vector<8x128xf32>
    %217 = arith.addf %215, %216 : vector<8x128xf32>
    %218 = math.tanh %217 : vector<8x128xf32>
    %219 = arith.mulf %214, %218 : vector<8x128xf32>
    %c0_106 = arith.constant 0 : index
    %c0_107 = arith.constant 0 : index
    %220 = vector.load %arg14[%c0_106, %c0_107] : memref<8x128xf32, #tpu.memory_space<vmem>>, vector<8x128xf32>
    tpu.vector_store %arg14[%c0_106, %c0_107], %217 {strides = array<i32>} : memref<8x128xf32, #tpu.memory_space<vmem>>, vector<8x128xf32>,
    %c0_108 = arith.constant 0 : index
    %c0_109 = arith.constant 0 : index
    %221 = vector.load %arg12[%c0_108, %c0_109] : memref<8x128xf32, #tpu.memory_space<vmem>>, vector<8x128xf32>
    tpu.vector_store %arg12[%c0_108, %c0_109], %219 {strides = array<i32>} : memref<8x128xf32, #tpu.memory_space<vmem>>, vector<8x128xf32>,
    %c0_110 = arith.constant 0 : index
    %c0_111 = arith.constant 0 : index
    %222 = vector.load %arg12[%c0_110, %c0_111] : memref<8x128xf32, #tpu.memory_space<vmem>>, vector<8x128xf32>
    %c0_112 = arith.constant 0 : index
    %c0_113 = arith.constant 0 : index
    %223 = vector.load %arg14[%c0_112, %c0_113] : memref<8x128xf32, #tpu.memory_space<vmem>>, vector<8x128xf32>
    %c16_114 = arith.constant 16 : index
    %c0_115 = arith.constant 0 : index
    %224 = vector.load %arg16[%c16_114, %c0_115] : memref<32x512xf32, #tpu.memory_space<vmem>>, vector<8x512xf32>
    %225 = arith.truncf %222 : vector<8x128xf32> to vector<8x128xbf16>
    %cst_116 = arith.constant dense<0.000000e+00> : vector<8x512xf32>
    %226 = tpu.matmul %225, %155, %cst_116 {dimension_numbers = #tpu.dot_dimension_numbers<[1], [0], [0], [1], [0, 0, 1, 1], [], []>} : vector<8x128xbf16>, vector<128x512xbf16>, vector<8x512xf32> -> vector<8x512xf32>
    %227 = arith.addf %224, %226 : vector<8x512xf32>
    %228 = vector.extract_strided_slice %227 {offsets = [0, 0], sizes = [8, 128], strides = [1, 1]} : vector<8x512xf32> to vector<8x128xf32>
    %229 = arith.negf %228 : vector<8x128xf32>
    %230 = math.exp %229 : vector<8x128xf32>
    %cst_117 = arith.constant 1.000000e+00 : f32
    %231 = vector.broadcast %cst_117 : f32 to vector<8x128xf32>
    %232 = arith.addf %231, %230 : vector<8x128xf32>
    %233 = arith.divf %231, %232 : vector<8x128xf32>
    %234 = vector.extract_strided_slice %227 {offsets = [0, 128], sizes = [8, 128], strides = [1, 1]} : vector<8x512xf32> to vector<8x128xf32>
    %235 = arith.negf %234 : vector<8x128xf32>
    %236 = math.exp %235 : vector<8x128xf32>
    %cst_118 = arith.constant 1.000000e+00 : f32
    %237 = vector.broadcast %cst_118 : f32 to vector<8x128xf32>
    %238 = arith.addf %237, %236 : vector<8x128xf32>
    %239 = arith.divf %237, %238 : vector<8x128xf32>
    %240 = vector.extract_strided_slice %227 {offsets = [0, 256], sizes = [8, 128], strides = [1, 1]} : vector<8x512xf32> to vector<8x128xf32>
    %241 = math.tanh %240 : vector<8x128xf32>
    %242 = vector.extract_strided_slice %227 {offsets = [0, 384], sizes = [8, 128], strides = [1, 1]} : vector<8x512xf32> to vector<8x128xf32>
    %243 = arith.negf %242 : vector<8x128xf32>
    %244 = math.exp %243 : vector<8x128xf32>
    %cst_119 = arith.constant 1.000000e+00 : f32
    %245 = vector.broadcast %cst_119 : f32 to vector<8x128xf32>
    %246 = arith.addf %245, %244 : vector<8x128xf32>
    %247 = arith.divf %245, %246 : vector<8x128xf32>
    %248 = arith.mulf %239, %223 : vector<8x128xf32>
    %249 = arith.mulf %233, %241 : vector<8x128xf32>
    %250 = arith.addf %248, %249 : vector<8x128xf32>
    %251 = math.tanh %250 : vector<8x128xf32>
    %252 = arith.mulf %247, %251 : vector<8x128xf32>
    %c0_120 = arith.constant 0 : index
    %c0_121 = arith.constant 0 : index
    %253 = vector.load %arg14[%c0_120, %c0_121] : memref<8x128xf32, #tpu.memory_space<vmem>>, vector<8x128xf32>
    tpu.vector_store %arg14[%c0_120, %c0_121], %250 {strides = array<i32>} : memref<8x128xf32, #tpu.memory_space<vmem>>, vector<8x128xf32>,
    %c0_122 = arith.constant 0 : index
    %c0_123 = arith.constant 0 : index
    %254 = vector.load %arg12[%c0_122, %c0_123] : memref<8x128xf32, #tpu.memory_space<vmem>>, vector<8x128xf32>
    tpu.vector_store %arg12[%c0_122, %c0_123], %252 {strides = array<i32>} : memref<8x128xf32, #tpu.memory_space<vmem>>, vector<8x128xf32>,
    %c0_124 = arith.constant 0 : index
    %c0_125 = arith.constant 0 : index
    %255 = vector.load %arg12[%c0_124, %c0_125] : memref<8x128xf32, #tpu.memory_space<vmem>>, vector<8x128xf32>
    %c0_126 = arith.constant 0 : index
    %c0_127 = arith.constant 0 : index
    %256 = vector.load %arg14[%c0_126, %c0_127] : memref<8x128xf32, #tpu.memory_space<vmem>>, vector<8x128xf32>
    %c24_128 = arith.constant 24 : index
    %c0_129 = arith.constant 0 : index
    %257 = vector.load %arg16[%c24_128, %c0_129] : memref<32x512xf32, #tpu.memory_space<vmem>>, vector<8x512xf32>
    %258 = arith.truncf %255 : vector<8x128xf32> to vector<8x128xbf16>
    %cst_130 = arith.constant dense<0.000000e+00> : vector<8x512xf32>
    %259 = tpu.matmul %258, %155, %cst_130 {dimension_numbers = #tpu.dot_dimension_numbers<[1], [0], [0], [1], [0, 0, 1, 1], [], []>} : vector<8x128xbf16>, vector<128x512xbf16>, vector<8x512xf32> -> vector<8x512xf32>
    %260 = arith.addf %257, %259 : vector<8x512xf32>
    %261 = vector.extract_strided_slice %260 {offsets = [0, 0], sizes = [8, 128], strides = [1, 1]} : vector<8x512xf32> to vector<8x128xf32>
    %262 = arith.negf %261 : vector<8x128xf32>
    %263 = math.exp %262 : vector<8x128xf32>
    %cst_131 = arith.constant 1.000000e+00 : f32
    %264 = vector.broadcast %cst_131 : f32 to vector<8x128xf32>
    %265 = arith.addf %264, %263 : vector<8x128xf32>
    %266 = arith.divf %264, %265 : vector<8x128xf32>
    %267 = vector.extract_strided_slice %260 {offsets = [0, 128], sizes = [8, 128], strides = [1, 1]} : vector<8x512xf32> to vector<8x128xf32>
    %268 = arith.negf %267 : vector<8x128xf32>
    %269 = math.exp %268 : vector<8x128xf32>
    %cst_132 = arith.constant 1.000000e+00 : f32
    %270 = vector.broadcast %cst_132 : f32 to vector<8x128xf32>
    %271 = arith.addf %270, %269 : vector<8x128xf32>
    %272 = arith.divf %270, %271 : vector<8x128xf32>
    %273 = vector.extract_strided_slice %260 {offsets = [0, 256], sizes = [8, 128], strides = [1, 1]} : vector<8x512xf32> to vector<8x128xf32>
    %274 = math.tanh %273 : vector<8x128xf32>
    %275 = vector.extract_strided_slice %260 {offsets = [0, 384], sizes = [8, 128], strides = [1, 1]} : vector<8x512xf32> to vector<8x128xf32>
    %276 = arith.negf %275 : vector<8x128xf32>
    %277 = math.exp %276 : vector<8x128xf32>
    %cst_133 = arith.constant 1.000000e+00 : f32
    %278 = vector.broadcast %cst_133 : f32 to vector<8x128xf32>
    %279 = arith.addf %278, %277 : vector<8x128xf32>
    %280 = arith.divf %278, %279 : vector<8x128xf32>
    %281 = arith.mulf %272, %256 : vector<8x128xf32>
    %282 = arith.mulf %266, %274 : vector<8x128xf32>
    %283 = arith.addf %281, %282 : vector<8x128xf32>
    %284 = math.tanh %283 : vector<8x128xf32>
    %285 = arith.mulf %280, %284 : vector<8x128xf32>
    %c0_134 = arith.constant 0 : index
    %c0_135 = arith.constant 0 : index
    %286 = vector.load %arg14[%c0_134, %c0_135] : memref<8x128xf32, #tpu.memory_space<vmem>>, vector<8x128xf32>
    tpu.vector_store %arg14[%c0_134, %c0_135], %283 {strides = array<i32>} : memref<8x128xf32, #tpu.memory_space<vmem>>, vector<8x128xf32>,
    %c0_136 = arith.constant 0 : index
    %c0_137 = arith.constant 0 : index
    %287 = vector.load %arg12[%c0_136, %c0_137] : memref<8x128xf32, #tpu.memory_space<vmem>>, vector<8x128xf32>
    tpu.vector_store %arg12[%c0_136, %c0_137], %285 {strides = array<i32>} : memref<8x128xf32, #tpu.memory_space<vmem>>, vector<8x128xf32>,
    %c1_i32 = arith.constant 1 : i32
    %288 = arith.cmpi eq, %arg0, %c1_i32 : i32
    %289 = arith.extui %288 : i1 to i32
    %c0_i32_138 = arith.constant 0 : i32
    %290 = arith.cmpi ne, %289, %c0_i32_138 : i32
    scf.if %290 {
      %c0_139 = arith.constant 0 : index
      %c0_140 = arith.constant 0 : index
      %291 = vector.load %arg12[%c0_139, %c0_140] : memref<8x128xf32, #tpu.memory_space<vmem>>, vector<8x128xf32>
      %292 = arith.truncf %291 : vector<8x128xf32> to vector<8x128xbf16>
      %c0_141 = arith.constant 0 : index
      %c0_142 = arith.constant 0 : index
      %293 = vector.load %arg8[%c0_141, %c0_142] : memref<128x128xbf16, #tpu.memory_space<vmem>>, vector<128x128xbf16>
      %cst_143 = arith.constant dense<0.000000e+00> : vector<8x128xf32>
      %294 = tpu.matmul %292, %293, %cst_143 {dimension_numbers = #tpu.dot_dimension_numbers<[1], [0], [0], [1], [0, 0, 1, 1], [], []>} : vector<8x128xbf16>, vector<128x128xbf16>, vector<8x128xf32> -> vector<8x128xf32>
      %c0_144 = arith.constant 0 : index
      %c0_145 = arith.constant 0 : index
      %295 = vector.load %arg9[%c0_144, %c0_145] : memref<1x128xf32, #tpu.memory_space<vmem>>, vector<1x128xf32>
      %296 = vector.broadcast %295 : vector<1x128xf32> to vector<8x128xf32>
      %297 = arith.addf %294, %296 : vector<8x128xf32>
      %c0_146 = arith.constant 0 : index
      %c0_147 = arith.constant 0 : index
      %298 = vector.load %arg10[%c0_146, %c0_147] : memref<8x128xf32, #tpu.memory_space<vmem>>, vector<8x128xf32>
      tpu.vector_store %arg10[%c0_146, %c0_147], %297 {strides = array<i32>} : memref<8x128xf32, #tpu.memory_space<vmem>>, vector<8x128xf32>,
    } else {
    }
    return
  }
  func.func @transform_0(%arg0: i32) -> (i32, i32) {
    %c0_i32 = arith.constant 0 : i32
    %c0_i32_0 = arith.constant 0 : i32
    return %arg0, %c0_i32 : i32, i32
  }
  func.func @transform_1(%arg0: i32) -> (i32, i32) {
    %c0_i32 = arith.constant 0 : i32
    %c0_i32_0 = arith.constant 0 : i32
    %c0_i32_1 = arith.constant 0 : i32
    return %c0_i32, %c0_i32_0 : i32, i32
  }
  func.func @transform_2(%arg0: i32) -> (i32, i32) {
    %c0_i32 = arith.constant 0 : i32
    %c0_i32_0 = arith.constant 0 : i32
    %c0_i32_1 = arith.constant 0 : i32
    return %c0_i32, %c0_i32_0 : i32, i32
  }
  func.func @transform_3(%arg0: i32) -> (i32, i32) {
    %c0_i32 = arith.constant 0 : i32
    %c0_i32_0 = arith.constant 0 : i32
    %c0_i32_1 = arith.constant 0 : i32
    return %c0_i32, %c0_i32_0 : i32, i32
  }
  func.func @transform_4(%arg0: i32) -> (i32, i32) {
    %c0_i32 = arith.constant 0 : i32
    %c0_i32_0 = arith.constant 0 : i32
    %c0_i32_1 = arith.constant 0 : i32
    return %c0_i32, %c0_i32_0 : i32, i32
  }
  func.func @transform_5(%arg0: i32) -> (i32, i32) {
    %c0_i32 = arith.constant 0 : i32
    %c0_i32_0 = arith.constant 0 : i32
    %c0_i32_1 = arith.constant 0 : i32
    return %c0_i32, %c0_i32_0 : i32, i32
  }
  func.func @transform_6(%arg0: i32) -> (i32, i32) {
    %c0_i32 = arith.constant 0 : i32
    %c0_i32_0 = arith.constant 0 : i32
    %c0_i32_1 = arith.constant 0 : i32
    return %c0_i32, %c0_i32_0 : i32, i32
  }
  func.func @transform_7(%arg0: i32) -> (i32, i32) {
    %c0_i32 = arith.constant 0 : i32
    %c0_i32_0 = arith.constant 0 : i32
    %c0_i32_1 = arith.constant 0 : i32
    return %c0_i32, %c0_i32_0 : i32, i32
  }
  func.func @transform_8(%arg0: i32) -> (i32, i32) {
    %c0_i32 = arith.constant 0 : i32
    %c0_i32_0 = arith.constant 0 : i32
    %c0_i32_1 = arith.constant 0 : i32
    return %c0_i32, %c0_i32_0 : i32, i32
  }
  func.func @transform_9(%arg0: i32) -> (i32, i32) {
    %c0_i32 = arith.constant 0 : i32
    %c0_i32_0 = arith.constant 0 : i32
    %c0_i32_1 = arith.constant 0 : i32
    return %c0_i32, %c0_i32_0 : i32, i32
  }
}

</mosaic_0001>

<llo_original>
// kernel: tpu_custom_call.1
$region0: #{tpu_custom_call.1}
  #allocation0 [shape = 'u32[]', space=smem, size = 0x4, offset = 0x4, fixed_abs, tag = 'smem constant byte address 0x4 - core index']
  #allocation1 [shape = 'u32[144,128]{1,0:T(1,128)}', space=vmem, size = 0x12000, scoped, tag = 'internal scratch']
  #allocation2 [shape = 'f32[8,128]{1,0:T(8,128)}', space=vmem, size = 0x1000, scoped, tag = 'scratch operand']
  #allocation3 [shape = 'f32[8,128]{1,0:T(8,128)}', space=vmem, size = 0x1000, scoped, tag = 'scratch operand']
  #allocation4 [shape = 'f32[8,128]{1,0:T(8,128)}', space=vmem, size = 0x1000, scoped, tag = 'scratch operand']
  #allocation5 [shape = 'f32[8,128]{1,0:T(8,128)}', space=vmem, size = 0x1000, scoped, tag = 'scratch operand']
  #allocation6 [shape = 'f32[32,128]{1,0:T(8,128)}', space=vmem, size = 0x4000, scoped, tag = 'scratch operand']
  #allocation7 [shape = 'f32[32,512]{1,0:T(8,128)}', space=vmem, size = 0x10000, scoped, tag = 'scratch operand']
  %s0 = inlined_call_operand.vmem [shape: bf16[64,16], index: 0, kind: input, shape index: {}]
  %s1 = inlined_call_operand.hbm [shape: bf16[16,512], index: 1, kind: input, shape index: {}]
  %s2 = inlined_call_operand.hbm [shape: bf16[128,512], index: 2, kind: input, shape index: {}]
  %s3 = inlined_call_operand.hbm [shape: f32[1,512], index: 3, kind: input, shape index: {}]
  %s4 = inlined_call_operand.hbm [shape: bf16[128,512], index: 4, kind: input, shape index: {}]
  %s5 = inlined_call_operand.hbm [shape: bf16[128,512], index: 5, kind: input, shape index: {}]
  %s6 = inlined_call_operand.hbm [shape: f32[1,512], index: 6, kind: input, shape index: {}]
  %s7 = inlined_call_operand.vmem [shape: bf16[128,128], index: 7, kind: input, shape index: {}]
  %s8 = inlined_call_operand.vmem [shape: f32[1,128], index: 8, kind: input, shape index: {}]
  %s9 = inlined_call_operand.hbm [shape: f32[8,128], index: 9, kind: output, shape index: {}]
  %s10 = sld [smem:[#allocation0]]
  $region101: #{tpu_custom_call.1} parent=0
    _
  %s12 = ssub.s32 1, %s10
  %s13 = scalar_select 0, %s12, %s10
  $region1: #{tpu_custom_call.1} parent=0
    #allocation8 [shape = 'u8[16384]{0}', space=vmem, size = 0x4000, scoped, tag = 'input window, operand 1, single buffered']
    #allocation9 [shape = 's32[2]{0}', space=sflag, size = 0x8, scoped, tag = 'scoped memory for tpu_custom_call.1']
    #allocation10 [shape = 's32[2]{0}', space=sflag, size = 0x8, scoped, tag = 'scoped memory for tpu_custom_call.1']
    #allocation11 [shape = 'u8[131072]{0}', space=vmem, size = 0x20000, scoped, tag = 'input window, operand 2, single buffered']
    #allocation12 [shape = 's32[1]{0}', space=sflag, size = 0x4, scoped, tag = 'scoped memory for tpu_custom_call.1']
    #allocation13 [shape = 'u8[2048]{0}', space=vmem, size = 0x800, scoped, tag = 'input window, operand 3, single buffered']
    #allocation14 [shape = 'u8[131072]{0}', space=vmem, size = 0x20000, scoped, tag = 'input window, operand 4, single buffered']
    #allocation15 [shape = 's32[1]{0}', space=sflag, size = 0x4, scoped, tag = 'scoped memory for tpu_custom_call.1']
    #allocation16 [shape = 'u8[131072]{0}', space=vmem, size = 0x20000, scoped, tag = 'input window, operand 5, single buffered']
    #allocation17 [shape = 'u8[2048]{0}', space=vmem, size = 0x800, scoped, tag = 'input window, operand 6, single buffered']
    #allocation18 [shape = 's32[1]{0}', space=sflag, size = 0x4, scoped, tag = 'scoped memory for tpu_custom_call.1']
    #allocation19 [shape = 'u8[4096]{0}', space=vmem, size = 0x1000, scoped, tag = 'output window, operand 0, single buffered']
    %14 = vsyncpa [#allocation9], 0
    %15 = vsyncpa [#allocation12], 0
    %16 = vsyncpa [#allocation15], 0
    %17 = vsyncpa [#allocation18], 0
    %18 = vsyncpa [#allocation10], 0
    loop: start=0, step=1, limit=4
    $region2: #{tpu_custom_call.1} parent=1 // loop_pre_header
      _
    $region3: #{tpu_custom_call.1} parent=1 // loop_header
      %s20 = sphi 0, %s24
      %p21 = scmp.ge.s32.totalorder %s20, 4
      %s30 = sphi 0, %s32
      %s33 = sphi 0, %s30
      %s34 = sphi 0, %s33
      %s50 = sphi 0, %s34
      %s54 = sphi 0, %s54
      %s56 = sphi 0, %s54
      %s57 = sphi 0, %s56
      %s71 = sphi 0, %s57
      %s75 = sphi 0, %s75
      %s77 = sphi 0, %s75
      %s78 = sphi 0, %s77
      %s92 = sphi 0, %s78
      %s96 = sphi 0, %s96
      %s98 = sphi 0, %s96
      %s99 = sphi 0, %s98
      %s113 = sphi 0, %s99
      %s117 = sphi 0, %s117
      %s119 = sphi 0, %s117
      %s120 = sphi 0, %s119
      %s134 = sphi 0, %s120
      %s138 = sphi 0, %s138
      %s140 = sphi 0, %s138
      %s141 = sphi 0, %s140
      %s155 = sphi 0, %s141
      %s159 = sphi 0, %s159
      %s161 = sphi 0, %s159
      %s162 = sphi 0, %s161
      %s176 = sphi 0, %s162
      %s180 = sphi 0, %s180
      %s182 = sphi 0, %s180
      %s183 = sphi 0, %s182
      %s197 = sphi 0, %s183
      %s201 = sphi 0, %s201
      %s203 = sphi 0, %s201
      %s204 = sphi 0, %s203
      %s218 = sphi 0, %s204
      %s222 = sphi 0, %s222
      %s224 = sphi 0, %s222
      %s225 = sphi 0, %s224
      %s239 = sphi 0, %s225
    $region4: #{tpu_custom_call.1} parent=1 // loop_header_branch
      %23 = sbr.rel (%p21) target = $region8
    $region5: #{tpu_custom_call.1} parent=1 // loop_body
      %s25 = ssub.s32 %s20, 1
      %s26 = ssub.s32 %s20, 2
      %s27 = sadd.s32 %s20, 1
      %s28 = ssub.s32 %s20, %s27
      %p29 = scmp.eq.s32.totalorder %s28, 0
      %s31 = sadd.s32 %s30, 1
      %s32 = scalar_select %p29, %s30, %s31
      %p35 = pneg %p29
      %p36 = scmp.eq.s32.totalorder %s20, 1
      %p37 = por %p35, %p36
      %p38 = scmp.ne.s32.totalorder %s30, %s33
      %p39 = scmp.eq.s32.totalorder %s20, 0
      %p40 = por %p38, %p39
      %p41 = scmp.ne.s32.totalorder %s30, %s33
      %p42 = scmp.eq.s32.totalorder %s25, 1
      %p43 = por %p41, %p42
      %p44 = scmp.ne.s32.totalorder %s33, %s34
      %p45 = scmp.eq.s32.totalorder %s25, 0
      %p46 = por %p44, %p45
      %p47 = scmp.ne.s32.totalorder %s33, %s34
      %p48 = scmp.eq.s32.totalorder %s26, 1
      %p49 = por %p47, %p48
      %p51 = scmp.ne.s32.totalorder %s34, %s50
      %p52 = scmp.eq.s32.totalorder %s26, 0
      %p53 = por %p51, %p52
      %s55 = sadd.s32 %s54, 1
      %p58 = scmp.eq.s32.totalorder %s20, 1
      %p59 = scmp.ne.s32.totalorder %s54, %s56
      %p60 = scmp.eq.s32.totalorder %s20, 0
      %p61 = por %p59, %p60
      %p62 = scmp.ne.s32.totalorder %s54, %s56
      %p63 = scmp.eq.s32.totalorder %s25, 1
      %p64 = por %p62, %p63
      %p65 = scmp.ne.s32.totalorder %s56, %s57
      %p66 = scmp.eq.s32.totalorder %s25, 0
      %p67 = por %p65, %p66
      %p68 = scmp.ne.s32.totalorder %s56, %s57
      %p69 = scmp.eq.s32.totalorder %s26, 1
      %p70 = por %p68, %p69
      %p72 = scmp.ne.s32.totalorder %s57, %s71
      %p73 = scmp.eq.s32.totalorder %s26, 0
      %p74 = por %p72, %p73
      %s76 = sadd.s32 %s75, 1
      %p79 = scmp.eq.s32.totalorder %s20, 1
      %p80 = scmp.ne.s32.totalorder %s75, %s77
      %p81 = scmp.eq.s32.totalorder %s20, 0
      %p82 = por %p80, %p81
      %p83 = scmp.ne.s32.totalorder %s75, %s77
      %p84 = scmp.eq.s32.totalorder %s25, 1
      %p85 = por %p83, %p84
      %p86 = scmp.ne.s32.totalorder %s77, %s78
      %p87 = scmp.eq.s32.totalorder %s25, 0
      %p88 = por %p86, %p87
      %p89 = scmp.ne.s32.totalorder %s77, %s78
      %p90 = scmp.eq.s32.totalorder %s26, 1
      %p91 = por %p89, %p90
      %p93 = scmp.ne.s32.totalorder %s78, %s92
      %p94 = scmp.eq.s32.totalorder %s26, 0
      %p95 = por %p93, %p94
      %s97 = sadd.s32 %s96, 1
      %p100 = scmp.eq.s32.totalorder %s20, 1
      %p101 = scmp.ne.s32.totalorder %s96, %s98
      %p102 = scmp.eq.s32.totalorder %s20, 0
      %p103 = por %p101, %p102
      %p104 = scmp.ne.s32.totalorder %s96, %s98
      %p105 = scmp.eq.s32.totalorder %s25, 1
      %p106 = por %p104, %p105
      %p107 = scmp.ne.s32.totalorder %s98, %s99
      %p108 = scmp.eq.s32.totalorder %s25, 0
      %p109 = por %p107, %p108
      %p110 = scmp.ne.s32.totalorder %s98, %s99
      %p111 = scmp.eq.s32.totalorder %s26, 1
      %p112 = por %p110, %p111
      %p114 = scmp.ne.s32.totalorder %s99, %s113
      %p115 = scmp.eq.s32.totalorder %s26, 0
      %p116 = por %p114, %p115
      %s118 = sadd.s32 %s117, 1
      %p121 = scmp.eq.s32.totalorder %s20, 1
      %p122 = scmp.ne.s32.totalorder %s117, %s119
      %p123 = scmp.eq.s32.totalorder %s20, 0
      %p124 = por %p122, %p123
      %p125 = scmp.ne.s32.totalorder %s117, %s119
      %p126 = scmp.eq.s32.totalorder %s25, 1
      %p127 = por %p125, %p126
      %p128 = scmp.ne.s32.totalorder %s119, %s120
      %p129 = scmp.eq.s32.totalorder %s25, 0
      %p130 = por %p128, %p129
      %p131 = scmp.ne.s32.totalorder %s119, %s120
      %p132 = scmp.eq.s32.totalorder %s26, 1
      %p133 = por %p131, %p132
      %p135 = scmp.ne.s32.totalorder %s120, %s134
      %p136 = scmp.eq.s32.totalorder %s26, 0
      %p137 = por %p135, %p136
      %s139 = sadd.s32 %s138, 1
      %p142 = scmp.eq.s32.totalorder %s20, 1
      %p143 = scmp.ne.s32.totalorder %s138, %s140
      %p144 = scmp.eq.s32.totalorder %s20, 0
      %p145 = por %p143, %p144
      %p146 = scmp.ne.s32.totalorder %s138, %s140
      %p147 = scmp.eq.s32.totalorder %s25, 1
      %p148 = por %p146, %p147
      %p149 = scmp.ne.s32.totalorder %s140, %s141
      %p150 = scmp.eq.s32.totalorder %s25, 0
      %p151 = por %p149, %p150
      %p152 = scmp.ne.s32.totalorder %s140, %s141
      %p153 = scmp.eq.s32.totalorder %s26, 1
      %p154 = por %p152, %p153
      %p156 = scmp.ne.s32.totalorder %s141, %s155
      %p157 = scmp.eq.s32.totalorder %s26, 0
      %p158 = por %p156, %p157
      %s160 = sadd.s32 %s159, 1
      %p163 = scmp.eq.s32.totalorder %s20, 1
      %p164 = scmp.ne.s32.totalorder %s159, %s161
      %p165 = scmp.eq.s32.totalorder %s20, 0
      %p166 = por %p164, %p165
      %p167 = scmp.ne.s32.totalorder %s159, %s161
      %p168 = scmp.eq.s32.totalorder %s25, 1
      %p169 = por %p167, %p168
      %p170 = scmp.ne.s32.totalorder %s161, %s162
      %p171 = scmp.eq.s32.totalorder %s25, 0
      %p172 = por %p170, %p171
      %p173 = scmp.ne.s32.totalorder %s161, %s162
      %p174 = scmp.eq.s32.totalorder %s26, 1
      %p175 = por %p173, %p174
      %p177 = scmp.ne.s32.totalorder %s162, %s176
      %p178 = scmp.eq.s32.totalorder %s26, 0
      %p179 = por %p177, %p178
      %s181 = sadd.s32 %s180, 1
      %p184 = scmp.eq.s32.totalorder %s20, 1
      %p185 = scmp.ne.s32.totalorder %s180, %s182
      %p186 = scmp.eq.s32.totalorder %s20, 0
      %p187 = por %p185, %p186
      %p188 = scmp.ne.s32.totalorder %s180, %s182
      %p189 = scmp.eq.s32.totalorder %s25, 1
      %p190 = por %p188, %p189
      %p191 = scmp.ne.s32.totalorder %s182, %s183
      %p192 = scmp.eq.s32.totalorder %s25, 0
      %p193 = por %p191, %p192
      %p194 = scmp.ne.s32.totalorder %s182, %s183
      %p195 = scmp.eq.s32.totalorder %s26, 1
      %p196 = por %p194, %p195
      %p198 = scmp.ne.s32.totalorder %s183, %s197
      %p199 = scmp.eq.s32.totalorder %s26, 0
      %p200 = por %p198, %p199
      %s202 = sadd.s32 %s201, 1
      %p205 = scmp.eq.s32.totalorder %s20, 1
      %p206 = scmp.ne.s32.totalorder %s201, %s203
      %p207 = scmp.eq.s32.totalorder %s20, 0
      %p208 = por %p206, %p207
      %p209 = scmp.ne.s32.totalorder %s201, %s203
      %p210 = scmp.eq.s32.totalorder %s25, 1
      %p211 = por %p209, %p210
      %p212 = scmp.ne.s32.totalorder %s203, %s204
      %p213 = scmp.eq.s32.totalorder %s25, 0
      %p214 = por %p212, %p213
      %p215 = scmp.ne.s32.totalorder %s203, %s204
      %p216 = scmp.eq.s32.totalorder %s26, 1
      %p217 = por %p215, %p216
      %p219 = scmp.ne.s32.totalorder %s204, %s218
      %p220 = scmp.eq.s32.totalorder %s26, 0
      %p221 = por %p219, %p220
      %s223 = sadd.s32 %s222, 1
      %p226 = scmp.eq.s32.totalorder %s20, 1
      %p227 = scmp.ne.s32.totalorder %s222, %s224
      %p228 = scmp.eq.s32.totalorder %s20, 0
      %p229 = por %p227, %p228
      %p230 = scmp.ne.s32.totalorder %s222, %s224
      %p231 = scmp.eq.s32.totalorder %s25, 1
      %p232 = por %p230, %p231
      %p233 = scmp.ne.s32.totalorder %s224, %s225
      %p234 = scmp.eq.s32.totalorder %s25, 0
      %p235 = por %p233, %p234
      %p236 = scmp.ne.s32.totalorder %s224, %s225
      %p237 = scmp.eq.s32.totalorder %s26, 1
      %p238 = por %p236, %p237
      %p240 = scmp.ne.s32.totalorder %s225, %s239
      %p241 = scmp.eq.s32.totalorder %s26, 0
      %p242 = por %p240, %p241
      %p243 = scmp.le.s32.totalorder 1, %s20
      %p244 = scmp.lt.s32.totalorder %s20, 3
      %p245 = pnand %p243, %p244
      %p246 = pneg %p245
      // Predicated region
      $region9: #{tpu_custom_call.1} parent=5 // pred_check
        _
      $region10: #{tpu_custom_call.1} parent=5 // pred_check_branch
        %248 = sbr.rel (%p245) target = $region12
      $region11: #{tpu_custom_call.1} parent=5 // pred_region
        %s249 = ssub.s32 %s20, 1
        // Predicated region
        $region13: #{tpu_custom_call.1} parent=11 // pred_check
          %p250 = pneg %p67
        $region14: #{tpu_custom_call.1} parent=11 // pred_check_branch
          %252 = sbr.rel (%p250) target = $region16
        $region15: #{tpu_custom_call.1} parent=11 // pred_region
          %s254 = ssub.s32 512, 512
          %255 = vsyncadd [#allocation9], %s254
          %s256 = sshll.u32 [#allocation8], 4
          %s257 = int_to_ptr.vmem [resolvable:$true] %s256
          %262 = dma.hbm_to_vmem [thread:$0]  %s1, 512, %s257, [#allocation9], 256, 256, 16
        $region16: #{tpu_custom_call.1} parent=11 // pred_fallthru
          _
        // Predicated region
        $region17: #{tpu_custom_call.1} parent=11 // pred_check
          %p263 = pneg %p88
        $region18: #{tpu_custom_call.1} parent=11 // pred_check_branch
          %265 = sbr.rel (%p263) target = $region20
        $region19: #{tpu_custom_call.1} parent=11 // pred_region
          %s267 = ssub.s32 4096, 4096
          %268 = vsyncadd [#allocation12], %s267
          %s269 = sshll.u32 [#allocation11], 4
          %s270 = int_to_ptr.vmem [resolvable:$true] %s269
          %275 = dma.hbm_to_vmem [thread:$0]  %s2, 4096, %s270, [#allocation12], 256, 256, 16
        $region20: #{tpu_custom_call.1} parent=11 // pred_fallthru
          _
        // Predicated region
        $region21: #{tpu_custom_call.1} parent=11 // pred_check
          %p276 = pneg %p109
        $region22: #{tpu_custom_call.1} parent=11 // pred_check_branch
          %278 = sbr.rel (%p276) target = $region24
        $region23: #{tpu_custom_call.1} parent=11 // pred_region
          %s280 = ssub.s32 64, 64
          %281 = vsyncadd [#allocation12], %s280
          %s283 = sshll.u32 [#allocation13], 4
          %s284 = int_to_ptr.vmem [resolvable:$true] %s283
          %286 = dma.hbm_to_vmem [thread:$0]  %s3, 64, %s284, [#allocation12]
        $region24: #{tpu_custom_call.1} parent=11 // pred_fallthru
          _
        // Predicated region
        $region25: #{tpu_custom_call.1} parent=11 // pred_check
          %p287 = pneg %p130
        $region26: #{tpu_custom_call.1} parent=11 // pred_check_branch
          %289 = sbr.rel (%p287) target = $region28
        $region27: #{tpu_custom_call.1} parent=11 // pred_region
          %s291 = ssub.s32 4096, 4096
          %292 = vsyncadd [#allocation15], %s291
          %s293 = sshll.u32 [#allocation14], 4
          %s294 = int_to_ptr.vmem [resolvable:$true] %s293
          %299 = dma.hbm_to_vmem [thread:$0]  %s4, 4096, %s294, [#allocation15], 256, 256, 16
        $region28: #{tpu_custom_call.1} parent=11 // pred_fallthru
          _
        // Predicated region
        $region29: #{tpu_custom_call.1} parent=11 // pred_check
          %p300 = pneg %p151
        $region30: #{tpu_custom_call.1} parent=11 // pred_check_branch
          %302 = sbr.rel (%p300) target = $region32
        $region31: #{tpu_custom_call.1} parent=11 // pred_region
          %s304 = ssub.s32 4096, 4096
          %305 = vsyncadd [#allocation15], %s304
          %s306 = sshll.u32 [#allocation16], 4
          %s307 = int_to_ptr.vmem [resolvable:$true] %s306
          %312 = dma.hbm_to_vmem [thread:$0]  %s5, 4096, %s307, [#allocation15], 256, 256, 16
        $region32: #{tpu_custom_call.1} parent=11 // pred_fallthru
          _
        // Predicated region
        $region33: #{tpu_custom_call.1} parent=11 // pred_check
          %p313 = pneg %p172
        $region34: #{tpu_custom_call.1} parent=11 // pred_check_branch
          %315 = sbr.rel (%p313) target = $region36
        $region35: #{tpu_custom_call.1} parent=11 // pred_region
          %s317 = ssub.s32 64, 64
          %318 = vsyncadd [#allocation18], %s317
          %s320 = sshll.u32 [#allocation17], 4
          %s321 = int_to_ptr.vmem [resolvable:$true] %s320
          %323 = dma.hbm_to_vmem [thread:$0]  %s6, 64, %s321, [#allocation18]
        $region36: #{tpu_custom_call.1} parent=11 // pred_fallthru
          _
        // Predicated region
        $region37: #{tpu_custom_call.1} parent=11 // pred_check
          %p324 = pneg %p193
        $region38: #{tpu_custom_call.1} parent=11 // pred_check_branch
          %326 = sbr.rel (%p324) target = $region40
        $region39: #{tpu_custom_call.1} parent=11 // pred_region
          _
        $region40: #{tpu_custom_call.1} parent=11 // pred_fallthru
          _
        // Predicated region
        $region41: #{tpu_custom_call.1} parent=11 // pred_check
          %p327 = pneg %p214
        $region42: #{tpu_custom_call.1} parent=11 // pred_check_branch
          %329 = sbr.rel (%p327) target = $region44
        $region43: #{tpu_custom_call.1} parent=11 // pred_region
          _
        $region44: #{tpu_custom_call.1} parent=11 // pred_fallthru
          _
      $region12: #{tpu_custom_call.1} parent=5 // pred_fallthru
        _
      %p330 = scmp.lt.s32.totalorder %s20, 2
      // Predicated region
      $region45: #{tpu_custom_call.1} parent=5 // pred_check
        %p331 = pneg %p330
      $region46: #{tpu_custom_call.1} parent=5 // pred_check_branch
        %333 = sbr.rel (%p331) target = $region48
      $region47: #{tpu_custom_call.1} parent=5 // pred_region
        // Predicated region
        $region49: #{tpu_custom_call.1} parent=47 // pred_check
          %p334 = pneg %p40
        $region50: #{tpu_custom_call.1} parent=47 // pred_check_branch
          %336 = sbr.rel (%p334) target = $region52
        $region51: #{tpu_custom_call.1} parent=47 // pred_region
          %s337 = smul.u32 4, %s20
          %p338 = scmp.lt.s32.totalorder %s337, 7
          %s339 = scalar_select %p338, %s337, 7
          %s340 = smul.addr %s339, 4
          %s341 = scalar_lea.vmem %s0, %s340
          %s342 = smul.u32 4, %s20
        $region52: #{tpu_custom_call.1} parent=47 // pred_fallthru
          _
      $region48: #{tpu_custom_call.1} parent=5 // pred_fallthru
        _
      %p343 = scmp.le.s32.totalorder 1, %s20
      %p344 = scmp.lt.s32.totalorder %s20, 3
      %p345 = pnand %p343, %p344
      %p346 = pneg %p345
      // Predicated region
      $region53: #{tpu_custom_call.1} parent=5 // pred_check
        _
      $region54: #{tpu_custom_call.1} parent=5 // pred_check_branch
        %348 = sbr.rel (%p345) target = $region56
      $region55: #{tpu_custom_call.1} parent=5 // pred_region
        %s349 = ssub.s32 %s20, 1
        // Predicated region
        $region57: #{tpu_custom_call.1} parent=55 // pred_check
          %p350 = pneg %p67
        $region58: #{tpu_custom_call.1} parent=55 // pred_check_branch
          %352 = sbr.rel (%p350) target = $region60
        $region59: #{tpu_custom_call.1} parent=55 // pred_region
          %353 = dma.done [#allocation9], 512
        $region60: #{tpu_custom_call.1} parent=55 // pred_fallthru
          _
        // Predicated region
        $region61: #{tpu_custom_call.1} parent=55 // pred_check
          %p354 = pneg %p88
        $region62: #{tpu_custom_call.1} parent=55 // pred_check_branch
          %356 = sbr.rel (%p354) target = $region64
        $region63: #{tpu_custom_call.1} parent=55 // pred_region
          %357 = dma.done [#allocation12], 4096
        $region64: #{tpu_custom_call.1} parent=55 // pred_fallthru
          _
        // Predicated region
        $region65: #{tpu_custom_call.1} parent=55 // pred_check
          %p358 = pneg %p109
        $region66: #{tpu_custom_call.1} parent=55 // pred_check_branch
          %360 = sbr.rel (%p358) target = $region68
        $region67: #{tpu_custom_call.1} parent=55 // pred_region
          %361 = dma.done [#allocation12], 64
        $region68: #{tpu_custom_call.1} parent=55 // pred_fallthru
          _
        // Predicated region
        $region69: #{tpu_custom_call.1} parent=55 // pred_check
          %p362 = pneg %p130
        $region70: #{tpu_custom_call.1} parent=55 // pred_check_branch
          %364 = sbr.rel (%p362) target = $region72
        $region71: #{tpu_custom_call.1} parent=55 // pred_region
          %365 = dma.done [#allocation15], 4096
        $region72: #{tpu_custom_call.1} parent=55 // pred_fallthru
          _
        // Predicated region
        $region73: #{tpu_custom_call.1} parent=55 // pred_check
          %p366 = pneg %p151
        $region74: #{tpu_custom_call.1} parent=55 // pred_check_branch
          %368 = sbr.rel (%p366) target = $region76
        $region75: #{tpu_custom_call.1} parent=55 // pred_region
          %369 = dma.done [#allocation15], 4096
        $region76: #{tpu_custom_call.1} parent=55 // pred_fallthru
          _
        // Predicated region
        $region77: #{tpu_custom_call.1} parent=55 // pred_check
          %p370 = pneg %p172
        $region78: #{tpu_custom_call.1} parent=55 // pred_check_branch
          %372 = sbr.rel (%p370) target = $region80
        $region79: #{tpu_custom_call.1} parent=55 // pred_region
          %373 = dma.done [#allocation18], 64
        $region80: #{tpu_custom_call.1} parent=55 // pred_fallthru
          _
        %s374 = smul.u32 4, %s25
        %p375 = scmp.lt.s32.totalorder %s374, 7
        %s376 = scalar_select %p375, %s374, 7
        %s377 = smul.addr %s376, 4
        %s378 = scalar_lea.vmem %s0, %s377
        %p379 = pneg %p46
        %p380 = pneg %p43
        %p381 = pneg %p67
        %p382 = pneg %p64
        %p383 = pneg %p88
        %p384 = pneg %p85
        %p385 = pneg %p109
        %p386 = pneg %p106
        %p387 = pneg %p130
        %p388 = pneg %p127
        %p389 = pneg %p151
        %p390 = pneg %p148
        %p391 = pneg %p172
        %p392 = pneg %p169
        %p393 = pneg %p193
        %p394 = pneg %p190
        %p395 = pneg %p214
        %p396 = pneg %p211
        %p397 = pneg %p235
        %p398 = pneg %p232
        %s399 = smul.u32 4, %s25
        %p400 = scmp.lt.s32.totalorder %s399, 7
        %s401 = scalar_select %p400, %s399, 7
        %s402 = smul.addr %s401, 4
        %s403 = scalar_lea.vmem %s0, %s402
        %s404 = smul.u32 4, %s25
        %p406 = scmp.eq.s32.totalorder %s25, 0
        // Predicated region
        $region81: #{tpu_custom_call.1} parent=55 // pred_check
          %p407 = pneg %p406
        $region82: #{tpu_custom_call.1} parent=55 // pred_check_branch
          %409 = sbr.rel (%p407) target = $region84
        $region83: #{tpu_custom_call.1} parent=55 // pred_region
          %410 = vst [vmem:[#allocation2] sm:$0xff] 0.0
          %411 = vst [vmem:[#allocation4] sm:$0xff] 0.0
          %412 = vst [vmem:[#allocation3] sm:$0xff] 0.0
          %413 = vst [vmem:[#allocation5] sm:$0xff] 0.0
        $region84: #{tpu_custom_call.1} parent=55 // pred_fallthru
          _
        %v414 = vld [vmem:[%s403] sm:$0xf]
        %v415 = vld [vmem:[%s403 + $0x4] sm:$0xf]
        %v416 = vld [vmem:[%s403 + $0x8] sm:$0xf]
        %v417 = vld [vmem:[%s403 + $0xc] sm:$0xf]
        %v418 = vld [vmem:[#allocation8] sm:$0xff]
        %v419 = vld [vmem:[#allocation8 + $0x8] sm:$0xff]
        %v420 = vld [vmem:[#allocation8 + $0x10] sm:$0xff]
        %v421 = vld [vmem:[#allocation8 + $0x18] sm:$0xff]
        %v422 = vld [vmem:[#allocation13] sm:$0xf]
        %v424 = vlaneseq
        %v425 = vshrl.u32 %v424, 7
        %v426 = vsub.s32 0, %v425
        %v427 = vrot.slane %v422, %v426
        %v428 = vlaneseq
        %v429 = vshrl.u32 %v428, 7
        %v430 = vsub.s32 1, %v429
        %v431 = vrot.slane %v422, %v430
        %v432 = vlaneseq
        %v433 = vshrl.u32 %v432, 7
        %v434 = vsub.s32 2, %v433
        %v435 = vrot.slane %v422, %v434
        %v436 = vlaneseq
        %v437 = vshrl.u32 %v436, 7
        %v438 = vsub.s32 3, %v437
        %v439 = vrot.slane %v422, %v438
        %v448 = vunpack.c.l.b16 %v414
        %v449 = vunpack.c.l.b16 %v415
        %v450 = vunpack.c.l.b16 %v416
        %v451 = vunpack.c.l.b16 %v417
        %v452 = vpack.c.b16 %v449, %v448
        %v453 = vpack.c.b16 %v451, %v450
        %v458 = vunpack.c.l.b16 %v418
        %v459 = vunpack.c.h.b16 %v418
        %v460 = vunpack.c.l.b16 %v419
        %v461 = vunpack.c.h.b16 %v419
        %v462 = vunpack.c.l.b16 %v420
        %v463 = vunpack.c.h.b16 %v420
        %v464 = vunpack.c.l.b16 %v421
        %v465 = vunpack.c.h.b16 %v421
        %v466 = vpack.c.b16 %v462, %v458
        %v467 = vpack.c.b16 %v463, %v459
        %v468 = vpack.c.b16 %v464, %v460
        %v469 = vpack.c.b16 %v465, %v461
        %vm474 = vcmask 130048
        %v476 = vsel %vm474, %v452, 0
        %v479 = vsel %vm474, %v453, 0
        %481 = vmatprep.subr.bf16.mxu0 %v467
        %482 = vmatpush1.bf16.msra.mxu0 %v466
        %483 = vmatprep.subr.bf16.mxu0 0
        %484 = vmatpush1.bf16.msra.mxu0 0
        %485 = vmatprep.subr.bf16.mxu0 0
        %486 = vmatpush1.bf16.msra.mxu0 0
        %487 = vmatprep.subr.bf16.mxu0 0
        %488 = vmatpush1.bf16.msra.mxu0 0
        %489 = vmatprep.subr.bf16.mxu0 0
        %490 = vmatpush1.bf16.msra.mxu0 0
        %491 = vmatprep.subr.bf16.mxu0 0
        %492 = vmatpush1.bf16.msra.mxu0 0
        %493 = vmatprep.subr.bf16.mxu0 0
        %494 = vmatpush1.bf16.msra.mxu0 0
        %495 = vmatprep.subr.bf16.mxu0 0
        %496 = vmatpush1.bf16.msra.mxu0 0
        %497 = vmatprep.subr.bf16.mxu0 0
        %498 = vmatpush1.bf16.msra.mxu0 0
        %499 = vmatprep.subr.bf16.mxu0 0
        %500 = vmatpush1.bf16.msra.mxu0 0
        %501 = vmatprep.subr.bf16.mxu0 0
        %502 = vmatpush1.bf16.msra.mxu0 0
        %503 = vmatprep.subr.bf16.mxu0 0
        %504 = vmatpush1.bf16.msra.mxu0 0
        %505 = vmatprep.subr.bf16.mxu0 0
        %506 = vmatpush1.bf16.msra.mxu0 0
        %507 = vmatprep.subr.bf16.mxu0 0
        %508 = vmatpush1.bf16.msra.mxu0 0
        %509 = vmatprep.subr.bf16.mxu0 0
        %510 = vmatpush1.bf16.msra.mxu0 0
        %511 = vmatprep.subr.bf16.mxu0 0
        %512 = vmatpush1.bf16.msra.mxu0 0
        %513 = vmatprep.mubr.bf16.mxu0 0
        %514 = vmatmul.mubr.bf16.gmra.mrb[0].mxu0 %v476
        %v515 = vpop.f32.mrb[0].mxu0
        %v516 = vadd.f32 %v427, %v515
        %v517 = vpop.f32.mrb[0].mxu0
        %v518 = vadd.f32 %v431, %v517
        %v519 = vpop.f32.mrb[0].mxu0
        %v520 = vadd.f32 %v427, %v519
        %v521 = vpop.f32.mrb[0].mxu0
        %v522 = vadd.f32 %v431, %v521
        %523 = vmatprep.mubr.bf16.mxu0 0
        %524 = vmatmul.mubr.bf16.gmra.mrb[0].mxu0 %v479
        %v525 = vpop.f32.mrb[0].mxu0
        %v526 = vadd.f32 %v427, %v525
        %v527 = vpop.f32.mrb[0].mxu0
        %v528 = vadd.f32 %v431, %v527
        %v529 = vpop.f32.mrb[0].mxu0
        %v530 = vadd.f32 %v427, %v529
        %v531 = vpop.f32.mrb[0].mxu0
        %v532 = vadd.f32 %v431, %v531
        %533 = vdwg.mxu0
        %534 = vmatprep.subr.bf16.mxu0 %v469
        %535 = vmatpush1.bf16.msra.mxu0 %v468
        %536 = vmatprep.subr.bf16.mxu0 0
        %537 = vmatpush1.bf16.msra.mxu0 0
        %538 = vmatprep.subr.bf16.mxu0 0
        %539 = vmatpush1.bf16.msra.mxu0 0
        %540 = vmatprep.subr.bf16.mxu0 0
        %541 = vmatpush1.bf16.msra.mxu0 0
        %542 = vmatprep.subr.bf16.mxu0 0
        %543 = vmatpush1.bf16.msra.mxu0 0
        %544 = vmatprep.subr.bf16.mxu0 0
        %545 = vmatpush1.bf16.msra.mxu0 0
        %546 = vmatprep.subr.bf16.mxu0 0
        %547 = vmatpush1.bf16.msra.mxu0 0
        %548 = vmatprep.subr.bf16.mxu0 0
        %549 = vmatpush1.bf16.msra.mxu0 0
        %550 = vmatprep.subr.bf16.mxu0 0
        %551 = vmatpush1.bf16.msra.mxu0 0
        %552 = vmatprep.subr.bf16.mxu0 0
        %553 = vmatpush1.bf16.msra.mxu0 0
        %554 = vmatprep.subr.bf16.mxu0 0
        %555 = vmatpush1.bf16.msra.mxu0 0
        %556 = vmatprep.subr.bf16.mxu0 0
        %557 = vmatpush1.bf16.msra.mxu0 0
        %558 = vmatprep.subr.bf16.mxu0 0
        %559 = vmatpush1.bf16.msra.mxu0 0
        %560 = vmatprep.subr.bf16.mxu0 0
        %561 = vmatpush1.bf16.msra.mxu0 0
        %562 = vmatprep.subr.bf16.mxu0 0
        %563 = vmatpush1.bf16.msra.mxu0 0
        %564 = vmatprep.subr.bf16.mxu0 0
        %565 = vmatpush1.bf16.msra.mxu0 0
        %566 = vmatprep.mubr.bf16.mxu0 0
        %567 = vmatmul.mubr.bf16.gmra.mrb[0].mxu0 %v476
        %v568 = vpop.f32.mrb[0].mxu0
        %v569 = vadd.f32 %v435, %v568
        %v570 = vpop.f32.mrb[0].mxu0
        %v571 = vadd.f32 %v439, %v570
        %v572 = vpop.f32.mrb[0].mxu0
        %v573 = vadd.f32 %v435, %v572
        %v574 = vpop.f32.mrb[0].mxu0
        %v575 = vadd.f32 %v439, %v574
        %576 = vmatprep.mubr.bf16.mxu0 0
        %577 = vmatmul.mubr.bf16.gmra.mrb[0].mxu0 %v479
        %v578 = vpop.f32.mrb[0].mxu0
        %v579 = vadd.f32 %v435, %v578
        %v580 = vpop.f32.mrb[0].mxu0
        %v581 = vadd.f32 %v439, %v580
        %v582 = vpop.f32.mrb[0].mxu0
        %v583 = vadd.f32 %v435, %v582
        %v584 = vpop.f32.mrb[0].mxu0
        %v585 = vadd.f32 %v439, %v584
        %586 = vdwg.mxu0
        %587 = vst [vmem:[#allocation7] sm:$0xff] %v516
        %588 = vst [vmem:[#allocation7 + $0x8] sm:$0xff] %v518
        %589 = vst [vmem:[#allocation7 + $0x10] sm:$0xff] %v569
        %590 = vst [vmem:[#allocation7 + $0x18] sm:$0xff] %v571
        %591 = vst [vmem:[#allocation7 + $0x20] sm:$0xff] %v520
        %592 = vst [vmem:[#allocation7 + $0x28] sm:$0xff] %v522
        %593 = vst [vmem:[#allocation7 + $0x30] sm:$0xff] %v573
        %594 = vst [vmem:[#allocation7 + $0x38] sm:$0xff] %v575
        %595 = vst [vmem:[#allocation7 + $0x40] sm:$0xff] %v526
        %596 = vst [vmem:[#allocation7 + $0x48] sm:$0xff] %v528
        %597 = vst [vmem:[#allocation7 + $0x50] sm:$0xff] %v579
        %598 = vst [vmem:[#allocation7 + $0x58] sm:$0xff] %v581
        %599 = vst [vmem:[#allocation7 + $0x60] sm:$0xff] %v530
        %600 = vst [vmem:[#allocation7 + $0x68] sm:$0xff] %v532
        %601 = vst [vmem:[#allocation7 + $0x70] sm:$0xff] %v583
        %602 = vst [vmem:[#allocation7 + $0x78] sm:$0xff] %v585
        %v603 = vld [vmem:[#allocation11] sm:$0xff]
        %v604 = vld [vmem:[#allocation11 + $0x8] sm:$0xff]
        %v605 = vld [vmem:[#allocation11 + $0x10] sm:$0xff]
        %v606 = vld [vmem:[#allocation11 + $0x18] sm:$0xff]
        %v607 = vld [vmem:[#allocation11 + $0x20] sm:$0xff]
        %v608 = vld [vmem:[#allocation11 + $0x28] sm:$0xff]
        %v609 = vld [vmem:[#allocation11 + $0x30] sm:$0xff]
        %v610 = vld [vmem:[#allocation11 + $0x38] sm:$0xff]
        %v611 = vld [vmem:[#allocation11 + $0x40] sm:$0xff]
        %v612 = vld [vmem:[#allocation11 + $0x48] sm:$0xff]
        %v613 = vld [vmem:[#allocation11 + $0x50] sm:$0xff]
        %v614 = vld [vmem:[#allocation11 + $0x58] sm:$0xff]
        %v615 = vld [vmem:[#allocation11 + $0x60] sm:$0xff]
        %v616 = vld [vmem:[#allocation11 + $0x68] sm:$0xff]
        %v617 = vld [vmem:[#allocation11 + $0x70] sm:$0xff]
        %v618 = vld [vmem:[#allocation11 + $0x78] sm:$0xff]
        %v619 = vld [vmem:[#allocation11 + $0x80] sm:$0xff]
        %v620 = vld [vmem:[#allocation11 + $0x88] sm:$0xff]
        %v621 = vld [vmem:[#allocation11 + $0x90] sm:$0xff]
        %v622 = vld [vmem:[#allocation11 + $0x98] sm:$0xff]
        %v623 = vld [vmem:[#allocation11 + $0xa0] sm:$0xff]
        %v624 = vld [vmem:[#allocation11 + $0xa8] sm:$0xff]
        %v625 = vld [vmem:[#allocation11 + $0xb0] sm:$0xff]
        %v626 = vld [vmem:[#allocation11 + $0xb8] sm:$0xff]
        %v627 = vld [vmem:[#allocation11 + $0xc0] sm:$0xff]
        %v628 = vld [vmem:[#allocation11 + $0xc8] sm:$0xff]
        %v629 = vld [vmem:[#allocation11 + $0xd0] sm:$0xff]
        %v630 = vld [vmem:[#allocation11 + $0xd8] sm:$0xff]
        %v631 = vld [vmem:[#allocation11 + $0xe0] sm:$0xff]
        %v632 = vld [vmem:[#allocation11 + $0xe8] sm:$0xff]
        %v633 = vld [vmem:[#allocation11 + $0xf0] sm:$0xff]
        %v634 = vld [vmem:[#allocation11 + $0xf8] sm:$0xff]
        %v635 = vld [vmem:[#allocation2] sm:$0xff]
        %v636 = vld [vmem:[#allocation4] sm:$0xff]
        %v637 = vld [vmem:[#allocation7] sm:$0xff]
        %v638 = vld [vmem:[#allocation7 + $0x8] sm:$0xff]
        %v639 = vld [vmem:[#allocation7 + $0x10] sm:$0xff]
        %v640 = vld [vmem:[#allocation7 + $0x18] sm:$0xff]
        %v641 = vpack.c.bf16 %v635, %v635
        %v674 = vunpack.c.l.b16 %v603
        %v675 = vunpack.c.h.b16 %v603
        %v676 = vunpack.c.l.b16 %v604
        %v677 = vunpack.c.h.b16 %v604
        %v678 = vunpack.c.l.b16 %v605
        %v679 = vunpack.c.h.b16 %v605
        %v680 = vunpack.c.l.b16 %v606
        %v681 = vunpack.c.h.b16 %v606
        %v682 = vunpack.c.l.b16 %v607
        %v683 = vunpack.c.h.b16 %v607
        %v684 = vunpack.c.l.b16 %v608
        %v685 = vunpack.c.h.b16 %v608
        %v686 = vunpack.c.l.b16 %v609
        %v687 = vunpack.c.h.b16 %v609
        %v688 = vunpack.c.l.b16 %v610
        %v689 = vunpack.c.h.b16 %v610
        %v690 = vunpack.c.l.b16 %v611
        %v691 = vunpack.c.h.b16 %v611
        %v692 = vunpack.c.l.b16 %v612
        %v693 = vunpack.c.h.b16 %v612
        %v694 = vunpack.c.l.b16 %v613
        %v695 = vunpack.c.h.b16 %v613
        %v696 = vunpack.c.l.b16 %v614
        %v697 = vunpack.c.h.b16 %v614
        %v698 = vunpack.c.l.b16 %v615
        %v699 = vunpack.c.h.b16 %v615
        %v700 = vunpack.c.l.b16 %v616
        %v701 = vunpack.c.h.b16 %v616
        %v702 = vunpack.c.l.b16 %v617
        %v703 = vunpack.c.h.b16 %v617
        %v704 = vunpack.c.l.b16 %v618
        %v705 = vunpack.c.h.b16 %v618
        %v706 = vunpack.c.l.b16 %v619
        %v707 = vunpack.c.h.b16 %v619
        %v708 = vunpack.c.l.b16 %v620
        %v709 = vunpack.c.h.b16 %v620
        %v710 = vunpack.c.l.b16 %v621
        %v711 = vunpack.c.h.b16 %v621
        %v712 = vunpack.c.l.b16 %v622
        %v713 = vunpack.c.h.b16 %v622
        %v714 = vunpack.c.l.b16 %v623
        %v715 = vunpack.c.h.b16 %v623
        %v716 = vunpack.c.l.b16 %v624
        %v717 = vunpack.c.h.b16 %v624
        %v718 = vunpack.c.l.b16 %v625
        %v719 = vunpack.c.h.b16 %v625
        %v720 = vunpack.c.l.b16 %v626
        %v721 = vunpack.c.h.b16 %v626
        %v722 = vunpack.c.l.b16 %v627
        %v723 = vunpack.c.h.b16 %v627
        %v724 = vunpack.c.l.b16 %v628
        %v725 = vunpack.c.h.b16 %v628
        %v726 = vunpack.c.l.b16 %v629
        %v727 = vunpack.c.h.b16 %v629
        %v728 = vunpack.c.l.b16 %v630
        %v729 = vunpack.c.h.b16 %v630
        %v730 = vunpack.c.l.b16 %v631
        %v731 = vunpack.c.h.b16 %v631
        %v732 = vunpack.c.l.b16 %v632
        %v733 = vunpack.c.h.b16 %v632
        %v734 = vunpack.c.l.b16 %v633
        %v735 = vunpack.c.h.b16 %v633
        %v736 = vunpack.c.l.b16 %v634
        %v737 = vunpack.c.h.b16 %v634
        %v738 = vpack.c.b16 %v678, %v674
        %v739 = vpack.c.b16 %v679, %v675
        %v740 = vpack.c.b16 %v680, %v676
        %v741 = vpack.c.b16 %v681, %v677
        %v742 = vpack.c.b16 %v686, %v682
        %v743 = vpack.c.b16 %v687, %v683
        %v744 = vpack.c.b16 %v688, %v684
        %v745 = vpack.c.b16 %v689, %v685
        %v746 = vpack.c.b16 %v694, %v690
        %v747 = vpack.c.b16 %v695, %v691
        %v748 = vpack.c.b16 %v696, %v692
        %v749 = vpack.c.b16 %v697, %v693
        %v750 = vpack.c.b16 %v702, %v698
        %v751 = vpack.c.b16 %v703, %v699
        %v752 = vpack.c.b16 %v704, %v700
        %v753 = vpack.c.b16 %v705, %v701
        %v754 = vpack.c.b16 %v710, %v706
        %v755 = vpack.c.b16 %v711, %v707
        %v756 = vpack.c.b16 %v712, %v708
        %v757 = vpack.c.b16 %v713, %v709
        %v758 = vpack.c.b16 %v718, %v714
        %v759 = vpack.c.b16 %v719, %v715
        %v760 = vpack.c.b16 %v720, %v716
        %v761 = vpack.c.b16 %v721, %v717
        %v762 = vpack.c.b16 %v726, %v722
        %v763 = vpack.c.b16 %v727, %v723
        %v764 = vpack.c.b16 %v728, %v724
        %v765 = vpack.c.b16 %v729, %v725
        %v766 = vpack.c.b16 %v734, %v730
        %v767 = vpack.c.b16 %v735, %v731
        %v768 = vpack.c.b16 %v736, %v732
        %v769 = vpack.c.b16 %v737, %v733
        %802 = vmatprep.subr.bf16.mxu0 %v739
        %803 = vmatpush1.bf16.msra.mxu0 %v738
        %804 = vmatprep.subr.bf16.mxu0 %v743
        %805 = vmatpush1.bf16.msra.mxu0 %v742
        %806 = vmatprep.subr.bf16.mxu0 %v747
        %807 = vmatpush1.bf16.msra.mxu0 %v746
        %808 = vmatprep.subr.bf16.mxu0 %v751
        %809 = vmatpush1.bf16.msra.mxu0 %v750
        %810 = vmatprep.subr.bf16.mxu0 %v755
        %811 = vmatpush1.bf16.msra.mxu0 %v754
        %812 = vmatprep.subr.bf16.mxu0 %v759
        %813 = vmatpush1.bf16.msra.mxu0 %v758
        %814 = vmatprep.subr.bf16.mxu0 %v763
        %815 = vmatpush1.bf16.msra.mxu0 %v762
        %816 = vmatprep.subr.bf16.mxu0 %v767
        %817 = vmatpush1.bf16.msra.mxu0 %v766
        %818 = vmatprep.subr.bf16.mxu0 0
        %819 = vmatpush1.bf16.msra.mxu0 0
        %820 = vmatprep.subr.bf16.mxu0 0
        %821 = vmatpush1.bf16.msra.mxu0 0
        %822 = vmatprep.subr.bf16.mxu0 0
        %823 = vmatpush1.bf16.msra.mxu0 0
        %824 = vmatprep.subr.bf16.mxu0 0
        %825 = vmatpush1.bf16.msra.mxu0 0
        %826 = vmatprep.subr.bf16.mxu0 0
        %827 = vmatpush1.bf16.msra.mxu0 0
        %828 = vmatprep.subr.bf16.mxu0 0
        %829 = vmatpush1.bf16.msra.mxu0 0
        %830 = vmatprep.subr.bf16.mxu0 0
        %831 = vmatpush1.bf16.msra.mxu0 0
        %832 = vmatprep.subr.bf16.mxu0 0
        %833 = vmatpush1.bf16.msra.mxu0 0
        %834 = vmatprep.mubr.bf16.mxu0 0
        %835 = vmatmul.mubr.bf16.gmra.mrb[0].mxu0 %v641
        %v836 = vpop.f32.mrb[0].mxu0
        %v837 = vadd.f32 0.0, %v836
        %v838 = vpop.f32.mrb[0].mxu0
        %v839 = vadd.f32 0.0, %v838
        %v840 = vpop.f32.mrb[0].mxu0
        %v841 = vpop.f32.mrb[0].mxu0
        %842 = vdwg.mxu0
        %843 = vmatprep.subr.bf16.mxu0 %v741
        %844 = vmatpush1.bf16.msra.mxu0 %v740
        %845 = vmatprep.subr.bf16.mxu0 %v745
        %846 = vmatpush1.bf16.msra.mxu0 %v744
        %847 = vmatprep.subr.bf16.mxu0 %v749
        %848 = vmatpush1.bf16.msra.mxu0 %v748
        %849 = vmatprep.subr.bf16.mxu0 %v753
        %850 = vmatpush1.bf16.msra.mxu0 %v752
        %851 = vmatprep.subr.bf16.mxu0 %v757
        %852 = vmatpush1.bf16.msra.mxu0 %v756
        %853 = vmatprep.subr.bf16.mxu0 %v761
        %854 = vmatpush1.bf16.msra.mxu0 %v760
        %855 = vmatprep.subr.bf16.mxu0 %v765
        %856 = vmatpush1.bf16.msra.mxu0 %v764
        %857 = vmatprep.subr.bf16.mxu0 %v769
        %858 = vmatpush1.bf16.msra.mxu0 %v768
        %859 = vmatprep.subr.bf16.mxu0 0
        %860 = vmatpush1.bf16.msra.mxu0 0
        %861 = vmatprep.subr.bf16.mxu0 0
        %862 = vmatpush1.bf16.msra.mxu0 0
        %863 = vmatprep.subr.bf16.mxu0 0
        %864 = vmatpush1.bf16.msra.mxu0 0
        %865 = vmatprep.subr.bf16.mxu0 0
        %866 = vmatpush1.bf16.msra.mxu0 0
        %867 = vmatprep.subr.bf16.mxu0 0
        %868 = vmatpush1.bf16.msra.mxu0 0
        %869 = vmatprep.subr.bf16.mxu0 0
        %870 = vmatpush1.bf16.msra.mxu0 0
        %871 = vmatprep.subr.bf16.mxu0 0
        %872 = vmatpush1.bf16.msra.mxu0 0
        %873 = vmatprep.subr.bf16.mxu0 0
        %874 = vmatpush1.bf16.msra.mxu0 0
        %875 = vmatprep.mubr.bf16.mxu0 0
        %876 = vmatmul.mubr.bf16.gmra.mrb[0].mxu0 %v641
        %v877 = vpop.f32.mrb[0].mxu0
        %v878 = vadd.f32 0.0, %v877
        %v879 = vpop.f32.mrb[0].mxu0
        %v880 = vadd.f32 0.0, %v879
        %v881 = vpop.f32.mrb[0].mxu0
        %v882 = vpop.f32.mrb[0].mxu0
        %883 = vdwg.mxu0
        %v884 = vadd.f32 %v637, %v837
        %v885 = vadd.f32 %v638, %v839
        %v886 = vadd.f32 %v639, %v878
        %v887 = vadd.f32 %v640, %v880
        %v888 = vxor.u32 %v884, 2147483648
        %v889 = vmul.f32 %v888, 1.442695
        %v890 = vpow.pop %v889
        %v891 = vadd.f32 %v890, 1.0
        %v892 = vrcp.pop %v891
        %v893 = vmul.f32 1.0, %v892
        %v894 = vxor.u32 %v885, 2147483648
        %v895 = vmul.f32 %v894, 1.442695
        %v896 = vpow.pop %v895
        %v897 = vadd.f32 %v896, 1.0
        %v898 = vrcp.pop %v897
        %v899 = vmul.f32 1.0, %v898
        %v900 = vtanh.pop %v886
        %v901 = vxor.u32 %v887, 2147483648
        %v902 = vmul.f32 %v901, 1.442695
        %v903 = vpow.pop %v902
        %v904 = vadd.f32 %v903, 1.0
        %v905 = vrcp.pop %v904
        %v906 = vmul.f32 1.0, %v905
        %v907 = vmul.f32 %v899, %v636
        %v908 = vmul.f32 %v893, %v900
        %v909 = vadd.f32 %v907, %v908
        %v910 = vtanh.pop %v909
        %v911 = vmul.f32 %v906, %v910
        %912 = vst [vmem:[#allocation4] sm:$0xff] %v909
        %913 = vst [vmem:[#allocation2] sm:$0xff] %v911
        %914 = vst [vmem:[#allocation6] sm:$0xff] %v911
        %v915 = vld [vmem:[#allocation2] sm:$0xff]
        %v916 = vld [vmem:[#allocation4] sm:$0xff]
        %v917 = vld [vmem:[#allocation7 + $0x20] sm:$0xff]
        %v918 = vld [vmem:[#allocation7 + $0x28] sm:$0xff]
        %v919 = vld [vmem:[#allocation7 + $0x30] sm:$0xff]
        %v920 = vld [vmem:[#allocation7 + $0x38] sm:$0xff]
        %v921 = vpack.c.bf16 %v915, %v915
        %922 = vmatprep.subr.bf16.mxu0 %v739
        %923 = vmatpush1.bf16.msra.mxu0 %v738
        %924 = vmatprep.subr.bf16.mxu0 %v743
        %925 = vmatpush1.bf16.msra.mxu0 %v742
        %926 = vmatprep.subr.bf16.mxu0 %v747
        %927 = vmatpush1.bf16.msra.mxu0 %v746
        %928 = vmatprep.subr.bf16.mxu0 %v751
        %929 = vmatpush1.bf16.msra.mxu0 %v750
        %930 = vmatprep.subr.bf16.mxu0 %v755
        %931 = vmatpush1.bf16.msra.mxu0 %v754
        %932 = vmatprep.subr.bf16.mxu0 %v759
        %933 = vmatpush1.bf16.msra.mxu0 %v758
        %934 = vmatprep.subr.bf16.mxu0 %v763
        %935 = vmatpush1.bf16.msra.mxu0 %v762
        %936 = vmatprep.subr.bf16.mxu0 %v767
        %937 = vmatpush1.bf16.msra.mxu0 %v766
        %938 = vmatprep.subr.bf16.mxu0 0
        %939 = vmatpush1.bf16.msra.mxu0 0
        %940 = vmatprep.subr.bf16.mxu0 0
        %941 = vmatpush1.bf16.msra.mxu0 0
        %942 = vmatprep.subr.bf16.mxu0 0
        %943 = vmatpush1.bf16.msra.mxu0 0
        %944 = vmatprep.subr.bf16.mxu0 0
        %945 = vmatpush1.bf16.msra.mxu0 0
        %946 = vmatprep.subr.bf16.mxu0 0
        %947 = vmatpush1.bf16.msra.mxu0 0
        %948 = vmatprep.subr.bf16.mxu0 0
        %949 = vmatpush1.bf16.msra.mxu0 0
        %950 = vmatprep.subr.bf16.mxu0 0
        %951 = vmatpush1.bf16.msra.mxu0 0
        %952 = vmatprep.subr.bf16.mxu0 0
        %953 = vmatpush1.bf16.msra.mxu0 0
        %954 = vmatprep.mubr.bf16.mxu0 0
        %955 = vmatmul.mubr.bf16.gmra.mrb[0].mxu0 %v921
        %v956 = vpop.f32.mrb[0].mxu0
        %v957 = vadd.f32 0.0, %v956
        %v958 = vpop.f32.mrb[0].mxu0
        %v959 = vadd.f32 0.0, %v958
        %v960 = vpop.f32.mrb[0].mxu0
        %v961 = vpop.f32.mrb[0].mxu0
        %962 = vdwg.mxu0
        %963 = vmatprep.subr.bf16.mxu0 %v741
        %964 = vmatpush1.bf16.msra.mxu0 %v740
        %965 = vmatprep.subr.bf16.mxu0 %v745
        %966 = vmatpush1.bf16.msra.mxu0 %v744
        %967 = vmatprep.subr.bf16.mxu0 %v749
        %968 = vmatpush1.bf16.msra.mxu0 %v748
        %969 = vmatprep.subr.bf16.mxu0 %v753
        %970 = vmatpush1.bf16.msra.mxu0 %v752
        %971 = vmatprep.subr.bf16.mxu0 %v757
        %972 = vmatpush1.bf16.msra.mxu0 %v756
        %973 = vmatprep.subr.bf16.mxu0 %v761
        %974 = vmatpush1.bf16.msra.mxu0 %v760
        %975 = vmatprep.subr.bf16.mxu0 %v765
        %976 = vmatpush1.bf16.msra.mxu0 %v764
        %977 = vmatprep.subr.bf16.mxu0 %v769
        %978 = vmatpush1.bf16.msra.mxu0 %v768
        %979 = vmatprep.subr.bf16.mxu0 0
        %980 = vmatpush1.bf16.msra.mxu0 0
        %981 = vmatprep.subr.bf16.mxu0 0
        %982 = vmatpush1.bf16.msra.mxu0 0
        %983 = vmatprep.subr.bf16.mxu0 0
        %984 = vmatpush1.bf16.msra.mxu0 0
        %985 = vmatprep.subr.bf16.mxu0 0
        %986 = vmatpush1.bf16.msra.mxu0 0
        %987 = vmatprep.subr.bf16.mxu0 0
        %988 = vmatpush1.bf16.msra.mxu0 0
        %989 = vmatprep.subr.bf16.mxu0 0
        %990 = vmatpush1.bf16.msra.mxu0 0
        %991 = vmatprep.subr.bf16.mxu0 0
        %992 = vmatpush1.bf16.msra.mxu0 0
        %993 = vmatprep.subr.bf16.mxu0 0
        %994 = vmatpush1.bf16.msra.mxu0 0
        %995 = vmatprep.mubr.bf16.mxu0 0
        %996 = vmatmul.mubr.bf16.gmra.mrb[0].mxu0 %v921
        %v997 = vpop.f32.mrb[0].mxu0
        %v998 = vadd.f32 0.0, %v997
        %v999 = vpop.f32.mrb[0].mxu0
        %v1000 = vadd.f32 0.0, %v999
        %v1001 = vpop.f32.mrb[0].mxu0
        %v1002 = vpop.f32.mrb[0].mxu0
        %1003 = vdwg.mxu0
        %v1004 = vadd.f32 %v917, %v957
        %v1005 = vadd.f32 %v918, %v959
        %v1006 = vadd.f32 %v919, %v998
        %v1007 = vadd.f32 %v920, %v1000
        %v1008 = vxor.u32 %v1004, 2147483648
        %v1009 = vmul.f32 %v1008, 1.442695
        %v1010 = vpow.pop %v1009
        %v1011 = vadd.f32 %v1010, 1.0
        %v1012 = vrcp.pop %v1011
        %v1013 = vmul.f32 1.0, %v1012
        %v1014 = vxor.u32 %v1005, 2147483648
        %v1015 = vmul.f32 %v1014, 1.442695
        %v1016 = vpow.pop %v1015
        %v1017 = vadd.f32 %v1016, 1.0
        %v1018 = vrcp.pop %v1017
        %v1019 = vmul.f32 1.0, %v1018
        %v1020 = vtanh.pop %v1006
        %v1021 = vxor.u32 %v1007, 2147483648
        %v1022 = vmul.f32 %v1021, 1.442695
        %v1023 = vpow.pop %v1022
        %v1024 = vadd.f32 %v1023, 1.0
        %v1025 = vrcp.pop %v1024
        %v1026 = vmul.f32 1.0, %v1025
        %v1027 = vmul.f32 %v1019, %v916
        %v1028 = vmul.f32 %v1013, %v1020
        %v1029 = vadd.f32 %v1027, %v1028
        %v1030 = vtanh.pop %v1029
        %v1031 = vmul.f32 %v1026, %v1030
        %1032 = vst [vmem:[#allocation4] sm:$0xff] %v1029
        %1033 = vst [vmem:[#allocation2] sm:$0xff] %v1031
        %1034 = vst [vmem:[#allocation6 + $0x8] sm:$0xff] %v1031
        %v1035 = vld [vmem:[#allocation2] sm:$0xff]
        %v1036 = vld [vmem:[#allocation4] sm:$0xff]
        %v1037 = vld [vmem:[#allocation7 + $0x40] sm:$0xff]
        %v1038 = vld [vmem:[#allocation7 + $0x48] sm:$0xff]
        %v1039 = vld [vmem:[#allocation7 + $0x50] sm:$0xff]
        %v1040 = vld [vmem:[#allocation7 + $0x58] sm:$0xff]
        %v1041 = vpack.c.bf16 %v1035, %v1035
        %1042 = vmatprep.subr.bf16.mxu0 %v739
        %1043 = vmatpush1.bf16.msra.mxu0 %v738
        %1044 = vmatprep.subr.bf16.mxu0 %v743
        %1045 = vmatpush1.bf16.msra.mxu0 %v742
        %1046 = vmatprep.subr.bf16.mxu0 %v747
        %1047 = vmatpush1.bf16.msra.mxu0 %v746
        %1048 = vmatprep.subr.bf16.mxu0 %v751
        %1049 = vmatpush1.bf16.msra.mxu0 %v750
        %1050 = vmatprep.subr.bf16.mxu0 %v755
        %1051 = vmatpush1.bf16.msra.mxu0 %v754
        %1052 = vmatprep.subr.bf16.mxu0 %v759
        %1053 = vmatpush1.bf16.msra.mxu0 %v758
        %1054 = vmatprep.subr.bf16.mxu0 %v763
        %1055 = vmatpush1.bf16.msra.mxu0 %v762
        %1056 = vmatprep.subr.bf16.mxu0 %v767
        %1057 = vmatpush1.bf16.msra.mxu0 %v766
        %1058 = vmatprep.subr.bf16.mxu0 0
        %1059 = vmatpush1.bf16.msra.mxu0 0
        %1060 = vmatprep.subr.bf16.mxu0 0
        %1061 = vmatpush1.bf16.msra.mxu0 0
        %1062 = vmatprep.subr.bf16.mxu0 0
        %1063 = vmatpush1.bf16.msra.mxu0 0
        %1064 = vmatprep.subr.bf16.mxu0 0
        %1065 = vmatpush1.bf16.msra.mxu0 0
        %1066 = vmatprep.subr.bf16.mxu0 0
        %1067 = vmatpush1.bf16.msra.mxu0 0
        %1068 = vmatprep.subr.bf16.mxu0 0
        %1069 = vmatpush1.bf16.msra.mxu0 0
        %1070 = vmatprep.subr.bf16.mxu0 0
        %1071 = vmatpush1.bf16.msra.mxu0 0
        %1072 = vmatprep.subr.bf16.mxu0 0
        %1073 = vmatpush1.bf16.msra.mxu0 0
        %1074 = vmatprep.mubr.bf16.mxu0 0
        %1075 = vmatmul.mubr.bf16.gmra.mrb[0].mxu0 %v1041
        %v1076 = vpop.f32.mrb[0].mxu0
        %v1077 = vadd.f32 0.0, %v1076
        %v1078 = vpop.f32.mrb[0].mxu0
        %v1079 = vadd.f32 0.0, %v1078
        %v1080 = vpop.f32.mrb[0].mxu0
        %v1081 = vpop.f32.mrb[0].mxu0
        %1082 = vdwg.mxu0
        %1083 = vmatprep.subr.bf16.mxu0 %v741
        %1084 = vmatpush1.bf16.msra.mxu0 %v740
        %1085 = vmatprep.subr.bf16.mxu0 %v745
        %1086 = vmatpush1.bf16.msra.mxu0 %v744
        %1087 = vmatprep.subr.bf16.mxu0 %v749
        %1088 = vmatpush1.bf16.msra.mxu0 %v748
        %1089 = vmatprep.subr.bf16.mxu0 %v753
        %1090 = vmatpush1.bf16.msra.mxu0 %v752
        %1091 = vmatprep.subr.bf16.mxu0 %v757
        %1092 = vmatpush1.bf16.msra.mxu0 %v756
        %1093 = vmatprep.subr.bf16.mxu0 %v761
        %1094 = vmatpush1.bf16.msra.mxu0 %v760
        %1095 = vmatprep.subr.bf16.mxu0 %v765
        %1096 = vmatpush1.bf16.msra.mxu0 %v764
        %1097 = vmatprep.subr.bf16.mxu0 %v769
        %1098 = vmatpush1.bf16.msra.mxu0 %v768
        %1099 = vmatprep.subr.bf16.mxu0 0
        %1100 = vmatpush1.bf16.msra.mxu0 0
        %1101 = vmatprep.subr.bf16.mxu0 0
        %1102 = vmatpush1.bf16.msra.mxu0 0
        %1103 = vmatprep.subr.bf16.mxu0 0
        %1104 = vmatpush1.bf16.msra.mxu0 0
        %1105 = vmatprep.subr.bf16.mxu0 0
        %1106 = vmatpush1.bf16.msra.mxu0 0
        %1107 = vmatprep.subr.bf16.mxu0 0
        %1108 = vmatpush1.bf16.msra.mxu0 0
        %1109 = vmatprep.subr.bf16.mxu0 0
        %1110 = vmatpush1.bf16.msra.mxu0 0
        %1111 = vmatprep.subr.bf16.mxu0 0
        %1112 = vmatpush1.bf16.msra.mxu0 0
        %1113 = vmatprep.subr.bf16.mxu0 0
        %1114 = vmatpush1.bf16.msra.mxu0 0
        %1115 = vmatprep.mubr.bf16.mxu0 0
        %1116 = vmatmul.mubr.bf16.gmra.mrb[0].mxu0 %v1041
        %v1117 = vpop.f32.mrb[0].mxu0
        %v1118 = vadd.f32 0.0, %v1117
        %v1119 = vpop.f32.mrb[0].mxu0
        %v1120 = vadd.f32 0.0, %v1119
        %v1121 = vpop.f32.mrb[0].mxu0
        %v1122 = vpop.f32.mrb[0].mxu0
        %1123 = vdwg.mxu0
        %v1124 = vadd.f32 %v1037, %v1077
        %v1125 = vadd.f32 %v1038, %v1079
        %v1126 = vadd.f32 %v1039, %v1118
        %v1127 = vadd.f32 %v1040, %v1120
        %v1128 = vxor.u32 %v1124, 2147483648
        %v1129 = vmul.f32 %v1128, 1.442695
        %v1130 = vpow.pop %v1129
        %v1131 = vadd.f32 %v1130, 1.0
        %v1132 = vrcp.pop %v1131
        %v1133 = vmul.f32 1.0, %v1132
        %v1134 = vxor.u32 %v1125, 2147483648
        %v1135 = vmul.f32 %v1134, 1.442695
        %v1136 = vpow.pop %v1135
        %v1137 = vadd.f32 %v1136, 1.0
        %v1138 = vrcp.pop %v1137
        %v1139 = vmul.f32 1.0, %v1138
        %v1140 = vtanh.pop %v1126
        %v1141 = vxor.u32 %v1127, 2147483648
        %v1142 = vmul.f32 %v1141, 1.442695
        %v1143 = vpow.pop %v1142
        %v1144 = vadd.f32 %v1143, 1.0
        %v1145 = vrcp.pop %v1144
        %v1146 = vmul.f32 1.0, %v1145
        %v1147 = vmul.f32 %v1139, %v1036
        %v1148 = vmul.f32 %v1133, %v1140
        %v1149 = vadd.f32 %v1147, %v1148
        %v1150 = vtanh.pop %v1149
        %v1151 = vmul.f32 %v1146, %v1150
        %1152 = vst [vmem:[#allocation4] sm:$0xff] %v1149
        %1153 = vst [vmem:[#allocation2] sm:$0xff] %v1151
        %1154 = vst [vmem:[#allocation6 + $0x10] sm:$0xff] %v1151
        %v1155 = vld [vmem:[#allocation2] sm:$0xff]
        %v1156 = vld [vmem:[#allocation4] sm:$0xff]
        %v1157 = vld [vmem:[#allocation7 + $0x60] sm:$0xff]
        %v1158 = vld [vmem:[#allocation7 + $0x68] sm:$0xff]
        %v1159 = vld [vmem:[#allocation7 + $0x70] sm:$0xff]
        %v1160 = vld [vmem:[#allocation7 + $0x78] sm:$0xff]
        %v1161 = vpack.c.bf16 %v1155, %v1155
        %1162 = vmatprep.subr.bf16.mxu0 %v739
        %1163 = vmatpush1.bf16.msra.mxu0 %v738
        %1164 = vmatprep.subr.bf16.mxu0 %v743
        %1165 = vmatpush1.bf16.msra.mxu0 %v742
        %1166 = vmatprep.subr.bf16.mxu0 %v747
        %1167 = vmatpush1.bf16.msra.mxu0 %v746
        %1168 = vmatprep.subr.bf16.mxu0 %v751
        %1169 = vmatpush1.bf16.msra.mxu0 %v750
        %1170 = vmatprep.subr.bf16.mxu0 %v755
        %1171 = vmatpush1.bf16.msra.mxu0 %v754
        %1172 = vmatprep.subr.bf16.mxu0 %v759
        %1173 = vmatpush1.bf16.msra.mxu0 %v758
        %1174 = vmatprep.subr.bf16.mxu0 %v763
        %1175 = vmatpush1.bf16.msra.mxu0 %v762
        %1176 = vmatprep.subr.bf16.mxu0 %v767
        %1177 = vmatpush1.bf16.msra.mxu0 %v766
        %1178 = vmatprep.subr.bf16.mxu0 0
        %1179 = vmatpush1.bf16.msra.mxu0 0
        %1180 = vmatprep.subr.bf16.mxu0 0
        %1181 = vmatpush1.bf16.msra.mxu0 0
        %1182 = vmatprep.subr.bf16.mxu0 0
        %1183 = vmatpush1.bf16.msra.mxu0 0
        %1184 = vmatprep.subr.bf16.mxu0 0
        %1185 = vmatpush1.bf16.msra.mxu0 0
        %1186 = vmatprep.subr.bf16.mxu0 0
        %1187 = vmatpush1.bf16.msra.mxu0 0
        %1188 = vmatprep.subr.bf16.mxu0 0
        %1189 = vmatpush1.bf16.msra.mxu0 0
        %1190 = vmatprep.subr.bf16.mxu0 0
        %1191 = vmatpush1.bf16.msra.mxu0 0
        %1192 = vmatprep.subr.bf16.mxu0 0
        %1193 = vmatpush1.bf16.msra.mxu0 0
        %1194 = vmatprep.mubr.bf16.mxu0 0
        %1195 = vmatmul.mubr.bf16.gmra.mrb[0].mxu0 %v1161
        %v1196 = vpop.f32.mrb[0].mxu0
        %v1197 = vadd.f32 0.0, %v1196
        %v1198 = vpop.f32.mrb[0].mxu0
        %v1199 = vadd.f32 0.0, %v1198
        %v1200 = vpop.f32.mrb[0].mxu0
        %v1201 = vpop.f32.mrb[0].mxu0
        %1202 = vdwg.mxu0
        %1203 = vmatprep.subr.bf16.mxu0 %v741
        %1204 = vmatpush1.bf16.msra.mxu0 %v740
        %1205 = vmatprep.subr.bf16.mxu0 %v745
        %1206 = vmatpush1.bf16.msra.mxu0 %v744
        %1207 = vmatprep.subr.bf16.mxu0 %v749
        %1208 = vmatpush1.bf16.msra.mxu0 %v748
        %1209 = vmatprep.subr.bf16.mxu0 %v753
        %1210 = vmatpush1.bf16.msra.mxu0 %v752
        %1211 = vmatprep.subr.bf16.mxu0 %v757
        %1212 = vmatpush1.bf16.msra.mxu0 %v756
        %1213 = vmatprep.subr.bf16.mxu0 %v761
        %1214 = vmatpush1.bf16.msra.mxu0 %v760
        %1215 = vmatprep.subr.bf16.mxu0 %v765
        %1216 = vmatpush1.bf16.msra.mxu0 %v764
        %1217 = vmatprep.subr.bf16.mxu0 %v769
        %1218 = vmatpush1.bf16.msra.mxu0 %v768
        %1219 = vmatprep.subr.bf16.mxu0 0
        %1220 = vmatpush1.bf16.msra.mxu0 0
        %1221 = vmatprep.subr.bf16.mxu0 0
        %1222 = vmatpush1.bf16.msra.mxu0 0
        %1223 = vmatprep.subr.bf16.mxu0 0
        %1224 = vmatpush1.bf16.msra.mxu0 0
        %1225 = vmatprep.subr.bf16.mxu0 0
        %1226 = vmatpush1.bf16.msra.mxu0 0
        %1227 = vmatprep.subr.bf16.mxu0 0
        %1228 = vmatpush1.bf16.msra.mxu0 0
        %1229 = vmatprep.subr.bf16.mxu0 0
        %1230 = vmatpush1.bf16.msra.mxu0 0
        %1231 = vmatprep.subr.bf16.mxu0 0
        %1232 = vmatpush1.bf16.msra.mxu0 0
        %1233 = vmatprep.subr.bf16.mxu0 0
        %1234 = vmatpush1.bf16.msra.mxu0 0
        %1235 = vmatprep.mubr.bf16.mxu0 0
        %1236 = vmatmul.mubr.bf16.gmra.mrb[0].mxu0 %v1161
        %v1237 = vpop.f32.mrb[0].mxu0
        %v1238 = vadd.f32 0.0, %v1237
        %v1239 = vpop.f32.mrb[0].mxu0
        %v1240 = vadd.f32 0.0, %v1239
        %v1241 = vpop.f32.mrb[0].mxu0
        %v1242 = vpop.f32.mrb[0].mxu0
        %1243 = vdwg.mxu0
        %v1244 = vadd.f32 %v1157, %v1197
        %v1245 = vadd.f32 %v1158, %v1199
        %v1246 = vadd.f32 %v1159, %v1238
        %v1247 = vadd.f32 %v1160, %v1240
        %v1248 = vxor.u32 %v1244, 2147483648
        %v1249 = vmul.f32 %v1248, 1.442695
        %v1250 = vpow.pop %v1249
        %v1251 = vadd.f32 %v1250, 1.0
        %v1252 = vrcp.pop %v1251
        %v1253 = vmul.f32 1.0, %v1252
        %v1254 = vxor.u32 %v1245, 2147483648
        %v1255 = vmul.f32 %v1254, 1.442695
        %v1256 = vpow.pop %v1255
        %v1257 = vadd.f32 %v1256, 1.0
        %v1258 = vrcp.pop %v1257
        %v1259 = vmul.f32 1.0, %v1258
        %v1260 = vtanh.pop %v1246
        %v1261 = vxor.u32 %v1247, 2147483648
        %v1262 = vmul.f32 %v1261, 1.442695
        %v1263 = vpow.pop %v1262
        %v1264 = vadd.f32 %v1263, 1.0
        %v1265 = vrcp.pop %v1264
        %v1266 = vmul.f32 1.0, %v1265
        %v1267 = vmul.f32 %v1259, %v1156
        %v1268 = vmul.f32 %v1253, %v1260
        %v1269 = vadd.f32 %v1267, %v1268
        %v1270 = vtanh.pop %v1269
        %v1271 = vmul.f32 %v1266, %v1270
        %1272 = vst [vmem:[#allocation4] sm:$0xff] %v1269
        %1273 = vst [vmem:[#allocation2] sm:$0xff] %v1271
        %1274 = vst [vmem:[#allocation6 + $0x18] sm:$0xff] %v1271
        %v1275 = vld [vmem:[#allocation6] sm:$0xff]
        %v1276 = vld [vmem:[#allocation6 + $0x8] sm:$0xff]
        %v1277 = vld [vmem:[#allocation6 + $0x10] sm:$0xff]
        %v1278 = vld [vmem:[#allocation6 + $0x18] sm:$0xff]
        %v1279 = vpack.c.bf16 %v1276, %v1275
        %v1280 = vpack.c.bf16 %v1278, %v1277
        %v1281 = vld [vmem:[#allocation14] sm:$0xff]
        %v1282 = vld [vmem:[#allocation14 + $0x8] sm:$0xff]
        %v1283 = vld [vmem:[#allocation14 + $0x10] sm:$0xff]
        %v1284 = vld [vmem:[#allocation14 + $0x18] sm:$0xff]
        %v1285 = vld [vmem:[#allocation14 + $0x20] sm:$0xff]
        %v1286 = vld [vmem:[#allocation14 + $0x28] sm:$0xff]
        %v1287 = vld [vmem:[#allocation14 + $0x30] sm:$0xff]
        %v1288 = vld [vmem:[#allocation14 + $0x38] sm:$0xff]
        %v1289 = vld [vmem:[#allocation14 + $0x40] sm:$0xff]
        %v1290 = vld [vmem:[#allocation14 + $0x48] sm:$0xff]
        %v1291 = vld [vmem:[#allocation14 + $0x50] sm:$0xff]
        %v1292 = vld [vmem:[#allocation14 + $0x58] sm:$0xff]
        %v1293 = vld [vmem:[#allocation14 + $0x60] sm:$0xff]
        %v1294 = vld [vmem:[#allocation14 + $0x68] sm:$0xff]
        %v1295 = vld [vmem:[#allocation14 + $0x70] sm:$0xff]
        %v1296 = vld [vmem:[#allocation14 + $0x78] sm:$0xff]
        %v1297 = vld [vmem:[#allocation14 + $0x80] sm:$0xff]
        %v1298 = vld [vmem:[#allocation14 + $0x88] sm:$0xff]
        %v1299 = vld [vmem:[#allocation14 + $0x90] sm:$0xff]
        %v1300 = vld [vmem:[#allocation14 + $0x98] sm:$0xff]
        %v1301 = vld [vmem:[#allocation14 + $0xa0] sm:$0xff]
        %v1302 = vld [vmem:[#allocation14 + $0xa8] sm:$0xff]
        %v1303 = vld [vmem:[#allocation14 + $0xb0] sm:$0xff]
        %v1304 = vld [vmem:[#allocation14 + $0xb8] sm:$0xff]
        %v1305 = vld [vmem:[#allocation14 + $0xc0] sm:$0xff]
        %v1306 = vld [vmem:[#allocation14 + $0xc8] sm:$0xff]
        %v1307 = vld [vmem:[#allocation14 + $0xd0] sm:$0xff]
        %v1308 = vld [vmem:[#allocation14 + $0xd8] sm:$0xff]
        %v1309 = vld [vmem:[#allocation14 + $0xe0] sm:$0xff]
        %v1310 = vld [vmem:[#allocation14 + $0xe8] sm:$0xff]
        %v1311 = vld [vmem:[#allocation14 + $0xf0] sm:$0xff]
        %v1312 = vld [vmem:[#allocation14 + $0xf8] sm:$0xff]
        %v1313 = vld [vmem:[#allocation17] sm:$0xf]
        %v1315 = vlaneseq
        %v1316 = vshrl.u32 %v1315, 7
        %v1317 = vsub.s32 0, %v1316
        %v1318 = vrot.slane %v1313, %v1317
        %v1319 = vlaneseq
        %v1320 = vshrl.u32 %v1319, 7
        %v1321 = vsub.s32 1, %v1320
        %v1322 = vrot.slane %v1313, %v1321
        %v1323 = vlaneseq
        %v1324 = vshrl.u32 %v1323, 7
        %v1325 = vsub.s32 2, %v1324
        %v1326 = vrot.slane %v1313, %v1325
        %v1327 = vlaneseq
        %v1328 = vshrl.u32 %v1327, 7
        %v1329 = vsub.s32 3, %v1328
        %v1330 = vrot.slane %v1313, %v1329
        %v1367 = vunpack.c.l.b16 %v1281
        %v1368 = vunpack.c.h.b16 %v1281
        %v1369 = vunpack.c.l.b16 %v1282
        %v1370 = vunpack.c.h.b16 %v1282
        %v1371 = vunpack.c.l.b16 %v1283
        %v1372 = vunpack.c.h.b16 %v1283
        %v1373 = vunpack.c.l.b16 %v1284
        %v1374 = vunpack.c.h.b16 %v1284
        %v1375 = vunpack.c.l.b16 %v1285
        %v1376 = vunpack.c.h.b16 %v1285
        %v1377 = vunpack.c.l.b16 %v1286
        %v1378 = vunpack.c.h.b16 %v1286
        %v1379 = vunpack.c.l.b16 %v1287
        %v1380 = vunpack.c.h.b16 %v1287
        %v1381 = vunpack.c.l.b16 %v1288
        %v1382 = vunpack.c.h.b16 %v1288
        %v1383 = vunpack.c.l.b16 %v1289
        %v1384 = vunpack.c.h.b16 %v1289
        %v1385 = vunpack.c.l.b16 %v1290
        %v1386 = vunpack.c.h.b16 %v1290
        %v1387 = vunpack.c.l.b16 %v1291
        %v1388 = vunpack.c.h.b16 %v1291
        %v1389 = vunpack.c.l.b16 %v1292
        %v1390 = vunpack.c.h.b16 %v1292
        %v1391 = vunpack.c.l.b16 %v1293
        %v1392 = vunpack.c.h.b16 %v1293
        %v1393 = vunpack.c.l.b16 %v1294
        %v1394 = vunpack.c.h.b16 %v1294
        %v1395 = vunpack.c.l.b16 %v1295
        %v1396 = vunpack.c.h.b16 %v1295
        %v1397 = vunpack.c.l.b16 %v1296
        %v1398 = vunpack.c.h.b16 %v1296
        %v1399 = vunpack.c.l.b16 %v1297
        %v1400 = vunpack.c.h.b16 %v1297
        %v1401 = vunpack.c.l.b16 %v1298
        %v1402 = vunpack.c.h.b16 %v1298
        %v1403 = vunpack.c.l.b16 %v1299
        %v1404 = vunpack.c.h.b16 %v1299
        %v1405 = vunpack.c.l.b16 %v1300
        %v1406 = vunpack.c.h.b16 %v1300
        %v1407 = vunpack.c.l.b16 %v1301
        %v1408 = vunpack.c.h.b16 %v1301
        %v1409 = vunpack.c.l.b16 %v1302
        %v1410 = vunpack.c.h.b16 %v1302
        %v1411 = vunpack.c.l.b16 %v1303
        %v1412 = vunpack.c.h.b16 %v1303
        %v1413 = vunpack.c.l.b16 %v1304
        %v1414 = vunpack.c.h.b16 %v1304
        %v1415 = vunpack.c.l.b16 %v1305
        %v1416 = vunpack.c.h.b16 %v1305
        %v1417 = vunpack.c.l.b16 %v1306
        %v1418 = vunpack.c.h.b16 %v1306
        %v1419 = vunpack.c.l.b16 %v1307
        %v1420 = vunpack.c.h.b16 %v1307
        %v1421 = vunpack.c.l.b16 %v1308
        %v1422 = vunpack.c.h.b16 %v1308
        %v1423 = vunpack.c.l.b16 %v1309
        %v1424 = vunpack.c.h.b16 %v1309
        %v1425 = vunpack.c.l.b16 %v1310
        %v1426 = vunpack.c.h.b16 %v1310
        %v1427 = vunpack.c.l.b16 %v1311
        %v1428 = vunpack.c.h.b16 %v1311
        %v1429 = vunpack.c.l.b16 %v1312
        %v1430 = vunpack.c.h.b16 %v1312
        %v1431 = vpack.c.b16 %v1371, %v1367
        %v1432 = vpack.c.b16 %v1372, %v1368
        %v1433 = vpack.c.b16 %v1373, %v1369
        %v1434 = vpack.c.b16 %v1374, %v1370
        %v1435 = vpack.c.b16 %v1379, %v1375
        %v1436 = vpack.c.b16 %v1380, %v1376
        %v1437 = vpack.c.b16 %v1381, %v1377
        %v1438 = vpack.c.b16 %v1382, %v1378
        %v1439 = vpack.c.b16 %v1387, %v1383
        %v1440 = vpack.c.b16 %v1388, %v1384
        %v1441 = vpack.c.b16 %v1389, %v1385
        %v1442 = vpack.c.b16 %v1390, %v1386
        %v1443 = vpack.c.b16 %v1395, %v1391
        %v1444 = vpack.c.b16 %v1396, %v1392
        %v1445 = vpack.c.b16 %v1397, %v1393
        %v1446 = vpack.c.b16 %v1398, %v1394
        %v1447 = vpack.c.b16 %v1403, %v1399
        %v1448 = vpack.c.b16 %v1404, %v1400
        %v1449 = vpack.c.b16 %v1405, %v1401
        %v1450 = vpack.c.b16 %v1406, %v1402
        %v1451 = vpack.c.b16 %v1411, %v1407
        %v1452 = vpack.c.b16 %v1412, %v1408
        %v1453 = vpack.c.b16 %v1413, %v1409
        %v1454 = vpack.c.b16 %v1414, %v1410
        %v1455 = vpack.c.b16 %v1419, %v1415
        %v1456 = vpack.c.b16 %v1420, %v1416
        %v1457 = vpack.c.b16 %v1421, %v1417
        %v1458 = vpack.c.b16 %v1422, %v1418
        %v1459 = vpack.c.b16 %v1427, %v1423
        %v1460 = vpack.c.b16 %v1428, %v1424
        %v1461 = vpack.c.b16 %v1429, %v1425
        %v1462 = vpack.c.b16 %v1430, %v1426
        %1495 = vmatprep.subr.bf16.mxu0 %v1432
        %1496 = vmatpush1.bf16.msra.mxu0 %v1431
        %1497 = vmatprep.subr.bf16.mxu0 %v1436
        %1498 = vmatpush1.bf16.msra.mxu0 %v1435
        %1499 = vmatprep.subr.bf16.mxu0 %v1440
        %1500 = vmatpush1.bf16.msra.mxu0 %v1439
        %1501 = vmatprep.subr.bf16.mxu0 %v1444
        %1502 = vmatpush1.bf16.msra.mxu0 %v1443
        %1503 = vmatprep.subr.bf16.mxu0 %v1448
        %1504 = vmatpush1.bf16.msra.mxu0 %v1447
        %1505 = vmatprep.subr.bf16.mxu0 %v1452
        %1506 = vmatpush1.bf16.msra.mxu0 %v1451
        %1507 = vmatprep.subr.bf16.mxu0 %v1456
        %1508 = vmatpush1.bf16.msra.mxu0 %v1455
        %1509 = vmatprep.subr.bf16.mxu0 %v1460
        %1510 = vmatpush1.bf16.msra.mxu0 %v1459
        %1511 = vmatprep.subr.bf16.mxu0 0
        %1512 = vmatpush1.bf16.msra.mxu0 0
        %1513 = vmatprep.subr.bf16.mxu0 0
        %1514 = vmatpush1.bf16.msra.mxu0 0
        %1515 = vmatprep.subr.bf16.mxu0 0
        %1516 = vmatpush1.bf16.msra.mxu0 0
        %1517 = vmatprep.subr.bf16.mxu0 0
        %1518 = vmatpush1.bf16.msra.mxu0 0
        %1519 = vmatprep.subr.bf16.mxu0 0
        %1520 = vmatpush1.bf16.msra.mxu0 0
        %1521 = vmatprep.subr.bf16.mxu0 0
        %1522 = vmatpush1.bf16.msra.mxu0 0
        %1523 = vmatprep.subr.bf16.mxu0 0
        %1524 = vmatpush1.bf16.msra.mxu0 0
        %1525 = vmatprep.subr.bf16.mxu0 0
        %1526 = vmatpush1.bf16.msra.mxu0 0
        %1527 = vmatprep.mubr.bf16.mxu0 0
        %1528 = vmatmul.mubr.bf16.gmra.mrb[0].mxu0 %v1279
        %v1529 = vpop.f32.mrb[0].mxu0
        %v1530 = vadd.f32 %v1318, %v1529
        %v1531 = vpop.f32.mrb[0].mxu0
        %v1532 = vadd.f32 %v1322, %v1531
        %v1533 = vpop.f32.mrb[0].mxu0
        %v1534 = vadd.f32 %v1318, %v1533
        %v1535 = vpop.f32.mrb[0].mxu0
        %v1536 = vadd.f32 %v1322, %v1535
        %1537 = vmatprep.mubr.bf16.mxu0 0
        %1538 = vmatmul.mubr.bf16.gmra.mrb[0].mxu0 %v1280
        %v1539 = vpop.f32.mrb[0].mxu0
        %v1540 = vadd.f32 %v1318, %v1539
        %v1541 = vpop.f32.mrb[0].mxu0
        %v1542 = vadd.f32 %v1322, %v1541
        %v1543 = vpop.f32.mrb[0].mxu0
        %v1544 = vadd.f32 %v1318, %v1543
        %v1545 = vpop.f32.mrb[0].mxu0
        %v1546 = vadd.f32 %v1322, %v1545
        %1547 = vdwg.mxu0
        %1548 = vmatprep.subr.bf16.mxu0 %v1434
        %1549 = vmatpush1.bf16.msra.mxu0 %v1433
        %1550 = vmatprep.subr.bf16.mxu0 %v1438
        %1551 = vmatpush1.bf16.msra.mxu0 %v1437
        %1552 = vmatprep.subr.bf16.mxu0 %v1442
        %1553 = vmatpush1.bf16.msra.mxu0 %v1441
        %1554 = vmatprep.subr.bf16.mxu0 %v1446
        %1555 = vmatpush1.bf16.msra.mxu0 %v1445
        %1556 = vmatprep.subr.bf16.mxu0 %v1450
        %1557 = vmatpush1.bf16.msra.mxu0 %v1449
        %1558 = vmatprep.subr.bf16.mxu0 %v1454
        %1559 = vmatpush1.bf16.msra.mxu0 %v1453
        %1560 = vmatprep.subr.bf16.mxu0 %v1458
        %1561 = vmatpush1.bf16.msra.mxu0 %v1457
        %1562 = vmatprep.subr.bf16.mxu0 %v1462
        %1563 = vmatpush1.bf16.msra.mxu0 %v1461
        %1564 = vmatprep.subr.bf16.mxu0 0
        %1565 = vmatpush1.bf16.msra.mxu0 0
        %1566 = vmatprep.subr.bf16.mxu0 0
        %1567 = vmatpush1.bf16.msra.mxu0 0
        %1568 = vmatprep.subr.bf16.mxu0 0
        %1569 = vmatpush1.bf16.msra.mxu0 0
        %1570 = vmatprep.subr.bf16.mxu0 0
        %1571 = vmatpush1.bf16.msra.mxu0 0
        %1572 = vmatprep.subr.bf16.mxu0 0
        %1573 = vmatpush1.bf16.msra.mxu0 0
        %1574 = vmatprep.subr.bf16.mxu0 0
        %1575 = vmatpush1.bf16.msra.mxu0 0
        %1576 = vmatprep.subr.bf16.mxu0 0
        %1577 = vmatpush1.bf16.msra.mxu0 0
        %1578 = vmatprep.subr.bf16.mxu0 0
        %1579 = vmatpush1.bf16.msra.mxu0 0
        %1580 = vmatprep.mubr.bf16.mxu0 0
        %1581 = vmatmul.mubr.bf16.gmra.mrb[0].mxu0 %v1279
        %v1582 = vpop.f32.mrb[0].mxu0
        %v1583 = vadd.f32 %v1326, %v1582
        %v1584 = vpop.f32.mrb[0].mxu0
        %v1585 = vadd.f32 %v1330, %v1584
        %v1586 = vpop.f32.mrb[0].mxu0
        %v1587 = vadd.f32 %v1326, %v1586
        %v1588 = vpop.f32.mrb[0].mxu0
        %v1589 = vadd.f32 %v1330, %v1588
        %1590 = vmatprep.mubr.bf16.mxu0 0
        %1591 = vmatmul.mubr.bf16.gmra.mrb[0].mxu0 %v1280
        %v1592 = vpop.f32.mrb[0].mxu0
        %v1593 = vadd.f32 %v1326, %v1592
        %v1594 = vpop.f32.mrb[0].mxu0
        %v1595 = vadd.f32 %v1330, %v1594
        %v1596 = vpop.f32.mrb[0].mxu0
        %v1597 = vadd.f32 %v1326, %v1596
        %v1598 = vpop.f32.mrb[0].mxu0
        %v1599 = vadd.f32 %v1330, %v1598
        %1600 = vdwg.mxu0
        %1601 = vst [vmem:[#allocation7] sm:$0xff] %v1530
        %1602 = vst [vmem:[#allocation7 + $0x8] sm:$0xff] %v1532
        %1603 = vst [vmem:[#allocation7 + $0x10] sm:$0xff] %v1583
        %1604 = vst [vmem:[#allocation7 + $0x18] sm:$0xff] %v1585
        %1605 = vst [vmem:[#allocation7 + $0x20] sm:$0xff] %v1534
        %1606 = vst [vmem:[#allocation7 + $0x28] sm:$0xff] %v1536
        %1607 = vst [vmem:[#allocation7 + $0x30] sm:$0xff] %v1587
        %1608 = vst [vmem:[#allocation7 + $0x38] sm:$0xff] %v1589
        %1609 = vst [vmem:[#allocation7 + $0x40] sm:$0xff] %v1540
        %1610 = vst [vmem:[#allocation7 + $0x48] sm:$0xff] %v1542
        %1611 = vst [vmem:[#allocation7 + $0x50] sm:$0xff] %v1593
        %1612 = vst [vmem:[#allocation7 + $0x58] sm:$0xff] %v1595
        %1613 = vst [vmem:[#allocation7 + $0x60] sm:$0xff] %v1544
        %1614 = vst [vmem:[#allocation7 + $0x68] sm:$0xff] %v1546
        %1615 = vst [vmem:[#allocation7 + $0x70] sm:$0xff] %v1597
        %1616 = vst [vmem:[#allocation7 + $0x78] sm:$0xff] %v1599
        %v1617 = vld [vmem:[#allocation16] sm:$0xff]
        %v1618 = vld [vmem:[#allocation16 + $0x8] sm:$0xff]
        %v1619 = vld [vmem:[#allocation16 + $0x10] sm:$0xff]
        %v1620 = vld [vmem:[#allocation16 + $0x18] sm:$0xff]
        %v1621 = vld [vmem:[#allocation16 + $0x20] sm:$0xff]
        %v1622 = vld [vmem:[#allocation16 + $0x28] sm:$0xff]
        %v1623 = vld [vmem:[#allocation16 + $0x30] sm:$0xff]
        %v1624 = vld [vmem:[#allocation16 + $0x38] sm:$0xff]
        %v1625 = vld [vmem:[#allocation16 + $0x40] sm:$0xff]
        %v1626 = vld [vmem:[#allocation16 + $0x48] sm:$0xff]
        %v1627 = vld [vmem:[#allocation16 + $0x50] sm:$0xff]
        %v1628 = vld [vmem:[#allocation16 + $0x58] sm:$0xff]
        %v1629 = vld [vmem:[#allocation16 + $0x60] sm:$0xff]
        %v1630 = vld [vmem:[#allocation16 + $0x68] sm:$0xff]
        %v1631 = vld [vmem:[#allocation16 + $0x70] sm:$0xff]
        %v1632 = vld [vmem:[#allocation16 + $0x78] sm:$0xff]
        %v1633 = vld [vmem:[#allocation16 + $0x80] sm:$0xff]
        %v1634 = vld [vmem:[#allocation16 + $0x88] sm:$0xff]
        %v1635 = vld [vmem:[#allocation16 + $0x90] sm:$0xff]
        %v1636 = vld [vmem:[#allocation16 + $0x98] sm:$0xff]
        %v1637 = vld [vmem:[#allocation16 + $0xa0] sm:$0xff]
        %v1638 = vld [vmem:[#allocation16 + $0xa8] sm:$0xff]
        %v1639 = vld [vmem:[#allocation16 + $0xb0] sm:$0xff]
        %v1640 = vld [vmem:[#allocation16 + $0xb8] sm:$0xff]
        %v1641 = vld [vmem:[#allocation16 + $0xc0] sm:$0xff]
        %v1642 = vld [vmem:[#allocation16 + $0xc8] sm:$0xff]
        %v1643 = vld [vmem:[#allocation16 + $0xd0] sm:$0xff]
        %v1644 = vld [vmem:[#allocation16 + $0xd8] sm:$0xff]
        %v1645 = vld [vmem:[#allocation16 + $0xe0] sm:$0xff]
        %v1646 = vld [vmem:[#allocation16 + $0xe8] sm:$0xff]
        %v1647 = vld [vmem:[#allocation16 + $0xf0] sm:$0xff]
        %v1648 = vld [vmem:[#allocation16 + $0xf8] sm:$0xff]
        %v1649 = vld [vmem:[#allocation3] sm:$0xff]
        %v1650 = vld [vmem:[#allocation5] sm:$0xff]
        %v1651 = vld [vmem:[#allocation7] sm:$0xff]
        %v1652 = vld [vmem:[#allocation7 + $0x8] sm:$0xff]
        %v1653 = vld [vmem:[#allocation7 + $0x10] sm:$0xff]
        %v1654 = vld [vmem:[#allocation7 + $0x18] sm:$0xff]
        %v1655 = vpack.c.bf16 %v1649, %v1649
        %v1688 = vunpack.c.l.b16 %v1617
        %v1689 = vunpack.c.h.b16 %v1617
        %v1690 = vunpack.c.l.b16 %v1618
        %v1691 = vunpack.c.h.b16 %v1618
        %v1692 = vunpack.c.l.b16 %v1619
        %v1693 = vunpack.c.h.b16 %v1619
        %v1694 = vunpack.c.l.b16 %v1620
        %v1695 = vunpack.c.h.b16 %v1620
        %v1696 = vunpack.c.l.b16 %v1621
        %v1697 = vunpack.c.h.b16 %v1621
        %v1698 = vunpack.c.l.b16 %v1622
        %v1699 = vunpack.c.h.b16 %v1622
        %v1700 = vunpack.c.l.b16 %v1623
        %v1701 = vunpack.c.h.b16 %v1623
        %v1702 = vunpack.c.l.b16 %v1624
        %v1703 = vunpack.c.h.b16 %v1624
        %v1704 = vunpack.c.l.b16 %v1625
        %v1705 = vunpack.c.h.b16 %v1625
        %v1706 = vunpack.c.l.b16 %v1626
        %v1707 = vunpack.c.h.b16 %v1626
        %v1708 = vunpack.c.l.b16 %v1627
        %v1709 = vunpack.c.h.b16 %v1627
        %v1710 = vunpack.c.l.b16 %v1628
        %v1711 = vunpack.c.h.b16 %v1628
        %v1712 = vunpack.c.l.b16 %v1629
        %v1713 = vunpack.c.h.b16 %v1629
        %v1714 = vunpack.c.l.b16 %v1630
        %v1715 = vunpack.c.h.b16 %v1630
        %v1716 = vunpack.c.l.b16 %v1631
        %v1717 = vunpack.c.h.b16 %v1631
        %v1718 = vunpack.c.l.b16 %v1632
        %v1719 = vunpack.c.h.b16 %v1632
        %v1720 = vunpack.c.l.b16 %v1633
        %v1721 = vunpack.c.h.b16 %v1633
        %v1722 = vunpack.c.l.b16 %v1634
        %v1723 = vunpack.c.h.b16 %v1634
        %v1724 = vunpack.c.l.b16 %v1635
        %v1725 = vunpack.c.h.b16 %v1635
        %v1726 = vunpack.c.l.b16 %v1636
        %v1727 = vunpack.c.h.b16 %v1636
        %v1728 = vunpack.c.l.b16 %v1637
        %v1729 = vunpack.c.h.b16 %v1637
        %v1730 = vunpack.c.l.b16 %v1638
        %v1731 = vunpack.c.h.b16 %v1638
        %v1732 = vunpack.c.l.b16 %v1639
        %v1733 = vunpack.c.h.b16 %v1639
        %v1734 = vunpack.c.l.b16 %v1640
        %v1735 = vunpack.c.h.b16 %v1640
        %v1736 = vunpack.c.l.b16 %v1641
        %v1737 = vunpack.c.h.b16 %v1641
        %v1738 = vunpack.c.l.b16 %v1642
        %v1739 = vunpack.c.h.b16 %v1642
        %v1740 = vunpack.c.l.b16 %v1643
        %v1741 = vunpack.c.h.b16 %v1643
        %v1742 = vunpack.c.l.b16 %v1644
        %v1743 = vunpack.c.h.b16 %v1644
        %v1744 = vunpack.c.l.b16 %v1645
        %v1745 = vunpack.c.h.b16 %v1645
        %v1746 = vunpack.c.l.b16 %v1646
        %v1747 = vunpack.c.h.b16 %v1646
        %v1748 = vunpack.c.l.b16 %v1647
        %v1749 = vunpack.c.h.b16 %v1647
        %v1750 = vunpack.c.l.b16 %v1648
        %v1751 = vunpack.c.h.b16 %v1648
        %v1752 = vpack.c.b16 %v1692, %v1688
        %v1753 = vpack.c.b16 %v1693, %v1689
        %v1754 = vpack.c.b16 %v1694, %v1690
        %v1755 = vpack.c.b16 %v1695, %v1691
        %v1756 = vpack.c.b16 %v1700, %v1696
        %v1757 = vpack.c.b16 %v1701, %v1697
        %v1758 = vpack.c.b16 %v1702, %v1698
        %v1759 = vpack.c.b16 %v1703, %v1699
        %v1760 = vpack.c.b16 %v1708, %v1704
        %v1761 = vpack.c.b16 %v1709, %v1705
        %v1762 = vpack.c.b16 %v1710, %v1706
        %v1763 = vpack.c.b16 %v1711, %v1707
        %v1764 = vpack.c.b16 %v1716, %v1712
        %v1765 = vpack.c.b16 %v1717, %v1713
        %v1766 = vpack.c.b16 %v1718, %v1714
        %v1767 = vpack.c.b16 %v1719, %v1715
        %v1768 = vpack.c.b16 %v1724, %v1720
        %v1769 = vpack.c.b16 %v1725, %v1721
        %v1770 = vpack.c.b16 %v1726, %v1722
        %v1771 = vpack.c.b16 %v1727, %v1723
        %v1772 = vpack.c.b16 %v1732, %v1728
        %v1773 = vpack.c.b16 %v1733, %v1729
        %v1774 = vpack.c.b16 %v1734, %v1730
        %v1775 = vpack.c.b16 %v1735, %v1731
        %v1776 = vpack.c.b16 %v1740, %v1736
        %v1777 = vpack.c.b16 %v1741, %v1737
        %v1778 = vpack.c.b16 %v1742, %v1738
        %v1779 = vpack.c.b16 %v1743, %v1739
        %v1780 = vpack.c.b16 %v1748, %v1744
        %v1781 = vpack.c.b16 %v1749, %v1745
        %v1782 = vpack.c.b16 %v1750, %v1746
        %v1783 = vpack.c.b16 %v1751, %v1747
        %1816 = vmatprep.subr.bf16.mxu0 %v1753
        %1817 = vmatpush1.bf16.msra.mxu0 %v1752
        %1818 = vmatprep.subr.bf16.mxu0 %v1757
        %1819 = vmatpush1.bf16.msra.mxu0 %v1756
        %1820 = vmatprep.subr.bf16.mxu0 %v1761
        %1821 = vmatpush1.bf16.msra.mxu0 %v1760
        %1822 = vmatprep.subr.bf16.mxu0 %v1765
        %1823 = vmatpush1.bf16.msra.mxu0 %v1764
        %1824 = vmatprep.subr.bf16.mxu0 %v1769
        %1825 = vmatpush1.bf16.msra.mxu0 %v1768
        %1826 = vmatprep.subr.bf16.mxu0 %v1773
        %1827 = vmatpush1.bf16.msra.mxu0 %v1772
        %1828 = vmatprep.subr.bf16.mxu0 %v1777
        %1829 = vmatpush1.bf16.msra.mxu0 %v1776
        %1830 = vmatprep.subr.bf16.mxu0 %v1781
        %1831 = vmatpush1.bf16.msra.mxu0 %v1780
        %1832 = vmatprep.subr.bf16.mxu0 0
        %1833 = vmatpush1.bf16.msra.mxu0 0
        %1834 = vmatprep.subr.bf16.mxu0 0
        %1835 = vmatpush1.bf16.msra.mxu0 0
        %1836 = vmatprep.subr.bf16.mxu0 0
        %1837 = vmatpush1.bf16.msra.mxu0 0
        %1838 = vmatprep.subr.bf16.mxu0 0
        %1839 = vmatpush1.bf16.msra.mxu0 0
        %1840 = vmatprep.subr.bf16.mxu0 0
        %1841 = vmatpush1.bf16.msra.mxu0 0
        %1842 = vmatprep.subr.bf16.mxu0 0
        %1843 = vmatpush1.bf16.msra.mxu0 0
        %1844 = vmatprep.subr.bf16.mxu0 0
        %1845 = vmatpush1.bf16.msra.mxu0 0
        %1846 = vmatprep.subr.bf16.mxu0 0
        %1847 = vmatpush1.bf16.msra.mxu0 0
        %1848 = vmatprep.mubr.bf16.mxu0 0
        %1849 = vmatmul.mubr.bf16.gmra.mrb[0].mxu0 %v1655
        %v1850 = vpop.f32.mrb[0].mxu0
        %v1851 = vadd.f32 0.0, %v1850
        %v1852 = vpop.f32.mrb[0].mxu0
        %v1853 = vadd.f32 0.0, %v1852
        %v1854 = vpop.f32.mrb[0].mxu0
        %v1855 = vpop.f32.mrb[0].mxu0
        %1856 = vdwg.mxu0
        %1857 = vmatprep.subr.bf16.mxu0 %v1755
        %1858 = vmatpush1.bf16.msra.mxu0 %v1754
        %1859 = vmatprep.subr.bf16.mxu0 %v1759
        %1860 = vmatpush1.bf16.msra.mxu0 %v1758
        %1861 = vmatprep.subr.bf16.mxu0 %v1763
        %1862 = vmatpush1.bf16.msra.mxu0 %v1762
        %1863 = vmatprep.subr.bf16.mxu0 %v1767
        %1864 = vmatpush1.bf16.msra.mxu0 %v1766
        %1865 = vmatprep.subr.bf16.mxu0 %v1771
        %1866 = vmatpush1.bf16.msra.mxu0 %v1770
        %1867 = vmatprep.subr.bf16.mxu0 %v1775
        %1868 = vmatpush1.bf16.msra.mxu0 %v1774
        %1869 = vmatprep.subr.bf16.mxu0 %v1779
        %1870 = vmatpush1.bf16.msra.mxu0 %v1778
        %1871 = vmatprep.subr.bf16.mxu0 %v1783
        %1872 = vmatpush1.bf16.msra.mxu0 %v1782
        %1873 = vmatprep.subr.bf16.mxu0 0
        %1874 = vmatpush1.bf16.msra.mxu0 0
        %1875 = vmatprep.subr.bf16.mxu0 0
        %1876 = vmatpush1.bf16.msra.mxu0 0
        %1877 = vmatprep.subr.bf16.mxu0 0
        %1878 = vmatpush1.bf16.msra.mxu0 0
        %1879 = vmatprep.subr.bf16.mxu0 0
        %1880 = vmatpush1.bf16.msra.mxu0 0
        %1881 = vmatprep.subr.bf16.mxu0 0
        %1882 = vmatpush1.bf16.msra.mxu0 0
        %1883 = vmatprep.subr.bf16.mxu0 0
        %1884 = vmatpush1.bf16.msra.mxu0 0
        %1885 = vmatprep.subr.bf16.mxu0 0
        %1886 = vmatpush1.bf16.msra.mxu0 0
        %1887 = vmatprep.subr.bf16.mxu0 0
        %1888 = vmatpush1.bf16.msra.mxu0 0
        %1889 = vmatprep.mubr.bf16.mxu0 0
        %1890 = vmatmul.mubr.bf16.gmra.mrb[0].mxu0 %v1655
        %v1891 = vpop.f32.mrb[0].mxu0
        %v1892 = vadd.f32 0.0, %v1891
        %v1893 = vpop.f32.mrb[0].mxu0
        %v1894 = vadd.f32 0.0, %v1893
        %v1895 = vpop.f32.mrb[0].mxu0
        %v1896 = vpop.f32.mrb[0].mxu0
        %1897 = vdwg.mxu0
        %v1898 = vadd.f32 %v1651, %v1851
        %v1899 = vadd.f32 %v1652, %v1853
        %v1900 = vadd.f32 %v1653, %v1892
        %v1901 = vadd.f32 %v1654, %v1894
        %v1902 = vxor.u32 %v1898, 2147483648
        %v1903 = vmul.f32 %v1902, 1.442695
        %v1904 = vpow.pop %v1903
        %v1905 = vadd.f32 %v1904, 1.0
        %v1906 = vrcp.pop %v1905
        %v1907 = vmul.f32 1.0, %v1906
        %v1908 = vxor.u32 %v1899, 2147483648
        %v1909 = vmul.f32 %v1908, 1.442695
        %v1910 = vpow.pop %v1909
        %v1911 = vadd.f32 %v1910, 1.0
        %v1912 = vrcp.pop %v1911
        %v1913 = vmul.f32 1.0, %v1912
        %v1914 = vtanh.pop %v1900
        %v1915 = vxor.u32 %v1901, 2147483648
        %v1916 = vmul.f32 %v1915, 1.442695
        %v1917 = vpow.pop %v1916
        %v1918 = vadd.f32 %v1917, 1.0
        %v1919 = vrcp.pop %v1918
        %v1920 = vmul.f32 1.0, %v1919
        %v1921 = vmul.f32 %v1913, %v1650
        %v1922 = vmul.f32 %v1907, %v1914
        %v1923 = vadd.f32 %v1921, %v1922
        %v1924 = vtanh.pop %v1923
        %v1925 = vmul.f32 %v1920, %v1924
        %1926 = vst [vmem:[#allocation5] sm:$0xff] %v1923
        %1927 = vst [vmem:[#allocation3] sm:$0xff] %v1925
        %v1928 = vld [vmem:[#allocation3] sm:$0xff]
        %v1929 = vld [vmem:[#allocation5] sm:$0xff]
        %v1930 = vld [vmem:[#allocation7 + $0x20] sm:$0xff]
        %v1931 = vld [vmem:[#allocation7 + $0x28] sm:$0xff]
        %v1932 = vld [vmem:[#allocation7 + $0x30] sm:$0xff]
        %v1933 = vld [vmem:[#allocation7 + $0x38] sm:$0xff]
        %v1934 = vpack.c.bf16 %v1928, %v1928
        %1935 = vmatprep.subr.bf16.mxu0 %v1753
        %1936 = vmatpush1.bf16.msra.mxu0 %v1752
        %1937 = vmatprep.subr.bf16.mxu0 %v1757
        %1938 = vmatpush1.bf16.msra.mxu0 %v1756
        %1939 = vmatprep.subr.bf16.mxu0 %v1761
        %1940 = vmatpush1.bf16.msra.mxu0 %v1760
        %1941 = vmatprep.subr.bf16.mxu0 %v1765
        %1942 = vmatpush1.bf16.msra.mxu0 %v1764
        %1943 = vmatprep.subr.bf16.mxu0 %v1769
        %1944 = vmatpush1.bf16.msra.mxu0 %v1768
        %1945 = vmatprep.subr.bf16.mxu0 %v1773
        %1946 = vmatpush1.bf16.msra.mxu0 %v1772
        %1947 = vmatprep.subr.bf16.mxu0 %v1777
        %1948 = vmatpush1.bf16.msra.mxu0 %v1776
        %1949 = vmatprep.subr.bf16.mxu0 %v1781
        %1950 = vmatpush1.bf16.msra.mxu0 %v1780
        %1951 = vmatprep.subr.bf16.mxu0 0
        %1952 = vmatpush1.bf16.msra.mxu0 0
        %1953 = vmatprep.subr.bf16.mxu0 0
        %1954 = vmatpush1.bf16.msra.mxu0 0
        %1955 = vmatprep.subr.bf16.mxu0 0
        %1956 = vmatpush1.bf16.msra.mxu0 0
        %1957 = vmatprep.subr.bf16.mxu0 0
        %1958 = vmatpush1.bf16.msra.mxu0 0
        %1959 = vmatprep.subr.bf16.mxu0 0
        %1960 = vmatpush1.bf16.msra.mxu0 0
        %1961 = vmatprep.subr.bf16.mxu0 0
        %1962 = vmatpush1.bf16.msra.mxu0 0
        %1963 = vmatprep.subr.bf16.mxu0 0
        %1964 = vmatpush1.bf16.msra.mxu0 0
        %1965 = vmatprep.subr.bf16.mxu0 0
        %1966 = vmatpush1.bf16.msra.mxu0 0
        %1967 = vmatprep.mubr.bf16.mxu0 0
        %1968 = vmatmul.mubr.bf16.gmra.mrb[0].mxu0 %v1934
        %v1969 = vpop.f32.mrb[0].mxu0
        %v1970 = vadd.f32 0.0, %v1969
        %v1971 = vpop.f32.mrb[0].mxu0
        %v1972 = vadd.f32 0.0, %v1971
        %v1973 = vpop.f32.mrb[0].mxu0
        %v1974 = vpop.f32.mrb[0].mxu0
        %1975 = vdwg.mxu0
        %1976 = vmatprep.subr.bf16.mxu0 %v1755
        %1977 = vmatpush1.bf16.msra.mxu0 %v1754
        %1978 = vmatprep.subr.bf16.mxu0 %v1759
        %1979 = vmatpush1.bf16.msra.mxu0 %v1758
        %1980 = vmatprep.subr.bf16.mxu0 %v1763
        %1981 = vmatpush1.bf16.msra.mxu0 %v1762
        %1982 = vmatprep.subr.bf16.mxu0 %v1767
        %1983 = vmatpush1.bf16.msra.mxu0 %v1766
        %1984 = vmatprep.subr.bf16.mxu0 %v1771
        %1985 = vmatpush1.bf16.msra.mxu0 %v1770
        %1986 = vmatprep.subr.bf16.mxu0 %v1775
        %1987 = vmatpush1.bf16.msra.mxu0 %v1774
        %1988 = vmatprep.subr.bf16.mxu0 %v1779
        %1989 = vmatpush1.bf16.msra.mxu0 %v1778
        %1990 = vmatprep.subr.bf16.mxu0 %v1783
        %1991 = vmatpush1.bf16.msra.mxu0 %v1782
        %1992 = vmatprep.subr.bf16.mxu0 0
        %1993 = vmatpush1.bf16.msra.mxu0 0
        %1994 = vmatprep.subr.bf16.mxu0 0
        %1995 = vmatpush1.bf16.msra.mxu0 0
        %1996 = vmatprep.subr.bf16.mxu0 0
        %1997 = vmatpush1.bf16.msra.mxu0 0
        %1998 = vmatprep.subr.bf16.mxu0 0
        %1999 = vmatpush1.bf16.msra.mxu0 0
        %2000 = vmatprep.subr.bf16.mxu0 0
        %2001 = vmatpush1.bf16.msra.mxu0 0
        %2002 = vmatprep.subr.bf16.mxu0 0
        %2003 = vmatpush1.bf16.msra.mxu0 0
        %2004 = vmatprep.subr.bf16.mxu0 0
        %2005 = vmatpush1.bf16.msra.mxu0 0
        %2006 = vmatprep.subr.bf16.mxu0 0
        %2007 = vmatpush1.bf16.msra.mxu0 0
        %2008 = vmatprep.mubr.bf16.mxu0 0
        %2009 = vmatmul.mubr.bf16.gmra.mrb[0].mxu0 %v1934
        %v2010 = vpop.f32.mrb[0].mxu0
        %v2011 = vadd.f32 0.0, %v2010
        %v2012 = vpop.f32.mrb[0].mxu0
        %v2013 = vadd.f32 0.0, %v2012
        %v2014 = vpop.f32.mrb[0].mxu0
        %v2015 = vpop.f32.mrb[0].mxu0
        %2016 = vdwg.mxu0
        %v2017 = vadd.f32 %v1930, %v1970
        %v2018 = vadd.f32 %v1931, %v1972
        %v2019 = vadd.f32 %v1932, %v2011
        %v2020 = vadd.f32 %v1933, %v2013
        %v2021 = vxor.u32 %v2017, 2147483648
        %v2022 = vmul.f32 %v2021, 1.442695
        %v2023 = vpow.pop %v2022
        %v2024 = vadd.f32 %v2023, 1.0
        %v2025 = vrcp.pop %v2024
        %v2026 = vmul.f32 1.0, %v2025
        %v2027 = vxor.u32 %v2018, 2147483648
        %v2028 = vmul.f32 %v2027, 1.442695
        %v2029 = vpow.pop %v2028
        %v2030 = vadd.f32 %v2029, 1.0
        %v2031 = vrcp.pop %v2030
        %v2032 = vmul.f32 1.0, %v2031
        %v2033 = vtanh.pop %v2019
        %v2034 = vxor.u32 %v2020, 2147483648
        %v2035 = vmul.f32 %v2034, 1.442695
        %v2036 = vpow.pop %v2035
        %v2037 = vadd.f32 %v2036, 1.0
        %v2038 = vrcp.pop %v2037
        %v2039 = vmul.f32 1.0, %v2038
        %v2040 = vmul.f32 %v2032, %v1929
        %v2041 = vmul.f32 %v2026, %v2033
        %v2042 = vadd.f32 %v2040, %v2041
        %v2043 = vtanh.pop %v2042
        %v2044 = vmul.f32 %v2039, %v2043
        %2045 = vst [vmem:[#allocation5] sm:$0xff] %v2042
        %2046 = vst [vmem:[#allocation3] sm:$0xff] %v2044
        %v2047 = vld [vmem:[#allocation3] sm:$0xff]
        %v2048 = vld [vmem:[#allocation5] sm:$0xff]
        %v2049 = vld [vmem:[#allocation7 + $0x40] sm:$0xff]
        %v2050 = vld [vmem:[#allocation7 + $0x48] sm:$0xff]
        %v2051 = vld [vmem:[#allocation7 + $0x50] sm:$0xff]
        %v2052 = vld [vmem:[#allocation7 + $0x58] sm:$0xff]
        %v2053 = vpack.c.bf16 %v2047, %v2047
        %2054 = vmatprep.subr.bf16.mxu0 %v1753
        %2055 = vmatpush1.bf16.msra.mxu0 %v1752
        %2056 = vmatprep.subr.bf16.mxu0 %v1757
        %2057 = vmatpush1.bf16.msra.mxu0 %v1756
        %2058 = vmatprep.subr.bf16.mxu0 %v1761
        %2059 = vmatpush1.bf16.msra.mxu0 %v1760
        %2060 = vmatprep.subr.bf16.mxu0 %v1765
        %2061 = vmatpush1.bf16.msra.mxu0 %v1764
        %2062 = vmatprep.subr.bf16.mxu0 %v1769
        %2063 = vmatpush1.bf16.msra.mxu0 %v1768
        %2064 = vmatprep.subr.bf16.mxu0 %v1773
        %2065 = vmatpush1.bf16.msra.mxu0 %v1772
        %2066 = vmatprep.subr.bf16.mxu0 %v1777
        %2067 = vmatpush1.bf16.msra.mxu0 %v1776
        %2068 = vmatprep.subr.bf16.mxu0 %v1781
        %2069 = vmatpush1.bf16.msra.mxu0 %v1780
        %2070 = vmatprep.subr.bf16.mxu0 0
        %2071 = vmatpush1.bf16.msra.mxu0 0
        %2072 = vmatprep.subr.bf16.mxu0 0
        %2073 = vmatpush1.bf16.msra.mxu0 0
        %2074 = vmatprep.subr.bf16.mxu0 0
        %2075 = vmatpush1.bf16.msra.mxu0 0
        %2076 = vmatprep.subr.bf16.mxu0 0
        %2077 = vmatpush1.bf16.msra.mxu0 0
        %2078 = vmatprep.subr.bf16.mxu0 0
        %2079 = vmatpush1.bf16.msra.mxu0 0
        %2080 = vmatprep.subr.bf16.mxu0 0
        %2081 = vmatpush1.bf16.msra.mxu0 0
        %2082 = vmatprep.subr.bf16.mxu0 0
        %2083 = vmatpush1.bf16.msra.mxu0 0
        %2084 = vmatprep.subr.bf16.mxu0 0
        %2085 = vmatpush1.bf16.msra.mxu0 0
        %2086 = vmatprep.mubr.bf16.mxu0 0
        %2087 = vmatmul.mubr.bf16.gmra.mrb[0].mxu0 %v2053
        %v2088 = vpop.f32.mrb[0].mxu0
        %v2089 = vadd.f32 0.0, %v2088
        %v2090 = vpop.f32.mrb[0].mxu0
        %v2091 = vadd.f32 0.0, %v2090
        %v2092 = vpop.f32.mrb[0].mxu0
        %v2093 = vpop.f32.mrb[0].mxu0
        %2094 = vdwg.mxu0
        %2095 = vmatprep.subr.bf16.mxu0 %v1755
        %2096 = vmatpush1.bf16.msra.mxu0 %v1754
        %2097 = vmatprep.subr.bf16.mxu0 %v1759
        %2098 = vmatpush1.bf16.msra.mxu0 %v1758
        %2099 = vmatprep.subr.bf16.mxu0 %v1763
        %2100 = vmatpush1.bf16.msra.mxu0 %v1762
        %2101 = vmatprep.subr.bf16.mxu0 %v1767
        %2102 = vmatpush1.bf16.msra.mxu0 %v1766
        %2103 = vmatprep.subr.bf16.mxu0 %v1771
        %2104 = vmatpush1.bf16.msra.mxu0 %v1770
        %2105 = vmatprep.subr.bf16.mxu0 %v1775
        %2106 = vmatpush1.bf16.msra.mxu0 %v1774
        %2107 = vmatprep.subr.bf16.mxu0 %v1779
        %2108 = vmatpush1.bf16.msra.mxu0 %v1778
        %2109 = vmatprep.subr.bf16.mxu0 %v1783
        %2110 = vmatpush1.bf16.msra.mxu0 %v1782
        %2111 = vmatprep.subr.bf16.mxu0 0
        %2112 = vmatpush1.bf16.msra.mxu0 0
        %2113 = vmatprep.subr.bf16.mxu0 0
        %2114 = vmatpush1.bf16.msra.mxu0 0
        %2115 = vmatprep.subr.bf16.mxu0 0
        %2116 = vmatpush1.bf16.msra.mxu0 0
        %2117 = vmatprep.subr.bf16.mxu0 0
        %2118 = vmatpush1.bf16.msra.mxu0 0
        %2119 = vmatprep.subr.bf16.mxu0 0
        %2120 = vmatpush1.bf16.msra.mxu0 0
        %2121 = vmatprep.subr.bf16.mxu0 0
        %2122 = vmatpush1.bf16.msra.mxu0 0
        %2123 = vmatprep.subr.bf16.mxu0 0
        %2124 = vmatpush1.bf16.msra.mxu0 0
        %2125 = vmatprep.subr.bf16.mxu0 0
        %2126 = vmatpush1.bf16.msra.mxu0 0
        %2127 = vmatprep.mubr.bf16.mxu0 0
        %2128 = vmatmul.mubr.bf16.gmra.mrb[0].mxu0 %v2053
        %v2129 = vpop.f32.mrb[0].mxu0
        %v2130 = vadd.f32 0.0, %v2129
        %v2131 = vpop.f32.mrb[0].mxu0
        %v2132 = vadd.f32 0.0, %v2131
        %v2133 = vpop.f32.mrb[0].mxu0
        %v2134 = vpop.f32.mrb[0].mxu0
        %2135 = vdwg.mxu0
        %v2136 = vadd.f32 %v2049, %v2089
        %v2137 = vadd.f32 %v2050, %v2091
        %v2138 = vadd.f32 %v2051, %v2130
        %v2139 = vadd.f32 %v2052, %v2132
        %v2140 = vxor.u32 %v2136, 2147483648
        %v2141 = vmul.f32 %v2140, 1.442695
        %v2142 = vpow.pop %v2141
        %v2143 = vadd.f32 %v2142, 1.0
        %v2144 = vrcp.pop %v2143
        %v2145 = vmul.f32 1.0, %v2144
        %v2146 = vxor.u32 %v2137, 2147483648
        %v2147 = vmul.f32 %v2146, 1.442695
        %v2148 = vpow.pop %v2147
        %v2149 = vadd.f32 %v2148, 1.0
        %v2150 = vrcp.pop %v2149
        %v2151 = vmul.f32 1.0, %v2150
        %v2152 = vtanh.pop %v2138
        %v2153 = vxor.u32 %v2139, 2147483648
        %v2154 = vmul.f32 %v2153, 1.442695
        %v2155 = vpow.pop %v2154
        %v2156 = vadd.f32 %v2155, 1.0
        %v2157 = vrcp.pop %v2156
        %v2158 = vmul.f32 1.0, %v2157
        %v2159 = vmul.f32 %v2151, %v2048
        %v2160 = vmul.f32 %v2145, %v2152
        %v2161 = vadd.f32 %v2159, %v2160
        %v2162 = vtanh.pop %v2161
        %v2163 = vmul.f32 %v2158, %v2162
        %2164 = vst [vmem:[#allocation5] sm:$0xff] %v2161
        %2165 = vst [vmem:[#allocation3] sm:$0xff] %v2163
        %v2166 = vld [vmem:[#allocation3] sm:$0xff]
        %v2167 = vld [vmem:[#allocation5] sm:$0xff]
        %v2168 = vld [vmem:[#allocation7 + $0x60] sm:$0xff]
        %v2169 = vld [vmem:[#allocation7 + $0x68] sm:$0xff]
        %v2170 = vld [vmem:[#allocation7 + $0x70] sm:$0xff]
        %v2171 = vld [vmem:[#allocation7 + $0x78] sm:$0xff]
        %v2172 = vpack.c.bf16 %v2166, %v2166
        %2173 = vmatprep.subr.bf16.mxu0 %v1753
        %2174 = vmatpush1.bf16.msra.mxu0 %v1752
        %2175 = vmatprep.subr.bf16.mxu0 %v1757
        %2176 = vmatpush1.bf16.msra.mxu0 %v1756
        %2177 = vmatprep.subr.bf16.mxu0 %v1761
        %2178 = vmatpush1.bf16.msra.mxu0 %v1760
        %2179 = vmatprep.subr.bf16.mxu0 %v1765
        %2180 = vmatpush1.bf16.msra.mxu0 %v1764
        %2181 = vmatprep.subr.bf16.mxu0 %v1769
        %2182 = vmatpush1.bf16.msra.mxu0 %v1768
        %2183 = vmatprep.subr.bf16.mxu0 %v1773
        %2184 = vmatpush1.bf16.msra.mxu0 %v1772
        %2185 = vmatprep.subr.bf16.mxu0 %v1777
        %2186 = vmatpush1.bf16.msra.mxu0 %v1776
        %2187 = vmatprep.subr.bf16.mxu0 %v1781
        %2188 = vmatpush1.bf16.msra.mxu0 %v1780
        %2189 = vmatprep.subr.bf16.mxu0 0
        %2190 = vmatpush1.bf16.msra.mxu0 0
        %2191 = vmatprep.subr.bf16.mxu0 0
        %2192 = vmatpush1.bf16.msra.mxu0 0
        %2193 = vmatprep.subr.bf16.mxu0 0
        %2194 = vmatpush1.bf16.msra.mxu0 0
        %2195 = vmatprep.subr.bf16.mxu0 0
        %2196 = vmatpush1.bf16.msra.mxu0 0
        %2197 = vmatprep.subr.bf16.mxu0 0
        %2198 = vmatpush1.bf16.msra.mxu0 0
        %2199 = vmatprep.subr.bf16.mxu0 0
        %2200 = vmatpush1.bf16.msra.mxu0 0
        %2201 = vmatprep.subr.bf16.mxu0 0
        %2202 = vmatpush1.bf16.msra.mxu0 0
        %2203 = vmatprep.subr.bf16.mxu0 0
        %2204 = vmatpush1.bf16.msra.mxu0 0
        %2205 = vmatprep.mubr.bf16.mxu0 0
        %2206 = vmatmul.mubr.bf16.gmra.mrb[0].mxu0 %v2172
        %v2207 = vpop.f32.mrb[0].mxu0
        %v2208 = vadd.f32 0.0, %v2207
        %v2209 = vpop.f32.mrb[0].mxu0
        %v2210 = vadd.f32 0.0, %v2209
        %v2211 = vpop.f32.mrb[0].mxu0
        %v2212 = vpop.f32.mrb[0].mxu0
        %2213 = vdwg.mxu0
        %2214 = vmatprep.subr.bf16.mxu0 %v1755
        %2215 = vmatpush1.bf16.msra.mxu0 %v1754
        %2216 = vmatprep.subr.bf16.mxu0 %v1759
        %2217 = vmatpush1.bf16.msra.mxu0 %v1758
        %2218 = vmatprep.subr.bf16.mxu0 %v1763
        %2219 = vmatpush1.bf16.msra.mxu0 %v1762
        %2220 = vmatprep.subr.bf16.mxu0 %v1767
        %2221 = vmatpush1.bf16.msra.mxu0 %v1766
        %2222 = vmatprep.subr.bf16.mxu0 %v1771
        %2223 = vmatpush1.bf16.msra.mxu0 %v1770
        %2224 = vmatprep.subr.bf16.mxu0 %v1775
        %2225 = vmatpush1.bf16.msra.mxu0 %v1774
        %2226 = vmatprep.subr.bf16.mxu0 %v1779
        %2227 = vmatpush1.bf16.msra.mxu0 %v1778
        %2228 = vmatprep.subr.bf16.mxu0 %v1783
        %2229 = vmatpush1.bf16.msra.mxu0 %v1782
        %2230 = vmatprep.subr.bf16.mxu0 0
        %2231 = vmatpush1.bf16.msra.mxu0 0
        %2232 = vmatprep.subr.bf16.mxu0 0
        %2233 = vmatpush1.bf16.msra.mxu0 0
        %2234 = vmatprep.subr.bf16.mxu0 0
        %2235 = vmatpush1.bf16.msra.mxu0 0
        %2236 = vmatprep.subr.bf16.mxu0 0
        %2237 = vmatpush1.bf16.msra.mxu0 0
        %2238 = vmatprep.subr.bf16.mxu0 0
        %2239 = vmatpush1.bf16.msra.mxu0 0
        %2240 = vmatprep.subr.bf16.mxu0 0
        %2241 = vmatpush1.bf16.msra.mxu0 0
        %2242 = vmatprep.subr.bf16.mxu0 0
        %2243 = vmatpush1.bf16.msra.mxu0 0
        %2244 = vmatprep.subr.bf16.mxu0 0
        %2245 = vmatpush1.bf16.msra.mxu0 0
        %2246 = vmatprep.mubr.bf16.mxu0 0
        %2247 = vmatmul.mubr.bf16.gmra.mrb[0].mxu0 %v2172
        %v2248 = vpop.f32.mrb[0].mxu0
        %v2249 = vadd.f32 0.0, %v2248
        %v2250 = vpop.f32.mrb[0].mxu0
        %v2251 = vadd.f32 0.0, %v2250
        %v2252 = vpop.f32.mrb[0].mxu0
        %v2253 = vpop.f32.mrb[0].mxu0
        %2254 = vdwg.mxu0
        %v2255 = vadd.f32 %v2168, %v2208
        %v2256 = vadd.f32 %v2169, %v2210
        %v2257 = vadd.f32 %v2170, %v2249
        %v2258 = vadd.f32 %v2171, %v2251
        %v2259 = vxor.u32 %v2255, 2147483648
        %v2260 = vmul.f32 %v2259, 1.442695
        %v2261 = vpow.pop %v2260
        %v2262 = vadd.f32 %v2261, 1.0
        %v2263 = vrcp.pop %v2262
        %v2264 = vmul.f32 1.0, %v2263
        %v2265 = vxor.u32 %v2256, 2147483648
        %v2266 = vmul.f32 %v2265, 1.442695
        %v2267 = vpow.pop %v2266
        %v2268 = vadd.f32 %v2267, 1.0
        %v2269 = vrcp.pop %v2268
        %v2270 = vmul.f32 1.0, %v2269
        %v2271 = vtanh.pop %v2257
        %v2272 = vxor.u32 %v2258, 2147483648
        %v2273 = vmul.f32 %v2272, 1.442695
        %v2274 = vpow.pop %v2273
        %v2275 = vadd.f32 %v2274, 1.0
        %v2276 = vrcp.pop %v2275
        %v2277 = vmul.f32 1.0, %v2276
        %v2278 = vmul.f32 %v2270, %v2167
        %v2279 = vmul.f32 %v2264, %v2271
        %v2280 = vadd.f32 %v2278, %v2279
        %v2281 = vtanh.pop %v2280
        %v2282 = vmul.f32 %v2277, %v2281
        %2283 = vst [vmem:[#allocation5] sm:$0xff] %v2280
        %2284 = vst [vmem:[#allocation3] sm:$0xff] %v2282
        %p2285 = scmp.eq.s32.totalorder %s25, 1
        // Predicated region
        $region85: #{tpu_custom_call.1} parent=55 // pred_check
          %p2286 = pneg %p2285
        $region86: #{tpu_custom_call.1} parent=55 // pred_check_branch
          %2288 = sbr.rel (%p2286) target = $region88
        $region87: #{tpu_custom_call.1} parent=55 // pred_region
          %v2289 = vld [vmem:[#allocation3] sm:$0xff]
          %v2290 = vpack.c.bf16 %v2289, %v2289
          %v2291 = vld [vmem:[%s7] sm:$0xf]
          %v2292 = vld [vmem:[%s7 + $0x4] sm:$0xf]
          %v2293 = vld [vmem:[%s7 + $0x8] sm:$0xf]
          %v2294 = vld [vmem:[%s7 + $0xc] sm:$0xf]
          %v2295 = vld [vmem:[%s7 + $0x10] sm:$0xf]
          %v2296 = vld [vmem:[%s7 + $0x14] sm:$0xf]
          %v2297 = vld [vmem:[%s7 + $0x18] sm:$0xf]
          %v2298 = vld [vmem:[%s7 + $0x1c] sm:$0xf]
          %v2299 = vld [vmem:[%s7 + $0x20] sm:$0xf]
          %v2300 = vld [vmem:[%s7 + $0x24] sm:$0xf]
          %v2301 = vld [vmem:[%s7 + $0x28] sm:$0xf]
          %v2302 = vld [vmem:[%s7 + $0x2c] sm:$0xf]
          %v2303 = vld [vmem:[%s7 + $0x30] sm:$0xf]
          %v2304 = vld [vmem:[%s7 + $0x34] sm:$0xf]
          %v2305 = vld [vmem:[%s7 + $0x38] sm:$0xf]
          %v2306 = vld [vmem:[%s7 + $0x3c] sm:$0xf]
          %v2307 = vld [vmem:[%s8] sm:$0x1]
          %v2309 = vlaneseq
          %v2310 = vshrl.u32 %v2309, 7
          %v2311 = vsub.s32 0, %v2310
          %v2312 = vrot.slane %v2307, %v2311
          %v2330 = vunpack.c.l.b16 %v2291
          %v2331 = vunpack.c.l.b16 %v2292
          %v2332 = vunpack.c.l.b16 %v2293
          %v2333 = vunpack.c.l.b16 %v2294
          %v2334 = vunpack.c.l.b16 %v2295
          %v2335 = vunpack.c.l.b16 %v2296
          %v2336 = vunpack.c.l.b16 %v2297
          %v2337 = vunpack.c.l.b16 %v2298
          %v2338 = vunpack.c.l.b16 %v2299
          %v2339 = vunpack.c.l.b16 %v2300
          %v2340 = vunpack.c.l.b16 %v2301
          %v2341 = vunpack.c.l.b16 %v2302
          %v2342 = vunpack.c.l.b16 %v2303
          %v2343 = vunpack.c.l.b16 %v2304
          %v2344 = vunpack.c.l.b16 %v2305
          %v2345 = vunpack.c.l.b16 %v2306
          %v2346 = vpack.c.b16 %v2331, %v2330
          %v2347 = vpack.c.b16 %v2333, %v2332
          %v2348 = vpack.c.b16 %v2335, %v2334
          %v2349 = vpack.c.b16 %v2337, %v2336
          %v2350 = vpack.c.b16 %v2339, %v2338
          %v2351 = vpack.c.b16 %v2341, %v2340
          %v2352 = vpack.c.b16 %v2343, %v2342
          %v2353 = vpack.c.b16 %v2345, %v2344
          %2362 = vmatprep.subr.bf16.mxu0 0
          %2363 = vmatpush1.bf16.msra.mxu0 %v2346
          %2364 = vmatprep.subr.bf16.mxu0 0
          %2365 = vmatpush1.bf16.msra.mxu0 %v2347
          %2366 = vmatprep.subr.bf16.mxu0 0
          %2367 = vmatpush1.bf16.msra.mxu0 %v2348
          %2368 = vmatprep.subr.bf16.mxu0 0
          %2369 = vmatpush1.bf16.msra.mxu0 %v2349
          %2370 = vmatprep.subr.bf16.mxu0 0
          %2371 = vmatpush1.bf16.msra.mxu0 %v2350
          %2372 = vmatprep.subr.bf16.mxu0 0
          %2373 = vmatpush1.bf16.msra.mxu0 %v2351
          %2374 = vmatprep.subr.bf16.mxu0 0
          %2375 = vmatpush1.bf16.msra.mxu0 %v2352
          %2376 = vmatprep.subr.bf16.mxu0 0
          %2377 = vmatpush1.bf16.msra.mxu0 %v2353
          %2378 = vmatprep.subr.bf16.mxu0 0
          %2379 = vmatpush1.bf16.msra.mxu0 0
          %2380 = vmatprep.subr.bf16.mxu0 0
          %2381 = vmatpush1.bf16.msra.mxu0 0
          %2382 = vmatprep.subr.bf16.mxu0 0
          %2383 = vmatpush1.bf16.msra.mxu0 0
          %2384 = vmatprep.subr.bf16.mxu0 0
          %2385 = vmatpush1.bf16.msra.mxu0 0
          %2386 = vmatprep.subr.bf16.mxu0 0
          %2387 = vmatpush1.bf16.msra.mxu0 0
          %2388 = vmatprep.subr.bf16.mxu0 0
          %2389 = vmatpush1.bf16.msra.mxu0 0
          %2390 = vmatprep.subr.bf16.mxu0 0
          %2391 = vmatpush1.bf16.msra.mxu0 0
          %2392 = vmatprep.subr.bf16.mxu0 0
          %2393 = vmatpush1.bf16.msra.mxu0 0
          %2394 = vmatprep.mubr.bf16.mxu0 0
          %2395 = vmatmul.mubr.bf16.gmra.mrb[0].mxu0 %v2290
          %v2396 = vpop.f32.mrb[0].mxu0
          %v2397 = vadd.f32 %v2312, %v2396
          %v2398 = vpop.f32.mrb[0].mxu0
          %v2399 = vpop.f32.mrb[0].mxu0
          %v2400 = vpop.f32.mrb[0].mxu0
          %2401 = vdwg.mxu0
          %2402 = vst [vmem:[#allocation19] sm:$0xff] %v2397
        $region88: #{tpu_custom_call.1} parent=55 // pred_fallthru
          _
        // Predicated region
        $region89: #{tpu_custom_call.1} parent=55 // pred_check
          %p2403 = pneg %p232
        $region90: #{tpu_custom_call.1} parent=55 // pred_check_branch
          %2405 = sbr.rel (%p2403) target = $region92
        $region91: #{tpu_custom_call.1} parent=55 // pred_region
          %s2407 = ssub.s32 128, 128
          %2408 = vsyncadd [#allocation10], %s2407
          %s2410 = sshll.u32 [#allocation19], 4
          %s2411 = int_to_ptr.vmem [resolvable:$true] %s2410
          %2413 = dma.vmem_to_hbm [thread:$0]  %s2411, 128, %s9, [#allocation10]
        $region92: #{tpu_custom_call.1} parent=55 // pred_fallthru
          _
        // Predicated region
        $region93: #{tpu_custom_call.1} parent=55 // pred_check
          %p2414 = pneg %p232
        $region94: #{tpu_custom_call.1} parent=55 // pred_check_branch
          %2416 = sbr.rel (%p2414) target = $region96
        $region95: #{tpu_custom_call.1} parent=55 // pred_region
          %2417 = dma.done [#allocation10], 128
        $region96: #{tpu_custom_call.1} parent=55 // pred_fallthru
          _
      $region56: #{tpu_custom_call.1} parent=5 // pred_fallthru
        _
      %p2418 = scmp.le.s32.totalorder 2, %s20
      // Predicated region
      $region97: #{tpu_custom_call.1} parent=5 // pred_check
        %p2419 = pneg %p2418
      $region98: #{tpu_custom_call.1} parent=5 // pred_check_branch
        %2421 = sbr.rel (%p2419) target = $region100
      $region99: #{tpu_custom_call.1} parent=5 // pred_region
        %s2422 = ssub.s32 %s20, 2
      $region100: #{tpu_custom_call.1} parent=5 // pred_fallthru
        _
    $region6: #{tpu_custom_call.1} parent=1 // loop_footer
      %s24 = sadd.s32 1, %s20
    $region7: #{tpu_custom_call.1} parent=1 // loop_footer_branch
      %19 = sbr.rel target = $region3
    $region8: #{tpu_custom_call.1} parent=1 // loop_exit
      _
    %2423 = vsyncpa [#allocation9], 1
    %s2424 = scalar_lea.sflag [#allocation9], 1
    %2425 = vsyncpa %s2424, 1
    %2426 = vsyncpa [#allocation12], 1
    %2427 = vsyncpa [#allocation15], 1
    %2428 = vsyncpa [#allocation18], 1
    %2429 = vsyncpa [#allocation10], 1
    %s2430 = scalar_lea.sflag [#allocation10], 1
    %2431 = vsyncpa %s2430, 1

</llo_original>
